<compile_context>
chip_gen: v7x
topology: tpu7x:2x2x1
jax: 0.10.0
libtpu: 0.0.40
codegen_flags: <defaults>
</compile_context>

<pallas_src>
import numpy as np
import jax
import jax.numpy as jnp
from jax import lax
from jax.experimental import pallas as pl
from jax.experimental.pallas import tpu as pltpu


# --------------------------------------------------------------------------
# helpers
# --------------------------------------------------------------------------
def _sigmoid(x):
    # exact logistic-sigmoid identity; tanh runs on the EUP slot (no f32 divide on the VALU)
    return 0.5 * (jnp.tanh(0.5 * x) + 1.0)


def _round_up(x, m):
    return ((x + m - 1) // m) * m


# --------------------------------------------------------------------------
# Fused kernel factory
# --------------------------------------------------------------------------
def _make_gru_kernel(num_layers, seq_len, hidden_dim, batch_pad):
    L, T, H, Bp = num_layers, seq_len, hidden_dim, batch_pad
    G = 3 * H

    def kernel(*refs):
        (x0_ref, w0_ref, xst_ref, wst_ref, bst_ref,
         whs_ref, whd_ref, bhd_ref) = refs[:8]
        idx = 8
        l0 = (refs[idx], refs[idx + 1], refs[idx + 2])          # w_hh_0, bg_0, bn_0
        idx += 3
        rest = []
        for _ in range(1, L):                                   # w_ih_l, w_hh_l, bg_l, bn_l
            rest.append((refs[idx], refs[idx + 1], refs[idx + 2], refs[idx + 3]))
            idx += 4
        out_ref = refs[idx]
        hseq_ref = refs[idx + 1]                                # (T*Bp, H) VMEM scratch

        def cell(gi_t, gh, h_prev, bn):
            # gi_t already carries b_ih + b_hh for the r/z gates (pre-summed in wrapper)
            rz = _sigmoid(gi_t[:, :2 * H] + gh[:, :2 * H])      # one fused sigmoid for r and z
            r = rz[:, :H]
            z = rz[:, H:]
            n = jnp.tanh(gi_t[:, 2 * H:] + r * (gh[:, 2 * H:] + bn))
            return n + z * (h_prev - n)                         # == (1-z)*n + z*h

        # ---- layer 0: iDFT + input->gate projection for ALL timesteps in ONE matmul ----
        gi0 = jnp.dot(x0_ref[...], w0_ref[...],
                      preferred_element_type=jnp.float32)       # (Bp, T*G)
        w_hh = l0[0][...]
        bg = l0[1][...]
        bn = l0[2][...]
        h = jnp.zeros((Bp, H), jnp.float32)
        for t in range(T):                                      # fully unrolled, static slices
            gh = jnp.dot(h, w_hh, preferred_element_type=jnp.float32)
            gi_t = gi0[:, t * G:(t + 1) * G] + bg
            h = cell(gi_t, gh, h, bn)
            if L > 1:
                hseq_ref[t * Bp:(t + 1) * Bp, :] = h

        # ---- layers 1 .. L-1: one batched input projection, then the recurrence ----
        for li, (w_ih_ref, w_hh_ref, bg_ref, bn_ref) in enumerate(rest, start=1):
            gi_all = jnp.dot(hseq_ref[...], w_ih_ref[...],
                             preferred_element_type=jnp.float32) + bg_ref[...]   # (T*Bp, G)
            w_hh = w_hh_ref[...]
            bn = bn_ref[...]
            h = jnp.zeros((Bp, H), jnp.float32)
            for t in range(T):
                gh = jnp.dot(h, w_hh, preferred_element_type=jnp.float32)
                gi_t = gi_all[t * Bp:(t + 1) * Bp, :]           # contiguous sublane-tile slice
                h = cell(gi_t, gh, h, bn)
                if li < L - 1:
                    hseq_ref[t * Bp:(t + 1) * Bp, :] = h

        # ---- static projection + head (lane-dense padded output) ----
        h_static = jnp.dot(xst_ref[...], wst_ref[...],
                           preferred_element_type=jnp.float32) + bst_ref[...]
        out_ref[...] = (jnp.dot(h_static, whs_ref[...], preferred_element_type=jnp.float32)
                        + jnp.dot(h, whd_ref[...], preferred_element_type=jnp.float32)
                        + bhd_ref[...])

    return kernel


# --------------------------------------------------------------------------
# Wrapper-side weight prep: fuse real(ifft) and the layer-0 input projection into one matrix.
#   gi0[b, t*3H + g] = sum_d x_dyn[b,d,t] * w_i[d,g]
#                    + sum_{v,k} ( re[b,v,k]*cos(2pi k t/T) - im[b,v,k]*sin(2pi k t/T) )/T * w_v[v,g]
# --------------------------------------------------------------------------
def _build_w0(w_ih0, I, V, T, H):
    G = 3 * H
    w_i = w_ih0[:I]                                   # (I, 3H)
    w_v = w_ih0[I:]                                   # (V, 3H)
    k = jnp.arange(T)
    kn = (k[:, None] * k[None, :]) % T                # exact angle reduction -> accurate cos/sin
    ang = (2.0 * jnp.pi / T) * kn.astype(jnp.float32)
    cos_m = jnp.cos(ang) / T                          # (T, T)  [freq k, time t]
    sin_m = jnp.sin(ang) / T
    eye_t = jnp.eye(T, dtype=jnp.float32)
    w_int = jnp.einsum('dg,ut->dutg', w_i, eye_t).reshape(I * T, T * G)
    w_re = jnp.einsum('vg,kt->vktg', w_v, cos_m).reshape(V * T, T * G)
    w_im = jnp.einsum('vg,kt->vktg', w_v, -sin_m).reshape(V * T, T * G)
    return jnp.concatenate([w_int, w_re, w_im], axis=0)          # (I*T + 2*V*T, T*3H)


# --------------------------------------------------------------------------
# Parameter init (deterministic, PyTorch-like uniform bounds; stored transposed).
# --------------------------------------------------------------------------
def init_params(key, configs):
    S = configs['static_feats_num']
    I = configs['intervention_feats_num']
    V = configs['vital_feats_num']
    H = configs['hidden_dim']
    L = configs['layer_num']
    O = configs['out_dim']
    D = I + V

    def uni(k, shape, bound):
        return jax.random.uniform(k, shape, jnp.float32, -bound, bound)

    keys = jax.random.split(key, 4 + 4 * L)
    params = {
        'w_static': uni(keys[0], (S, H), 1.0 / np.sqrt(S)),
        'b_static': uni(keys[1], (1, H), 1.0 / np.sqrt(S)),
        'w_head':   uni(keys[2], (2 * H, O), 1.0 / np.sqrt(2 * H)),
        'b_head':   uni(keys[3], (1, O), 1.0 / np.sqrt(2 * H)),
    }
    idx = 4
    for l in range(L):
        in_dim = D if l == 0 else H
        bound = 1.0 / np.sqrt(H)
        params[f'w_ih_{l}'] = uni(keys[idx], (in_dim, 3 * H), bound); idx += 1
        params[f'w_hh_{l}'] = uni(keys[idx], (H, 3 * H), bound);      idx += 1
        params[f'b_ih_{l}'] = uni(keys[idx], (1, 3 * H), bound);      idx += 1
        params[f'b_hh_{l}'] = uni(keys[idx], (1, 3 * H), bound);      idx += 1
    return params


# --------------------------------------------------------------------------
# Forward wrapper (all hot-path compute in one pallas_call).
# --------------------------------------------------------------------------
def gru_forward(params, x_static, x_dynamic, fourier_coeffs, configs):
    I = configs['intervention_feats_num']
    V = configs['vital_feats_num']
    H = configs['hidden_dim']
    L = configs['layer_num']
    O = configs['out_dim']
    B = x_static.shape[0]
    T = x_dynamic.shape[-1]
    G = 3 * H
    Bp = max(8, _round_up(B, 8))          # sublane-aligned batch
    Op = max(128, _round_up(O, 128))      # lane-dense output

    # Flattened layer-0 input: [interventions | Re(coeffs) | Im(coeffs)]  ->  (Bp, I*T + 2*V*T)
    re = jnp.real(fourier_coeffs).astype(jnp.float32)
    im = jnp.imag(fourier_coeffs).astype(jnp.float32)
    x0 = jnp.concatenate([x_dynamic.astype(jnp.float32).reshape(B, I * T),
                          re.reshape(B, V * T), im.reshape(B, V * T)], axis=1)
    x0 = jnp.pad(x0, ((0, Bp - B), (0, 0)))
    xst = jnp.pad(x_static.astype(jnp.float32), ((0, Bp - B), (0, 0)))

    w0 = _build_w0(params['w_ih_0'], I, V, T, H)                      # fused iDFT + w_ih_0

    whd = params['w_head']                                            # (2H, O)
    whd_s = jnp.pad(whd[:H], ((0, 0), (0, Op - O)))
    whd_d = jnp.pad(whd[H:], ((0, 0), (0, Op - O)))
    bhd = jnp.pad(params['b_head'], ((0, 0), (0, Op - O)))

    def gate_biases(l):
        b_ih = params[f'b_ih_{l}']
        b_hh = params[f'b_hh_{l}']
        # r/z hidden biases folded into the input-side bias; n-gate hidden bias stays inside r*(.)
        bg = b_ih + jnp.concatenate([b_hh[:, :2 * H], jnp.zeros((1, H), jnp.float32)], axis=1)
        bn = b_hh[:, 2 * H:]
        return bg, bn

    args = [x0, w0, xst, params['w_static'], params['b_static'], whd_s, whd_d, bhd]
    bg0, bn0 = gate_biases(0)
    args += [params['w_hh_0'], bg0, bn0]
    for l in range(1, L):
        bg, bn = gate_biases(l)
        args += [params[f'w_ih_{l}'], params[f'w_hh_{l}'], bg, bn]

    out_p = pl.pallas_call(
        _make_gru_kernel(L, T, H, Bp),
        out_shape=jax.ShapeDtypeStruct((Bp, Op), jnp.float32),
        in_specs=[pl.BlockSpec(memory_space=pltpu.MemorySpace.VMEM)] * len(args),
        out_specs=pl.BlockSpec(memory_space=pltpu.MemorySpace.VMEM),
        scratch_shapes=[pltpu.VMEM((T * Bp, H), jnp.float32)],
    )(*args)

    logits = out_p[:B, :O]
    # nn.GRU inter-layer dropout is train-only; this forward is eval-mode, so it is a no-op.
    return {'logits': logits, 'reconstructed_vitals': None}


# --------------------------------------------------------------------------
# Pure-JAX reference (same math) for a sanity check.
# --------------------------------------------------------------------------
def reference_forward(params, x_static, x_dynamic, fourier_coeffs, configs):
    H, L = configs['hidden_dim'], configs['layer_num']
    x_vitals = jnp.fft.ifft(fourier_coeffs, axis=-1).real.astype(jnp.float32)
    x_dyn = jnp.concatenate([x_dynamic.astype(jnp.float32), x_vitals], axis=1)
    x_seq = jnp.transpose(x_dyn, (0, 2, 1))                       # (B, T, D)
    B, T, _ = x_seq.shape
    hs = [jnp.zeros((B, H), jnp.float32) for _ in range(L)]
    for t in range(T):
        inp = x_seq[:, t, :]
        for l in range(L):
            gi = inp @ params[f'w_ih_{l}'] + params[f'b_ih_{l}']
            gh = hs[l] @ params[f'w_hh_{l}'] + params[f'b_hh_{l}']
            r = jax.nn.sigmoid(gi[:, :H] + gh[:, :H])
            z = jax.nn.sigmoid(gi[:, H:2 * H] + gh[:, H:2 * H])
            n = jnp.tanh(gi[:, 2 * H:] + r * gh[:, 2 * H:])
            hs[l] = (1.0 - z) * n + z * hs[l]
            inp = hs[l]
    h_static = x_static.astype(jnp.float32) @ params['w_static'] + params['b_static']
    h_joint = jnp.concatenate([h_static, hs[-1]], axis=-1)
    return h_joint @ params['w_head'] + params['b_head']


if __name__ == "__main__":
    configs = dict(static_feats_num=5, intervention_feats_num=3, vital_feats_num=4,
                   hidden_dim=32, layer_num=2, out_dim=2, dropout=0.0)
    B, T = 2, 16

    key = jax.random.PRNGKey(0)
    k_p, k_s, k_d, k_fr, k_fi = jax.random.split(key, 5)
    params = init_params(k_p, configs)

    x_static = jax.random.normal(k_s, (B, configs['static_feats_num']), jnp.float32)
    x_dynamic = jax.random.normal(k_d, (B, configs['intervention_feats_num'], T), jnp.float32)
    fourier_coeffs = (
        jax.random.normal(k_fr, (B, configs['vital_feats_num'], T), jnp.float32)
        + 1j * jax.random.normal(k_fi, (B, configs['vital_feats_num'], T), jnp.float32)
    ).astype(jnp.complex64)

    fwd = jax.jit(lambda p, xs, xd, fc: gru_forward(p, xs, xd, fc, configs))
    out = fwd(params, x_static, x_dynamic, fourier_coeffs)
    logits = jax.block_until_ready(out['logits'])

    ref = reference_forward(params, x_static, x_dynamic, fourier_coeffs, configs)
    max_diff = float(jnp.max(jnp.abs(logits - ref)))
    assert logits.shape == (B, configs['out_dim'])
    assert max_diff < 1e-3, f"mismatch vs reference: {max_diff}"
    print("KERNEL_OK")
</pallas_src>

<mosaic_0001>
module attributes {stable_mosaic.version = 11 : i64} {
  func.func @kernel(%arg0: memref<8x176xf32, #tpu.memory_space<vmem>>, %arg1: memref<176x1536xf32, #tpu.memory_space<vmem>>, %arg2: memref<8x5xf32, #tpu.memory_space<vmem>>, %arg3: memref<5x32xf32, #tpu.memory_space<vmem>>, %arg4: memref<1x32xf32, #tpu.memory_space<vmem>>, %arg5: memref<32x128xf32, #tpu.memory_space<vmem>>, %arg6: memref<32x128xf32, #tpu.memory_space<vmem>>, %arg7: memref<1x128xf32, #tpu.memory_space<vmem>>, %arg8: memref<32x96xf32, #tpu.memory_space<vmem>>, %arg9: memref<1x96xf32, #tpu.memory_space<vmem>>, %arg10: memref<1x32xf32, #tpu.memory_space<vmem>>, %arg11: memref<32x96xf32, #tpu.memory_space<vmem>>, %arg12: memref<32x96xf32, #tpu.memory_space<vmem>>, %arg13: memref<1x96xf32, #tpu.memory_space<vmem>>, %arg14: memref<1x32xf32, #tpu.memory_space<vmem>>, %arg15: memref<8x128xf32, #tpu.memory_space<vmem>>, %arg16: memref<128x32xf32, #tpu.memory_space<vmem>>) attributes {dimension_semantics = [], scalar_prefetch = 0 : i64, scratch_operands = 1 : i64, tpu.core_type = #tpu.core_type<tc>} {
    %c0 = arith.constant 0 : index
    %c0_0 = arith.constant 0 : index
    %0 = vector.load %arg0[%c0, %c0_0] : memref<8x176xf32, #tpu.memory_space<vmem>>, vector<8x176xf32>
    %c0_1 = arith.constant 0 : index
    %c0_2 = arith.constant 0 : index
    %1 = vector.load %arg1[%c0_1, %c0_2] : memref<176x1536xf32, #tpu.memory_space<vmem>>, vector<176x1536xf32>
    %cst = arith.constant dense<0.000000e+00> : vector<8x1536xf32>
    %2 = tpu.matmul %0, %1, %cst {dimension_numbers = #tpu.dot_dimension_numbers<[1], [0], [0], [1], [0, 0, 1, 1], [], []>} : vector<8x176xf32>, vector<176x1536xf32>, vector<8x1536xf32> -> vector<8x1536xf32>
    %c0_3 = arith.constant 0 : index
    %c0_4 = arith.constant 0 : index
    %3 = vector.load %arg8[%c0_3, %c0_4] : memref<32x96xf32, #tpu.memory_space<vmem>>, vector<32x96xf32>
    %c0_5 = arith.constant 0 : index
    %c0_6 = arith.constant 0 : index
    %4 = vector.load %arg9[%c0_5, %c0_6] : memref<1x96xf32, #tpu.memory_space<vmem>>, vector<1x96xf32>
    %c0_7 = arith.constant 0 : index
    %c0_8 = arith.constant 0 : index
    %5 = vector.load %arg10[%c0_7, %c0_8] : memref<1x32xf32, #tpu.memory_space<vmem>>, vector<1x32xf32>
    %cst_9 = arith.constant 0.000000e+00 : f32
    %6 = vector.broadcast %cst_9 : f32 to vector<8x32xf32>
    %cst_10 = arith.constant dense<0.000000e+00> : vector<8x96xf32>
    %7 = tpu.matmul %6, %3, %cst_10 {dimension_numbers = #tpu.dot_dimension_numbers<[1], [0], [0], [1], [0, 0, 1, 1], [], []>} : vector<8x32xf32>, vector<32x96xf32>, vector<8x96xf32> -> vector<8x96xf32>
    %8 = vector.extract_strided_slice %2 {offsets = [0, 0], sizes = [8, 96], strides = [1, 1]} : vector<8x1536xf32> to vector<8x96xf32>
    %9 = vector.broadcast %4 : vector<1x96xf32> to vector<8x96xf32>
    %10 = arith.addf %8, %9 : vector<8x96xf32>
    %11 = vector.extract_strided_slice %10 {offsets = [0, 0], sizes = [8, 64], strides = [1, 1]} : vector<8x96xf32> to vector<8x64xf32>
    %12 = vector.extract_strided_slice %7 {offsets = [0, 0], sizes = [8, 64], strides = [1, 1]} : vector<8x96xf32> to vector<8x64xf32>
    %13 = arith.addf %11, %12 : vector<8x64xf32>
    %cst_11 = arith.constant 5.000000e-01 : f32
    %14 = vector.broadcast %cst_11 : f32 to vector<8x64xf32>
    %15 = arith.mulf %14, %13 : vector<8x64xf32>
    %16 = math.tanh %15 : vector<8x64xf32>
    %cst_12 = arith.constant 1.000000e+00 : f32
    %17 = vector.broadcast %cst_12 : f32 to vector<8x64xf32>
    %18 = arith.addf %16, %17 : vector<8x64xf32>
    %cst_13 = arith.constant 5.000000e-01 : f32
    %19 = vector.broadcast %cst_13 : f32 to vector<8x64xf32>
    %20 = arith.mulf %19, %18 : vector<8x64xf32>
    %21 = vector.extract_strided_slice %20 {offsets = [0, 0], sizes = [8, 32], strides = [1, 1]} : vector<8x64xf32> to vector<8x32xf32>
    %22 = vector.extract_strided_slice %20 {offsets = [0, 32], sizes = [8, 32], strides = [1, 1]} : vector<8x64xf32> to vector<8x32xf32>
    %23 = vector.extract_strided_slice %10 {offsets = [0, 64], sizes = [8, 32], strides = [1, 1]} : vector<8x96xf32> to vector<8x32xf32>
    %24 = vector.extract_strided_slice %7 {offsets = [0, 64], sizes = [8, 32], strides = [1, 1]} : vector<8x96xf32> to vector<8x32xf32>
    %25 = vector.broadcast %5 : vector<1x32xf32> to vector<8x32xf32>
    %26 = arith.addf %24, %25 : vector<8x32xf32>
    %27 = arith.mulf %21, %26 : vector<8x32xf32>
    %28 = arith.addf %23, %27 : vector<8x32xf32>
    %29 = math.tanh %28 : vector<8x32xf32>
    %30 = arith.subf %6, %29 : vector<8x32xf32>
    %31 = arith.mulf %22, %30 : vector<8x32xf32>
    %32 = arith.addf %29, %31 : vector<8x32xf32>
    %c0_14 = arith.constant 0 : index
    %c0_15 = arith.constant 0 : index
    %33 = vector.load %arg16[%c0_14, %c0_15] : memref<128x32xf32, #tpu.memory_space<vmem>>, vector<8x32xf32>
    tpu.vector_store %arg16[%c0_14, %c0_15], %32 {strides = array<i32>} : memref<128x32xf32, #tpu.memory_space<vmem>>, vector<8x32xf32>,
    %cst_16 = arith.constant dense<0.000000e+00> : vector<8x96xf32>
    %34 = tpu.matmul %32, %3, %cst_16 {dimension_numbers = #tpu.dot_dimension_numbers<[1], [0], [0], [1], [0, 0, 1, 1], [], []>} : vector<8x32xf32>, vector<32x96xf32>, vector<8x96xf32> -> vector<8x96xf32>
    %35 = vector.extract_strided_slice %2 {offsets = [0, 96], sizes = [8, 96], strides = [1, 1]} : vector<8x1536xf32> to vector<8x96xf32>
    %36 = vector.broadcast %4 : vector<1x96xf32> to vector<8x96xf32>
    %37 = arith.addf %35, %36 : vector<8x96xf32>
    %38 = vector.extract_strided_slice %37 {offsets = [0, 0], sizes = [8, 64], strides = [1, 1]} : vector<8x96xf32> to vector<8x64xf32>
    %39 = vector.extract_strided_slice %34 {offsets = [0, 0], sizes = [8, 64], strides = [1, 1]} : vector<8x96xf32> to vector<8x64xf32>
    %40 = arith.addf %38, %39 : vector<8x64xf32>
    %cst_17 = arith.constant 5.000000e-01 : f32
    %41 = vector.broadcast %cst_17 : f32 to vector<8x64xf32>
    %42 = arith.mulf %41, %40 : vector<8x64xf32>
    %43 = math.tanh %42 : vector<8x64xf32>
    %cst_18 = arith.constant 1.000000e+00 : f32
    %44 = vector.broadcast %cst_18 : f32 to vector<8x64xf32>
    %45 = arith.addf %43, %44 : vector<8x64xf32>
    %cst_19 = arith.constant 5.000000e-01 : f32
    %46 = vector.broadcast %cst_19 : f32 to vector<8x64xf32>
    %47 = arith.mulf %46, %45 : vector<8x64xf32>
    %48 = vector.extract_strided_slice %47 {offsets = [0, 0], sizes = [8, 32], strides = [1, 1]} : vector<8x64xf32> to vector<8x32xf32>
    %49 = vector.extract_strided_slice %47 {offsets = [0, 32], sizes = [8, 32], strides = [1, 1]} : vector<8x64xf32> to vector<8x32xf32>
    %50 = vector.extract_strided_slice %37 {offsets = [0, 64], sizes = [8, 32], strides = [1, 1]} : vector<8x96xf32> to vector<8x32xf32>
    %51 = vector.extract_strided_slice %34 {offsets = [0, 64], sizes = [8, 32], strides = [1, 1]} : vector<8x96xf32> to vector<8x32xf32>
    %52 = vector.broadcast %5 : vector<1x32xf32> to vector<8x32xf32>
    %53 = arith.addf %51, %52 : vector<8x32xf32>
    %54 = arith.mulf %48, %53 : vector<8x32xf32>
    %55 = arith.addf %50, %54 : vector<8x32xf32>
    %56 = math.tanh %55 : vector<8x32xf32>
    %57 = arith.subf %32, %56 : vector<8x32xf32>
    %58 = arith.mulf %49, %57 : vector<8x32xf32>
    %59 = arith.addf %56, %58 : vector<8x32xf32>
    %c8 = arith.constant 8 : index
    %c0_20 = arith.constant 0 : index
    %60 = vector.load %arg16[%c8, %c0_20] : memref<128x32xf32, #tpu.memory_space<vmem>>, vector<8x32xf32>
    tpu.vector_store %arg16[%c8, %c0_20], %59 {strides = array<i32>} : memref<128x32xf32, #tpu.memory_space<vmem>>, vector<8x32xf32>,
    %cst_21 = arith.constant dense<0.000000e+00> : vector<8x96xf32>
    %61 = tpu.matmul %59, %3, %cst_21 {dimension_numbers = #tpu.dot_dimension_numbers<[1], [0], [0], [1], [0, 0, 1, 1], [], []>} : vector<8x32xf32>, vector<32x96xf32>, vector<8x96xf32> -> vector<8x96xf32>
    %62 = vector.extract_strided_slice %2 {offsets = [0, 192], sizes = [8, 96], strides = [1, 1]} : vector<8x1536xf32> to vector<8x96xf32>
    %63 = vector.broadcast %4 : vector<1x96xf32> to vector<8x96xf32>
    %64 = arith.addf %62, %63 : vector<8x96xf32>
    %65 = vector.extract_strided_slice %64 {offsets = [0, 0], sizes = [8, 64], strides = [1, 1]} : vector<8x96xf32> to vector<8x64xf32>
    %66 = vector.extract_strided_slice %61 {offsets = [0, 0], sizes = [8, 64], strides = [1, 1]} : vector<8x96xf32> to vector<8x64xf32>
    %67 = arith.addf %65, %66 : vector<8x64xf32>
    %cst_22 = arith.constant 5.000000e-01 : f32
    %68 = vector.broadcast %cst_22 : f32 to vector<8x64xf32>
    %69 = arith.mulf %68, %67 : vector<8x64xf32>
    %70 = math.tanh %69 : vector<8x64xf32>
    %cst_23 = arith.constant 1.000000e+00 : f32
    %71 = vector.broadcast %cst_23 : f32 to vector<8x64xf32>
    %72 = arith.addf %70, %71 : vector<8x64xf32>
    %cst_24 = arith.constant 5.000000e-01 : f32
    %73 = vector.broadcast %cst_24 : f32 to vector<8x64xf32>
    %74 = arith.mulf %73, %72 : vector<8x64xf32>
    %75 = vector.extract_strided_slice %74 {offsets = [0, 0], sizes = [8, 32], strides = [1, 1]} : vector<8x64xf32> to vector<8x32xf32>
    %76 = vector.extract_strided_slice %74 {offsets = [0, 32], sizes = [8, 32], strides = [1, 1]} : vector<8x64xf32> to vector<8x32xf32>
    %77 = vector.extract_strided_slice %64 {offsets = [0, 64], sizes = [8, 32], strides = [1, 1]} : vector<8x96xf32> to vector<8x32xf32>
    %78 = vector.extract_strided_slice %61 {offsets = [0, 64], sizes = [8, 32], strides = [1, 1]} : vector<8x96xf32> to vector<8x32xf32>
    %79 = vector.broadcast %5 : vector<1x32xf32> to vector<8x32xf32>
    %80 = arith.addf %78, %79 : vector<8x32xf32>
    %81 = arith.mulf %75, %80 : vector<8x32xf32>
    %82 = arith.addf %77, %81 : vector<8x32xf32>
    %83 = math.tanh %82 : vector<8x32xf32>
    %84 = arith.subf %59, %83 : vector<8x32xf32>
    %85 = arith.mulf %76, %84 : vector<8x32xf32>
    %86 = arith.addf %83, %85 : vector<8x32xf32>
    %c16 = arith.constant 16 : index
    %c0_25 = arith.constant 0 : index
    %87 = vector.load %arg16[%c16, %c0_25] : memref<128x32xf32, #tpu.memory_space<vmem>>, vector<8x32xf32>
    tpu.vector_store %arg16[%c16, %c0_25], %86 {strides = array<i32>} : memref<128x32xf32, #tpu.memory_space<vmem>>, vector<8x32xf32>,
    %cst_26 = arith.constant dense<0.000000e+00> : vector<8x96xf32>
    %88 = tpu.matmul %86, %3, %cst_26 {dimension_numbers = #tpu.dot_dimension_numbers<[1], [0], [0], [1], [0, 0, 1, 1], [], []>} : vector<8x32xf32>, vector<32x96xf32>, vector<8x96xf32> -> vector<8x96xf32>
    %89 = vector.extract_strided_slice %2 {offsets = [0, 288], sizes = [8, 96], strides = [1, 1]} : vector<8x1536xf32> to vector<8x96xf32>
    %90 = vector.broadcast %4 : vector<1x96xf32> to vector<8x96xf32>
    %91 = arith.addf %89, %90 : vector<8x96xf32>
    %92 = vector.extract_strided_slice %91 {offsets = [0, 0], sizes = [8, 64], strides = [1, 1]} : vector<8x96xf32> to vector<8x64xf32>
    %93 = vector.extract_strided_slice %88 {offsets = [0, 0], sizes = [8, 64], strides = [1, 1]} : vector<8x96xf32> to vector<8x64xf32>
    %94 = arith.addf %92, %93 : vector<8x64xf32>
    %cst_27 = arith.constant 5.000000e-01 : f32
    %95 = vector.broadcast %cst_27 : f32 to vector<8x64xf32>
    %96 = arith.mulf %95, %94 : vector<8x64xf32>
    %97 = math.tanh %96 : vector<8x64xf32>
    %cst_28 = arith.constant 1.000000e+00 : f32
    %98 = vector.broadcast %cst_28 : f32 to vector<8x64xf32>
    %99 = arith.addf %97, %98 : vector<8x64xf32>
    %cst_29 = arith.constant 5.000000e-01 : f32
    %100 = vector.broadcast %cst_29 : f32 to vector<8x64xf32>
    %101 = arith.mulf %100, %99 : vector<8x64xf32>
    %102 = vector.extract_strided_slice %101 {offsets = [0, 0], sizes = [8, 32], strides = [1, 1]} : vector<8x64xf32> to vector<8x32xf32>
    %103 = vector.extract_strided_slice %101 {offsets = [0, 32], sizes = [8, 32], strides = [1, 1]} : vector<8x64xf32> to vector<8x32xf32>
    %104 = vector.extract_strided_slice %91 {offsets = [0, 64], sizes = [8, 32], strides = [1, 1]} : vector<8x96xf32> to vector<8x32xf32>
    %105 = vector.extract_strided_slice %88 {offsets = [0, 64], sizes = [8, 32], strides = [1, 1]} : vector<8x96xf32> to vector<8x32xf32>
    %106 = vector.broadcast %5 : vector<1x32xf32> to vector<8x32xf32>
    %107 = arith.addf %105, %106 : vector<8x32xf32>
    %108 = arith.mulf %102, %107 : vector<8x32xf32>
    %109 = arith.addf %104, %108 : vector<8x32xf32>
    %110 = math.tanh %109 : vector<8x32xf32>
    %111 = arith.subf %86, %110 : vector<8x32xf32>
    %112 = arith.mulf %103, %111 : vector<8x32xf32>
    %113 = arith.addf %110, %112 : vector<8x32xf32>
    %c24 = arith.constant 24 : index
    %c0_30 = arith.constant 0 : index
    %114 = vector.load %arg16[%c24, %c0_30] : memref<128x32xf32, #tpu.memory_space<vmem>>, vector<8x32xf32>
    tpu.vector_store %arg16[%c24, %c0_30], %113 {strides = array<i32>} : memref<128x32xf32, #tpu.memory_space<vmem>>, vector<8x32xf32>,
    %cst_31 = arith.constant dense<0.000000e+00> : vector<8x96xf32>
    %115 = tpu.matmul %113, %3, %cst_31 {dimension_numbers = #tpu.dot_dimension_numbers<[1], [0], [0], [1], [0, 0, 1, 1], [], []>} : vector<8x32xf32>, vector<32x96xf32>, vector<8x96xf32> -> vector<8x96xf32>
    %116 = vector.extract_strided_slice %2 {offsets = [0, 384], sizes = [8, 96], strides = [1, 1]} : vector<8x1536xf32> to vector<8x96xf32>
    %117 = vector.broadcast %4 : vector<1x96xf32> to vector<8x96xf32>
    %118 = arith.addf %116, %117 : vector<8x96xf32>
    %119 = vector.extract_strided_slice %118 {offsets = [0, 0], sizes = [8, 64], strides = [1, 1]} : vector<8x96xf32> to vector<8x64xf32>
    %120 = vector.extract_strided_slice %115 {offsets = [0, 0], sizes = [8, 64], strides = [1, 1]} : vector<8x96xf32> to vector<8x64xf32>
    %121 = arith.addf %119, %120 : vector<8x64xf32>
    %cst_32 = arith.constant 5.000000e-01 : f32
    %122 = vector.broadcast %cst_32 : f32 to vector<8x64xf32>
    %123 = arith.mulf %122, %121 : vector<8x64xf32>
    %124 = math.tanh %123 : vector<8x64xf32>
    %cst_33 = arith.constant 1.000000e+00 : f32
    %125 = vector.broadcast %cst_33 : f32 to vector<8x64xf32>
    %126 = arith.addf %124, %125 : vector<8x64xf32>
    %cst_34 = arith.constant 5.000000e-01 : f32
    %127 = vector.broadcast %cst_34 : f32 to vector<8x64xf32>
    %128 = arith.mulf %127, %126 : vector<8x64xf32>
    %129 = vector.extract_strided_slice %128 {offsets = [0, 0], sizes = [8, 32], strides = [1, 1]} : vector<8x64xf32> to vector<8x32xf32>
    %130 = vector.extract_strided_slice %128 {offsets = [0, 32], sizes = [8, 32], strides = [1, 1]} : vector<8x64xf32> to vector<8x32xf32>
    %131 = vector.extract_strided_slice %118 {offsets = [0, 64], sizes = [8, 32], strides = [1, 1]} : vector<8x96xf32> to vector<8x32xf32>
    %132 = vector.extract_strided_slice %115 {offsets = [0, 64], sizes = [8, 32], strides = [1, 1]} : vector<8x96xf32> to vector<8x32xf32>
    %133 = vector.broadcast %5 : vector<1x32xf32> to vector<8x32xf32>
    %134 = arith.addf %132, %133 : vector<8x32xf32>
    %135 = arith.mulf %129, %134 : vector<8x32xf32>
    %136 = arith.addf %131, %135 : vector<8x32xf32>
    %137 = math.tanh %136 : vector<8x32xf32>
    %138 = arith.subf %113, %137 : vector<8x32xf32>
    %139 = arith.mulf %130, %138 : vector<8x32xf32>
    %140 = arith.addf %137, %139 : vector<8x32xf32>
    %c32 = arith.constant 32 : index
    %c0_35 = arith.constant 0 : index
    %141 = vector.load %arg16[%c32, %c0_35] : memref<128x32xf32, #tpu.memory_space<vmem>>, vector<8x32xf32>
    tpu.vector_store %arg16[%c32, %c0_35], %140 {strides = array<i32>} : memref<128x32xf32, #tpu.memory_space<vmem>>, vector<8x32xf32>,
    %cst_36 = arith.constant dense<0.000000e+00> : vector<8x96xf32>
    %142 = tpu.matmul %140, %3, %cst_36 {dimension_numbers = #tpu.dot_dimension_numbers<[1], [0], [0], [1], [0, 0, 1, 1], [], []>} : vector<8x32xf32>, vector<32x96xf32>, vector<8x96xf32> -> vector<8x96xf32>
    %143 = vector.extract_strided_slice %2 {offsets = [0, 480], sizes = [8, 96], strides = [1, 1]} : vector<8x1536xf32> to vector<8x96xf32>
    %144 = vector.broadcast %4 : vector<1x96xf32> to vector<8x96xf32>
    %145 = arith.addf %143, %144 : vector<8x96xf32>
    %146 = vector.extract_strided_slice %145 {offsets = [0, 0], sizes = [8, 64], strides = [1, 1]} : vector<8x96xf32> to vector<8x64xf32>
    %147 = vector.extract_strided_slice %142 {offsets = [0, 0], sizes = [8, 64], strides = [1, 1]} : vector<8x96xf32> to vector<8x64xf32>
    %148 = arith.addf %146, %147 : vector<8x64xf32>
    %cst_37 = arith.constant 5.000000e-01 : f32
    %149 = vector.broadcast %cst_37 : f32 to vector<8x64xf32>
    %150 = arith.mulf %149, %148 : vector<8x64xf32>
    %151 = math.tanh %150 : vector<8x64xf32>
    %cst_38 = arith.constant 1.000000e+00 : f32
    %152 = vector.broadcast %cst_38 : f32 to vector<8x64xf32>
    %153 = arith.addf %151, %152 : vector<8x64xf32>
    %cst_39 = arith.constant 5.000000e-01 : f32
    %154 = vector.broadcast %cst_39 : f32 to vector<8x64xf32>
    %155 = arith.mulf %154, %153 : vector<8x64xf32>
    %156 = vector.extract_strided_slice %155 {offsets = [0, 0], sizes = [8, 32], strides = [1, 1]} : vector<8x64xf32> to vector<8x32xf32>
    %157 = vector.extract_strided_slice %155 {offsets = [0, 32], sizes = [8, 32], strides = [1, 1]} : vector<8x64xf32> to vector<8x32xf32>
    %158 = vector.extract_strided_slice %145 {offsets = [0, 64], sizes = [8, 32], strides = [1, 1]} : vector<8x96xf32> to vector<8x32xf32>
    %159 = vector.extract_strided_slice %142 {offsets = [0, 64], sizes = [8, 32], strides = [1, 1]} : vector<8x96xf32> to vector<8x32xf32>
    %160 = vector.broadcast %5 : vector<1x32xf32> to vector<8x32xf32>
    %161 = arith.addf %159, %160 : vector<8x32xf32>
    %162 = arith.mulf %156, %161 : vector<8x32xf32>
    %163 = arith.addf %158, %162 : vector<8x32xf32>
    %164 = math.tanh %163 : vector<8x32xf32>
    %165 = arith.subf %140, %164 : vector<8x32xf32>
    %166 = arith.mulf %157, %165 : vector<8x32xf32>
    %167 = arith.addf %164, %166 : vector<8x32xf32>
    %c40 = arith.constant 40 : index
    %c0_40 = arith.constant 0 : index
    %168 = vector.load %arg16[%c40, %c0_40] : memref<128x32xf32, #tpu.memory_space<vmem>>, vector<8x32xf32>
    tpu.vector_store %arg16[%c40, %c0_40], %167 {strides = array<i32>} : memref<128x32xf32, #tpu.memory_space<vmem>>, vector<8x32xf32>,
    %cst_41 = arith.constant dense<0.000000e+00> : vector<8x96xf32>
    %169 = tpu.matmul %167, %3, %cst_41 {dimension_numbers = #tpu.dot_dimension_numbers<[1], [0], [0], [1], [0, 0, 1, 1], [], []>} : vector<8x32xf32>, vector<32x96xf32>, vector<8x96xf32> -> vector<8x96xf32>
    %170 = vector.extract_strided_slice %2 {offsets = [0, 576], sizes = [8, 96], strides = [1, 1]} : vector<8x1536xf32> to vector<8x96xf32>
    %171 = vector.broadcast %4 : vector<1x96xf32> to vector<8x96xf32>
    %172 = arith.addf %170, %171 : vector<8x96xf32>
    %173 = vector.extract_strided_slice %172 {offsets = [0, 0], sizes = [8, 64], strides = [1, 1]} : vector<8x96xf32> to vector<8x64xf32>
    %174 = vector.extract_strided_slice %169 {offsets = [0, 0], sizes = [8, 64], strides = [1, 1]} : vector<8x96xf32> to vector<8x64xf32>
    %175 = arith.addf %173, %174 : vector<8x64xf32>
    %cst_42 = arith.constant 5.000000e-01 : f32
    %176 = vector.broadcast %cst_42 : f32 to vector<8x64xf32>
    %177 = arith.mulf %176, %175 : vector<8x64xf32>
    %178 = math.tanh %177 : vector<8x64xf32>
    %cst_43 = arith.constant 1.000000e+00 : f32
    %179 = vector.broadcast %cst_43 : f32 to vector<8x64xf32>
    %180 = arith.addf %178, %179 : vector<8x64xf32>
    %cst_44 = arith.constant 5.000000e-01 : f32
    %181 = vector.broadcast %cst_44 : f32 to vector<8x64xf32>
    %182 = arith.mulf %181, %180 : vector<8x64xf32>
    %183 = vector.extract_strided_slice %182 {offsets = [0, 0], sizes = [8, 32], strides = [1, 1]} : vector<8x64xf32> to vector<8x32xf32>
    %184 = vector.extract_strided_slice %182 {offsets = [0, 32], sizes = [8, 32], strides = [1, 1]} : vector<8x64xf32> to vector<8x32xf32>
    %185 = vector.extract_strided_slice %172 {offsets = [0, 64], sizes = [8, 32], strides = [1, 1]} : vector<8x96xf32> to vector<8x32xf32>
    %186 = vector.extract_strided_slice %169 {offsets = [0, 64], sizes = [8, 32], strides = [1, 1]} : vector<8x96xf32> to vector<8x32xf32>
    %187 = vector.broadcast %5 : vector<1x32xf32> to vector<8x32xf32>
    %188 = arith.addf %186, %187 : vector<8x32xf32>
    %189 = arith.mulf %183, %188 : vector<8x32xf32>
    %190 = arith.addf %185, %189 : vector<8x32xf32>
    %191 = math.tanh %190 : vector<8x32xf32>
    %192 = arith.subf %167, %191 : vector<8x32xf32>
    %193 = arith.mulf %184, %192 : vector<8x32xf32>
    %194 = arith.addf %191, %193 : vector<8x32xf32>
    %c48 = arith.constant 48 : index
    %c0_45 = arith.constant 0 : index
    %195 = vector.load %arg16[%c48, %c0_45] : memref<128x32xf32, #tpu.memory_space<vmem>>, vector<8x32xf32>
    tpu.vector_store %arg16[%c48, %c0_45], %194 {strides = array<i32>} : memref<128x32xf32, #tpu.memory_space<vmem>>, vector<8x32xf32>,
    %cst_46 = arith.constant dense<0.000000e+00> : vector<8x96xf32>
    %196 = tpu.matmul %194, %3, %cst_46 {dimension_numbers = #tpu.dot_dimension_numbers<[1], [0], [0], [1], [0, 0, 1, 1], [], []>} : vector<8x32xf32>, vector<32x96xf32>, vector<8x96xf32> -> vector<8x96xf32>
    %197 = vector.extract_strided_slice %2 {offsets = [0, 672], sizes = [8, 96], strides = [1, 1]} : vector<8x1536xf32> to vector<8x96xf32>
    %198 = vector.broadcast %4 : vector<1x96xf32> to vector<8x96xf32>
    %199 = arith.addf %197, %198 : vector<8x96xf32>
    %200 = vector.extract_strided_slice %199 {offsets = [0, 0], sizes = [8, 64], strides = [1, 1]} : vector<8x96xf32> to vector<8x64xf32>
    %201 = vector.extract_strided_slice %196 {offsets = [0, 0], sizes = [8, 64], strides = [1, 1]} : vector<8x96xf32> to vector<8x64xf32>
    %202 = arith.addf %200, %201 : vector<8x64xf32>
    %cst_47 = arith.constant 5.000000e-01 : f32
    %203 = vector.broadcast %cst_47 : f32 to vector<8x64xf32>
    %204 = arith.mulf %203, %202 : vector<8x64xf32>
    %205 = math.tanh %204 : vector<8x64xf32>
    %cst_48 = arith.constant 1.000000e+00 : f32
    %206 = vector.broadcast %cst_48 : f32 to vector<8x64xf32>
    %207 = arith.addf %205, %206 : vector<8x64xf32>
    %cst_49 = arith.constant 5.000000e-01 : f32
    %208 = vector.broadcast %cst_49 : f32 to vector<8x64xf32>
    %209 = arith.mulf %208, %207 : vector<8x64xf32>
    %210 = vector.extract_strided_slice %209 {offsets = [0, 0], sizes = [8, 32], strides = [1, 1]} : vector<8x64xf32> to vector<8x32xf32>
    %211 = vector.extract_strided_slice %209 {offsets = [0, 32], sizes = [8, 32], strides = [1, 1]} : vector<8x64xf32> to vector<8x32xf32>
    %212 = vector.extract_strided_slice %199 {offsets = [0, 64], sizes = [8, 32], strides = [1, 1]} : vector<8x96xf32> to vector<8x32xf32>
    %213 = vector.extract_strided_slice %196 {offsets = [0, 64], sizes = [8, 32], strides = [1, 1]} : vector<8x96xf32> to vector<8x32xf32>
    %214 = vector.broadcast %5 : vector<1x32xf32> to vector<8x32xf32>
    %215 = arith.addf %213, %214 : vector<8x32xf32>
    %216 = arith.mulf %210, %215 : vector<8x32xf32>
    %217 = arith.addf %212, %216 : vector<8x32xf32>
    %218 = math.tanh %217 : vector<8x32xf32>
    %219 = arith.subf %194, %218 : vector<8x32xf32>
    %220 = arith.mulf %211, %219 : vector<8x32xf32>
    %221 = arith.addf %218, %220 : vector<8x32xf32>
    %c56 = arith.constant 56 : index
    %c0_50 = arith.constant 0 : index
    %222 = vector.load %arg16[%c56, %c0_50] : memref<128x32xf32, #tpu.memory_space<vmem>>, vector<8x32xf32>
    tpu.vector_store %arg16[%c56, %c0_50], %221 {strides = array<i32>} : memref<128x32xf32, #tpu.memory_space<vmem>>, vector<8x32xf32>,
    %cst_51 = arith.constant dense<0.000000e+00> : vector<8x96xf32>
    %223 = tpu.matmul %221, %3, %cst_51 {dimension_numbers = #tpu.dot_dimension_numbers<[1], [0], [0], [1], [0, 0, 1, 1], [], []>} : vector<8x32xf32>, vector<32x96xf32>, vector<8x96xf32> -> vector<8x96xf32>
    %224 = vector.extract_strided_slice %2 {offsets = [0, 768], sizes = [8, 96], strides = [1, 1]} : vector<8x1536xf32> to vector<8x96xf32>
    %225 = vector.broadcast %4 : vector<1x96xf32> to vector<8x96xf32>
    %226 = arith.addf %224, %225 : vector<8x96xf32>
    %227 = vector.extract_strided_slice %226 {offsets = [0, 0], sizes = [8, 64], strides = [1, 1]} : vector<8x96xf32> to vector<8x64xf32>
    %228 = vector.extract_strided_slice %223 {offsets = [0, 0], sizes = [8, 64], strides = [1, 1]} : vector<8x96xf32> to vector<8x64xf32>
    %229 = arith.addf %227, %228 : vector<8x64xf32>
    %cst_52 = arith.constant 5.000000e-01 : f32
    %230 = vector.broadcast %cst_52 : f32 to vector<8x64xf32>
    %231 = arith.mulf %230, %229 : vector<8x64xf32>
    %232 = math.tanh %231 : vector<8x64xf32>
    %cst_53 = arith.constant 1.000000e+00 : f32
    %233 = vector.broadcast %cst_53 : f32 to vector<8x64xf32>
    %234 = arith.addf %232, %233 : vector<8x64xf32>
    %cst_54 = arith.constant 5.000000e-01 : f32
    %235 = vector.broadcast %cst_54 : f32 to vector<8x64xf32>
    %236 = arith.mulf %235, %234 : vector<8x64xf32>
    %237 = vector.extract_strided_slice %236 {offsets = [0, 0], sizes = [8, 32], strides = [1, 1]} : vector<8x64xf32> to vector<8x32xf32>
    %238 = vector.extract_strided_slice %236 {offsets = [0, 32], sizes = [8, 32], strides = [1, 1]} : vector<8x64xf32> to vector<8x32xf32>
    %239 = vector.extract_strided_slice %226 {offsets = [0, 64], sizes = [8, 32], strides = [1, 1]} : vector<8x96xf32> to vector<8x32xf32>
    %240 = vector.extract_strided_slice %223 {offsets = [0, 64], sizes = [8, 32], strides = [1, 1]} : vector<8x96xf32> to vector<8x32xf32>
    %241 = vector.broadcast %5 : vector<1x32xf32> to vector<8x32xf32>
    %242 = arith.addf %240, %241 : vector<8x32xf32>
    %243 = arith.mulf %237, %242 : vector<8x32xf32>
    %244 = arith.addf %239, %243 : vector<8x32xf32>
    %245 = math.tanh %244 : vector<8x32xf32>
    %246 = arith.subf %221, %245 : vector<8x32xf32>
    %247 = arith.mulf %238, %246 : vector<8x32xf32>
    %248 = arith.addf %245, %247 : vector<8x32xf32>
    %c64 = arith.constant 64 : index
    %c0_55 = arith.constant 0 : index
    %249 = vector.load %arg16[%c64, %c0_55] : memref<128x32xf32, #tpu.memory_space<vmem>>, vector<8x32xf32>
    tpu.vector_store %arg16[%c64, %c0_55], %248 {strides = array<i32>} : memref<128x32xf32, #tpu.memory_space<vmem>>, vector<8x32xf32>,
    %cst_56 = arith.constant dense<0.000000e+00> : vector<8x96xf32>
    %250 = tpu.matmul %248, %3, %cst_56 {dimension_numbers = #tpu.dot_dimension_numbers<[1], [0], [0], [1], [0, 0, 1, 1], [], []>} : vector<8x32xf32>, vector<32x96xf32>, vector<8x96xf32> -> vector<8x96xf32>
    %251 = vector.extract_strided_slice %2 {offsets = [0, 864], sizes = [8, 96], strides = [1, 1]} : vector<8x1536xf32> to vector<8x96xf32>
    %252 = vector.broadcast %4 : vector<1x96xf32> to vector<8x96xf32>
    %253 = arith.addf %251, %252 : vector<8x96xf32>
    %254 = vector.extract_strided_slice %253 {offsets = [0, 0], sizes = [8, 64], strides = [1, 1]} : vector<8x96xf32> to vector<8x64xf32>
    %255 = vector.extract_strided_slice %250 {offsets = [0, 0], sizes = [8, 64], strides = [1, 1]} : vector<8x96xf32> to vector<8x64xf32>
    %256 = arith.addf %254, %255 : vector<8x64xf32>
    %cst_57 = arith.constant 5.000000e-01 : f32
    %257 = vector.broadcast %cst_57 : f32 to vector<8x64xf32>
    %258 = arith.mulf %257, %256 : vector<8x64xf32>
    %259 = math.tanh %258 : vector<8x64xf32>
    %cst_58 = arith.constant 1.000000e+00 : f32
    %260 = vector.broadcast %cst_58 : f32 to vector<8x64xf32>
    %261 = arith.addf %259, %260 : vector<8x64xf32>
    %cst_59 = arith.constant 5.000000e-01 : f32
    %262 = vector.broadcast %cst_59 : f32 to vector<8x64xf32>
    %263 = arith.mulf %262, %261 : vector<8x64xf32>
    %264 = vector.extract_strided_slice %263 {offsets = [0, 0], sizes = [8, 32], strides = [1, 1]} : vector<8x64xf32> to vector<8x32xf32>
    %265 = vector.extract_strided_slice %263 {offsets = [0, 32], sizes = [8, 32], strides = [1, 1]} : vector<8x64xf32> to vector<8x32xf32>
    %266 = vector.extract_strided_slice %253 {offsets = [0, 64], sizes = [8, 32], strides = [1, 1]} : vector<8x96xf32> to vector<8x32xf32>
    %267 = vector.extract_strided_slice %250 {offsets = [0, 64], sizes = [8, 32], strides = [1, 1]} : vector<8x96xf32> to vector<8x32xf32>
    %268 = vector.broadcast %5 : vector<1x32xf32> to vector<8x32xf32>
    %269 = arith.addf %267, %268 : vector<8x32xf32>
    %270 = arith.mulf %264, %269 : vector<8x32xf32>
    %271 = arith.addf %266, %270 : vector<8x32xf32>
    %272 = math.tanh %271 : vector<8x32xf32>
    %273 = arith.subf %248, %272 : vector<8x32xf32>
    %274 = arith.mulf %265, %273 : vector<8x32xf32>
    %275 = arith.addf %272, %274 : vector<8x32xf32>
    %c72 = arith.constant 72 : index
    %c0_60 = arith.constant 0 : index
    %276 = vector.load %arg16[%c72, %c0_60] : memref<128x32xf32, #tpu.memory_space<vmem>>, vector<8x32xf32>
    tpu.vector_store %arg16[%c72, %c0_60], %275 {strides = array<i32>} : memref<128x32xf32, #tpu.memory_space<vmem>>, vector<8x32xf32>,
    %cst_61 = arith.constant dense<0.000000e+00> : vector<8x96xf32>
    %277 = tpu.matmul %275, %3, %cst_61 {dimension_numbers = #tpu.dot_dimension_numbers<[1], [0], [0], [1], [0, 0, 1, 1], [], []>} : vector<8x32xf32>, vector<32x96xf32>, vector<8x96xf32> -> vector<8x96xf32>
    %278 = vector.extract_strided_slice %2 {offsets = [0, 960], sizes = [8, 96], strides = [1, 1]} : vector<8x1536xf32> to vector<8x96xf32>
    %279 = vector.broadcast %4 : vector<1x96xf32> to vector<8x96xf32>
    %280 = arith.addf %278, %279 : vector<8x96xf32>
    %281 = vector.extract_strided_slice %280 {offsets = [0, 0], sizes = [8, 64], strides = [1, 1]} : vector<8x96xf32> to vector<8x64xf32>
    %282 = vector.extract_strided_slice %277 {offsets = [0, 0], sizes = [8, 64], strides = [1, 1]} : vector<8x96xf32> to vector<8x64xf32>
    %283 = arith.addf %281, %282 : vector<8x64xf32>
    %cst_62 = arith.constant 5.000000e-01 : f32
    %284 = vector.broadcast %cst_62 : f32 to vector<8x64xf32>
    %285 = arith.mulf %284, %283 : vector<8x64xf32>
    %286 = math.tanh %285 : vector<8x64xf32>
    %cst_63 = arith.constant 1.000000e+00 : f32
    %287 = vector.broadcast %cst_63 : f32 to vector<8x64xf32>
    %288 = arith.addf %286, %287 : vector<8x64xf32>
    %cst_64 = arith.constant 5.000000e-01 : f32
    %289 = vector.broadcast %cst_64 : f32 to vector<8x64xf32>
    %290 = arith.mulf %289, %288 : vector<8x64xf32>
    %291 = vector.extract_strided_slice %290 {offsets = [0, 0], sizes = [8, 32], strides = [1, 1]} : vector<8x64xf32> to vector<8x32xf32>
    %292 = vector.extract_strided_slice %290 {offsets = [0, 32], sizes = [8, 32], strides = [1, 1]} : vector<8x64xf32> to vector<8x32xf32>
    %293 = vector.extract_strided_slice %280 {offsets = [0, 64], sizes = [8, 32], strides = [1, 1]} : vector<8x96xf32> to vector<8x32xf32>
    %294 = vector.extract_strided_slice %277 {offsets = [0, 64], sizes = [8, 32], strides = [1, 1]} : vector<8x96xf32> to vector<8x32xf32>
    %295 = vector.broadcast %5 : vector<1x32xf32> to vector<8x32xf32>
    %296 = arith.addf %294, %295 : vector<8x32xf32>
    %297 = arith.mulf %291, %296 : vector<8x32xf32>
    %298 = arith.addf %293, %297 : vector<8x32xf32>
    %299 = math.tanh %298 : vector<8x32xf32>
    %300 = arith.subf %275, %299 : vector<8x32xf32>
    %301 = arith.mulf %292, %300 : vector<8x32xf32>
    %302 = arith.addf %299, %301 : vector<8x32xf32>
    %c80 = arith.constant 80 : index
    %c0_65 = arith.constant 0 : index
    %303 = vector.load %arg16[%c80, %c0_65] : memref<128x32xf32, #tpu.memory_space<vmem>>, vector<8x32xf32>
    tpu.vector_store %arg16[%c80, %c0_65], %302 {strides = array<i32>} : memref<128x32xf32, #tpu.memory_space<vmem>>, vector<8x32xf32>,
    %cst_66 = arith.constant dense<0.000000e+00> : vector<8x96xf32>
    %304 = tpu.matmul %302, %3, %cst_66 {dimension_numbers = #tpu.dot_dimension_numbers<[1], [0], [0], [1], [0, 0, 1, 1], [], []>} : vector<8x32xf32>, vector<32x96xf32>, vector<8x96xf32> -> vector<8x96xf32>
    %305 = vector.extract_strided_slice %2 {offsets = [0, 1056], sizes = [8, 96], strides = [1, 1]} : vector<8x1536xf32> to vector<8x96xf32>
    %306 = vector.broadcast %4 : vector<1x96xf32> to vector<8x96xf32>
    %307 = arith.addf %305, %306 : vector<8x96xf32>
    %308 = vector.extract_strided_slice %307 {offsets = [0, 0], sizes = [8, 64], strides = [1, 1]} : vector<8x96xf32> to vector<8x64xf32>
    %309 = vector.extract_strided_slice %304 {offsets = [0, 0], sizes = [8, 64], strides = [1, 1]} : vector<8x96xf32> to vector<8x64xf32>
    %310 = arith.addf %308, %309 : vector<8x64xf32>
    %cst_67 = arith.constant 5.000000e-01 : f32
    %311 = vector.broadcast %cst_67 : f32 to vector<8x64xf32>
    %312 = arith.mulf %311, %310 : vector<8x64xf32>
    %313 = math.tanh %312 : vector<8x64xf32>
    %cst_68 = arith.constant 1.000000e+00 : f32
    %314 = vector.broadcast %cst_68 : f32 to vector<8x64xf32>
    %315 = arith.addf %313, %314 : vector<8x64xf32>
    %cst_69 = arith.constant 5.000000e-01 : f32
    %316 = vector.broadcast %cst_69 : f32 to vector<8x64xf32>
    %317 = arith.mulf %316, %315 : vector<8x64xf32>
    %318 = vector.extract_strided_slice %317 {offsets = [0, 0], sizes = [8, 32], strides = [1, 1]} : vector<8x64xf32> to vector<8x32xf32>
    %319 = vector.extract_strided_slice %317 {offsets = [0, 32], sizes = [8, 32], strides = [1, 1]} : vector<8x64xf32> to vector<8x32xf32>
    %320 = vector.extract_strided_slice %307 {offsets = [0, 64], sizes = [8, 32], strides = [1, 1]} : vector<8x96xf32> to vector<8x32xf32>
    %321 = vector.extract_strided_slice %304 {offsets = [0, 64], sizes = [8, 32], strides = [1, 1]} : vector<8x96xf32> to vector<8x32xf32>
    %322 = vector.broadcast %5 : vector<1x32xf32> to vector<8x32xf32>
    %323 = arith.addf %321, %322 : vector<8x32xf32>
    %324 = arith.mulf %318, %323 : vector<8x32xf32>
    %325 = arith.addf %320, %324 : vector<8x32xf32>
    %326 = math.tanh %325 : vector<8x32xf32>
    %327 = arith.subf %302, %326 : vector<8x32xf32>
    %328 = arith.mulf %319, %327 : vector<8x32xf32>
    %329 = arith.addf %326, %328 : vector<8x32xf32>
    %c88 = arith.constant 88 : index
    %c0_70 = arith.constant 0 : index
    %330 = vector.load %arg16[%c88, %c0_70] : memref<128x32xf32, #tpu.memory_space<vmem>>, vector<8x32xf32>
    tpu.vector_store %arg16[%c88, %c0_70], %329 {strides = array<i32>} : memref<128x32xf32, #tpu.memory_space<vmem>>, vector<8x32xf32>,
    %cst_71 = arith.constant dense<0.000000e+00> : vector<8x96xf32>
    %331 = tpu.matmul %329, %3, %cst_71 {dimension_numbers = #tpu.dot_dimension_numbers<[1], [0], [0], [1], [0, 0, 1, 1], [], []>} : vector<8x32xf32>, vector<32x96xf32>, vector<8x96xf32> -> vector<8x96xf32>
    %332 = vector.extract_strided_slice %2 {offsets = [0, 1152], sizes = [8, 96], strides = [1, 1]} : vector<8x1536xf32> to vector<8x96xf32>
    %333 = vector.broadcast %4 : vector<1x96xf32> to vector<8x96xf32>
    %334 = arith.addf %332, %333 : vector<8x96xf32>
    %335 = vector.extract_strided_slice %334 {offsets = [0, 0], sizes = [8, 64], strides = [1, 1]} : vector<8x96xf32> to vector<8x64xf32>
    %336 = vector.extract_strided_slice %331 {offsets = [0, 0], sizes = [8, 64], strides = [1, 1]} : vector<8x96xf32> to vector<8x64xf32>
    %337 = arith.addf %335, %336 : vector<8x64xf32>
    %cst_72 = arith.constant 5.000000e-01 : f32
    %338 = vector.broadcast %cst_72 : f32 to vector<8x64xf32>
    %339 = arith.mulf %338, %337 : vector<8x64xf32>
    %340 = math.tanh %339 : vector<8x64xf32>
    %cst_73 = arith.constant 1.000000e+00 : f32
    %341 = vector.broadcast %cst_73 : f32 to vector<8x64xf32>
    %342 = arith.addf %340, %341 : vector<8x64xf32>
    %cst_74 = arith.constant 5.000000e-01 : f32
    %343 = vector.broadcast %cst_74 : f32 to vector<8x64xf32>
    %344 = arith.mulf %343, %342 : vector<8x64xf32>
    %345 = vector.extract_strided_slice %344 {offsets = [0, 0], sizes = [8, 32], strides = [1, 1]} : vector<8x64xf32> to vector<8x32xf32>
    %346 = vector.extract_strided_slice %344 {offsets = [0, 32], sizes = [8, 32], strides = [1, 1]} : vector<8x64xf32> to vector<8x32xf32>
    %347 = vector.extract_strided_slice %334 {offsets = [0, 64], sizes = [8, 32], strides = [1, 1]} : vector<8x96xf32> to vector<8x32xf32>
    %348 = vector.extract_strided_slice %331 {offsets = [0, 64], sizes = [8, 32], strides = [1, 1]} : vector<8x96xf32> to vector<8x32xf32>
    %349 = vector.broadcast %5 : vector<1x32xf32> to vector<8x32xf32>
    %350 = arith.addf %348, %349 : vector<8x32xf32>
    %351 = arith.mulf %345, %350 : vector<8x32xf32>
    %352 = arith.addf %347, %351 : vector<8x32xf32>
    %353 = math.tanh %352 : vector<8x32xf32>
    %354 = arith.subf %329, %353 : vector<8x32xf32>
    %355 = arith.mulf %346, %354 : vector<8x32xf32>
    %356 = arith.addf %353, %355 : vector<8x32xf32>
    %c96 = arith.constant 96 : index
    %c0_75 = arith.constant 0 : index
    %357 = vector.load %arg16[%c96, %c0_75] : memref<128x32xf32, #tpu.memory_space<vmem>>, vector<8x32xf32>
    tpu.vector_store %arg16[%c96, %c0_75], %356 {strides = array<i32>} : memref<128x32xf32, #tpu.memory_space<vmem>>, vector<8x32xf32>,
    %cst_76 = arith.constant dense<0.000000e+00> : vector<8x96xf32>
    %358 = tpu.matmul %356, %3, %cst_76 {dimension_numbers = #tpu.dot_dimension_numbers<[1], [0], [0], [1], [0, 0, 1, 1], [], []>} : vector<8x32xf32>, vector<32x96xf32>, vector<8x96xf32> -> vector<8x96xf32>
    %359 = vector.extract_strided_slice %2 {offsets = [0, 1248], sizes = [8, 96], strides = [1, 1]} : vector<8x1536xf32> to vector<8x96xf32>
    %360 = vector.broadcast %4 : vector<1x96xf32> to vector<8x96xf32>
    %361 = arith.addf %359, %360 : vector<8x96xf32>
    %362 = vector.extract_strided_slice %361 {offsets = [0, 0], sizes = [8, 64], strides = [1, 1]} : vector<8x96xf32> to vector<8x64xf32>
    %363 = vector.extract_strided_slice %358 {offsets = [0, 0], sizes = [8, 64], strides = [1, 1]} : vector<8x96xf32> to vector<8x64xf32>
    %364 = arith.addf %362, %363 : vector<8x64xf32>
    %cst_77 = arith.constant 5.000000e-01 : f32
    %365 = vector.broadcast %cst_77 : f32 to vector<8x64xf32>
    %366 = arith.mulf %365, %364 : vector<8x64xf32>
    %367 = math.tanh %366 : vector<8x64xf32>
    %cst_78 = arith.constant 1.000000e+00 : f32
    %368 = vector.broadcast %cst_78 : f32 to vector<8x64xf32>
    %369 = arith.addf %367, %368 : vector<8x64xf32>
    %cst_79 = arith.constant 5.000000e-01 : f32
    %370 = vector.broadcast %cst_79 : f32 to vector<8x64xf32>
    %371 = arith.mulf %370, %369 : vector<8x64xf32>
    %372 = vector.extract_strided_slice %371 {offsets = [0, 0], sizes = [8, 32], strides = [1, 1]} : vector<8x64xf32> to vector<8x32xf32>
    %373 = vector.extract_strided_slice %371 {offsets = [0, 32], sizes = [8, 32], strides = [1, 1]} : vector<8x64xf32> to vector<8x32xf32>
    %374 = vector.extract_strided_slice %361 {offsets = [0, 64], sizes = [8, 32], strides = [1, 1]} : vector<8x96xf32> to vector<8x32xf32>
    %375 = vector.extract_strided_slice %358 {offsets = [0, 64], sizes = [8, 32], strides = [1, 1]} : vector<8x96xf32> to vector<8x32xf32>
    %376 = vector.broadcast %5 : vector<1x32xf32> to vector<8x32xf32>
    %377 = arith.addf %375, %376 : vector<8x32xf32>
    %378 = arith.mulf %372, %377 : vector<8x32xf32>
    %379 = arith.addf %374, %378 : vector<8x32xf32>
    %380 = math.tanh %379 : vector<8x32xf32>
    %381 = arith.subf %356, %380 : vector<8x32xf32>
    %382 = arith.mulf %373, %381 : vector<8x32xf32>
    %383 = arith.addf %380, %382 : vector<8x32xf32>
    %c104 = arith.constant 104 : index
    %c0_80 = arith.constant 0 : index
    %384 = vector.load %arg16[%c104, %c0_80] : memref<128x32xf32, #tpu.memory_space<vmem>>, vector<8x32xf32>
    tpu.vector_store %arg16[%c104, %c0_80], %383 {strides = array<i32>} : memref<128x32xf32, #tpu.memory_space<vmem>>, vector<8x32xf32>,
    %cst_81 = arith.constant dense<0.000000e+00> : vector<8x96xf32>
    %385 = tpu.matmul %383, %3, %cst_81 {dimension_numbers = #tpu.dot_dimension_numbers<[1], [0], [0], [1], [0, 0, 1, 1], [], []>} : vector<8x32xf32>, vector<32x96xf32>, vector<8x96xf32> -> vector<8x96xf32>
    %386 = vector.extract_strided_slice %2 {offsets = [0, 1344], sizes = [8, 96], strides = [1, 1]} : vector<8x1536xf32> to vector<8x96xf32>
    %387 = vector.broadcast %4 : vector<1x96xf32> to vector<8x96xf32>
    %388 = arith.addf %386, %387 : vector<8x96xf32>
    %389 = vector.extract_strided_slice %388 {offsets = [0, 0], sizes = [8, 64], strides = [1, 1]} : vector<8x96xf32> to vector<8x64xf32>
    %390 = vector.extract_strided_slice %385 {offsets = [0, 0], sizes = [8, 64], strides = [1, 1]} : vector<8x96xf32> to vector<8x64xf32>
    %391 = arith.addf %389, %390 : vector<8x64xf32>
    %cst_82 = arith.constant 5.000000e-01 : f32
    %392 = vector.broadcast %cst_82 : f32 to vector<8x64xf32>
    %393 = arith.mulf %392, %391 : vector<8x64xf32>
    %394 = math.tanh %393 : vector<8x64xf32>
    %cst_83 = arith.constant 1.000000e+00 : f32
    %395 = vector.broadcast %cst_83 : f32 to vector<8x64xf32>
    %396 = arith.addf %394, %395 : vector<8x64xf32>
    %cst_84 = arith.constant 5.000000e-01 : f32
    %397 = vector.broadcast %cst_84 : f32 to vector<8x64xf32>
    %398 = arith.mulf %397, %396 : vector<8x64xf32>
    %399 = vector.extract_strided_slice %398 {offsets = [0, 0], sizes = [8, 32], strides = [1, 1]} : vector<8x64xf32> to vector<8x32xf32>
    %400 = vector.extract_strided_slice %398 {offsets = [0, 32], sizes = [8, 32], strides = [1, 1]} : vector<8x64xf32> to vector<8x32xf32>
    %401 = vector.extract_strided_slice %388 {offsets = [0, 64], sizes = [8, 32], strides = [1, 1]} : vector<8x96xf32> to vector<8x32xf32>
    %402 = vector.extract_strided_slice %385 {offsets = [0, 64], sizes = [8, 32], strides = [1, 1]} : vector<8x96xf32> to vector<8x32xf32>
    %403 = vector.broadcast %5 : vector<1x32xf32> to vector<8x32xf32>
    %404 = arith.addf %402, %403 : vector<8x32xf32>
    %405 = arith.mulf %399, %404 : vector<8x32xf32>
    %406 = arith.addf %401, %405 : vector<8x32xf32>
    %407 = math.tanh %406 : vector<8x32xf32>
    %408 = arith.subf %383, %407 : vector<8x32xf32>
    %409 = arith.mulf %400, %408 : vector<8x32xf32>
    %410 = arith.addf %407, %409 : vector<8x32xf32>
    %c112 = arith.constant 112 : index
    %c0_85 = arith.constant 0 : index
    %411 = vector.load %arg16[%c112, %c0_85] : memref<128x32xf32, #tpu.memory_space<vmem>>, vector<8x32xf32>
    tpu.vector_store %arg16[%c112, %c0_85], %410 {strides = array<i32>} : memref<128x32xf32, #tpu.memory_space<vmem>>, vector<8x32xf32>,
    %cst_86 = arith.constant dense<0.000000e+00> : vector<8x96xf32>
    %412 = tpu.matmul %410, %3, %cst_86 {dimension_numbers = #tpu.dot_dimension_numbers<[1], [0], [0], [1], [0, 0, 1, 1], [], []>} : vector<8x32xf32>, vector<32x96xf32>, vector<8x96xf32> -> vector<8x96xf32>
    %413 = vector.extract_strided_slice %2 {offsets = [0, 1440], sizes = [8, 96], strides = [1, 1]} : vector<8x1536xf32> to vector<8x96xf32>
    %414 = vector.broadcast %4 : vector<1x96xf32> to vector<8x96xf32>
    %415 = arith.addf %413, %414 : vector<8x96xf32>
    %416 = vector.extract_strided_slice %415 {offsets = [0, 0], sizes = [8, 64], strides = [1, 1]} : vector<8x96xf32> to vector<8x64xf32>
    %417 = vector.extract_strided_slice %412 {offsets = [0, 0], sizes = [8, 64], strides = [1, 1]} : vector<8x96xf32> to vector<8x64xf32>
    %418 = arith.addf %416, %417 : vector<8x64xf32>
    %cst_87 = arith.constant 5.000000e-01 : f32
    %419 = vector.broadcast %cst_87 : f32 to vector<8x64xf32>
    %420 = arith.mulf %419, %418 : vector<8x64xf32>
    %421 = math.tanh %420 : vector<8x64xf32>
    %cst_88 = arith.constant 1.000000e+00 : f32
    %422 = vector.broadcast %cst_88 : f32 to vector<8x64xf32>
    %423 = arith.addf %421, %422 : vector<8x64xf32>
    %cst_89 = arith.constant 5.000000e-01 : f32
    %424 = vector.broadcast %cst_89 : f32 to vector<8x64xf32>
    %425 = arith.mulf %424, %423 : vector<8x64xf32>
    %426 = vector.extract_strided_slice %425 {offsets = [0, 0], sizes = [8, 32], strides = [1, 1]} : vector<8x64xf32> to vector<8x32xf32>
    %427 = vector.extract_strided_slice %425 {offsets = [0, 32], sizes = [8, 32], strides = [1, 1]} : vector<8x64xf32> to vector<8x32xf32>
    %428 = vector.extract_strided_slice %415 {offsets = [0, 64], sizes = [8, 32], strides = [1, 1]} : vector<8x96xf32> to vector<8x32xf32>
    %429 = vector.extract_strided_slice %412 {offsets = [0, 64], sizes = [8, 32], strides = [1, 1]} : vector<8x96xf32> to vector<8x32xf32>
    %430 = vector.broadcast %5 : vector<1x32xf32> to vector<8x32xf32>
    %431 = arith.addf %429, %430 : vector<8x32xf32>
    %432 = arith.mulf %426, %431 : vector<8x32xf32>
    %433 = arith.addf %428, %432 : vector<8x32xf32>
    %434 = math.tanh %433 : vector<8x32xf32>
    %435 = arith.subf %410, %434 : vector<8x32xf32>
    %436 = arith.mulf %427, %435 : vector<8x32xf32>
    %437 = arith.addf %434, %436 : vector<8x32xf32>
    %c120 = arith.constant 120 : index
    %c0_90 = arith.constant 0 : index
    %438 = vector.load %arg16[%c120, %c0_90] : memref<128x32xf32, #tpu.memory_space<vmem>>, vector<8x32xf32>
    tpu.vector_store %arg16[%c120, %c0_90], %437 {strides = array<i32>} : memref<128x32xf32, #tpu.memory_space<vmem>>, vector<8x32xf32>,
    %c0_91 = arith.constant 0 : index
    %c0_92 = arith.constant 0 : index
    %439 = vector.load %arg16[%c0_91, %c0_92] : memref<128x32xf32, #tpu.memory_space<vmem>>, vector<128x32xf32>
    %c0_93 = arith.constant 0 : index
    %c0_94 = arith.constant 0 : index
    %440 = vector.load %arg11[%c0_93, %c0_94] : memref<32x96xf32, #tpu.memory_space<vmem>>, vector<32x96xf32>
    %cst_95 = arith.constant dense<0.000000e+00> : vector<128x96xf32>
    %441 = tpu.matmul %439, %440, %cst_95 {dimension_numbers = #tpu.dot_dimension_numbers<[1], [0], [0], [1], [0, 0, 1, 1], [], []>} : vector<128x32xf32>, vector<32x96xf32>, vector<128x96xf32> -> vector<128x96xf32>
    %c0_96 = arith.constant 0 : index
    %c0_97 = arith.constant 0 : index
    %442 = vector.load %arg13[%c0_96, %c0_97] : memref<1x96xf32, #tpu.memory_space<vmem>>, vector<1x96xf32>
    %443 = vector.broadcast %442 : vector<1x96xf32> to vector<128x96xf32>
    %444 = arith.addf %441, %443 : vector<128x96xf32>
    %c0_98 = arith.constant 0 : index
    %c0_99 = arith.constant 0 : index
    %445 = vector.load %arg12[%c0_98, %c0_99] : memref<32x96xf32, #tpu.memory_space<vmem>>, vector<32x96xf32>
    %c0_100 = arith.constant 0 : index
    %c0_101 = arith.constant 0 : index
    %446 = vector.load %arg14[%c0_100, %c0_101] : memref<1x32xf32, #tpu.memory_space<vmem>>, vector<1x32xf32>
    %cst_102 = arith.constant 0.000000e+00 : f32
    %447 = vector.broadcast %cst_102 : f32 to vector<8x32xf32>
    %cst_103 = arith.constant dense<0.000000e+00> : vector<8x96xf32>
    %448 = tpu.matmul %447, %445, %cst_103 {dimension_numbers = #tpu.dot_dimension_numbers<[1], [0], [0], [1], [0, 0, 1, 1], [], []>} : vector<8x32xf32>, vector<32x96xf32>, vector<8x96xf32> -> vector<8x96xf32>
    %449 = vector.extract_strided_slice %444 {offsets = [0, 0], sizes = [8, 96], strides = [1, 1]} : vector<128x96xf32> to vector<8x96xf32>
    %450 = vector.extract_strided_slice %449 {offsets = [0, 0], sizes = [8, 64], strides = [1, 1]} : vector<8x96xf32> to vector<8x64xf32>
    %451 = vector.extract_strided_slice %448 {offsets = [0, 0], sizes = [8, 64], strides = [1, 1]} : vector<8x96xf32> to vector<8x64xf32>
    %452 = arith.addf %450, %451 : vector<8x64xf32>
    %cst_104 = arith.constant 5.000000e-01 : f32
    %453 = vector.broadcast %cst_104 : f32 to vector<8x64xf32>
    %454 = arith.mulf %453, %452 : vector<8x64xf32>
    %455 = math.tanh %454 : vector<8x64xf32>
    %cst_105 = arith.constant 1.000000e+00 : f32
    %456 = vector.broadcast %cst_105 : f32 to vector<8x64xf32>
    %457 = arith.addf %455, %456 : vector<8x64xf32>
    %cst_106 = arith.constant 5.000000e-01 : f32
    %458 = vector.broadcast %cst_106 : f32 to vector<8x64xf32>
    %459 = arith.mulf %458, %457 : vector<8x64xf32>
    %460 = vector.extract_strided_slice %459 {offsets = [0, 0], sizes = [8, 32], strides = [1, 1]} : vector<8x64xf32> to vector<8x32xf32>
    %461 = vector.extract_strided_slice %459 {offsets = [0, 32], sizes = [8, 32], strides = [1, 1]} : vector<8x64xf32> to vector<8x32xf32>
    %462 = vector.extract_strided_slice %449 {offsets = [0, 64], sizes = [8, 32], strides = [1, 1]} : vector<8x96xf32> to vector<8x32xf32>
    %463 = vector.extract_strided_slice %448 {offsets = [0, 64], sizes = [8, 32], strides = [1, 1]} : vector<8x96xf32> to vector<8x32xf32>
    %464 = vector.broadcast %446 : vector<1x32xf32> to vector<8x32xf32>
    %465 = arith.addf %463, %464 : vector<8x32xf32>
    %466 = arith.mulf %460, %465 : vector<8x32xf32>
    %467 = arith.addf %462, %466 : vector<8x32xf32>
    %468 = math.tanh %467 : vector<8x32xf32>
    %469 = arith.subf %447, %468 : vector<8x32xf32>
    %470 = arith.mulf %461, %469 : vector<8x32xf32>
    %471 = arith.addf %468, %470 : vector<8x32xf32>
    %cst_107 = arith.constant dense<0.000000e+00> : vector<8x96xf32>
    %472 = tpu.matmul %471, %445, %cst_107 {dimension_numbers = #tpu.dot_dimension_numbers<[1], [0], [0], [1], [0, 0, 1, 1], [], []>} : vector<8x32xf32>, vector<32x96xf32>, vector<8x96xf32> -> vector<8x96xf32>
    %473 = vector.extract_strided_slice %444 {offsets = [8, 0], sizes = [8, 96], strides = [1, 1]} : vector<128x96xf32> to vector<8x96xf32>
    %474 = vector.extract_strided_slice %473 {offsets = [0, 0], sizes = [8, 64], strides = [1, 1]} : vector<8x96xf32> to vector<8x64xf32>
    %475 = vector.extract_strided_slice %472 {offsets = [0, 0], sizes = [8, 64], strides = [1, 1]} : vector<8x96xf32> to vector<8x64xf32>
    %476 = arith.addf %474, %475 : vector<8x64xf32>
    %cst_108 = arith.constant 5.000000e-01 : f32
    %477 = vector.broadcast %cst_108 : f32 to vector<8x64xf32>
    %478 = arith.mulf %477, %476 : vector<8x64xf32>
    %479 = math.tanh %478 : vector<8x64xf32>
    %cst_109 = arith.constant 1.000000e+00 : f32
    %480 = vector.broadcast %cst_109 : f32 to vector<8x64xf32>
    %481 = arith.addf %479, %480 : vector<8x64xf32>
    %cst_110 = arith.constant 5.000000e-01 : f32
    %482 = vector.broadcast %cst_110 : f32 to vector<8x64xf32>
    %483 = arith.mulf %482, %481 : vector<8x64xf32>
    %484 = vector.extract_strided_slice %483 {offsets = [0, 0], sizes = [8, 32], strides = [1, 1]} : vector<8x64xf32> to vector<8x32xf32>
    %485 = vector.extract_strided_slice %483 {offsets = [0, 32], sizes = [8, 32], strides = [1, 1]} : vector<8x64xf32> to vector<8x32xf32>
    %486 = vector.extract_strided_slice %473 {offsets = [0, 64], sizes = [8, 32], strides = [1, 1]} : vector<8x96xf32> to vector<8x32xf32>
    %487 = vector.extract_strided_slice %472 {offsets = [0, 64], sizes = [8, 32], strides = [1, 1]} : vector<8x96xf32> to vector<8x32xf32>
    %488 = vector.broadcast %446 : vector<1x32xf32> to vector<8x32xf32>
    %489 = arith.addf %487, %488 : vector<8x32xf32>
    %490 = arith.mulf %484, %489 : vector<8x32xf32>
    %491 = arith.addf %486, %490 : vector<8x32xf32>
    %492 = math.tanh %491 : vector<8x32xf32>
    %493 = arith.subf %471, %492 : vector<8x32xf32>
    %494 = arith.mulf %485, %493 : vector<8x32xf32>
    %495 = arith.addf %492, %494 : vector<8x32xf32>
    %cst_111 = arith.constant dense<0.000000e+00> : vector<8x96xf32>
    %496 = tpu.matmul %495, %445, %cst_111 {dimension_numbers = #tpu.dot_dimension_numbers<[1], [0], [0], [1], [0, 0, 1, 1], [], []>} : vector<8x32xf32>, vector<32x96xf32>, vector<8x96xf32> -> vector<8x96xf32>
    %497 = vector.extract_strided_slice %444 {offsets = [16, 0], sizes = [8, 96], strides = [1, 1]} : vector<128x96xf32> to vector<8x96xf32>
    %498 = vector.extract_strided_slice %497 {offsets = [0, 0], sizes = [8, 64], strides = [1, 1]} : vector<8x96xf32> to vector<8x64xf32>
    %499 = vector.extract_strided_slice %496 {offsets = [0, 0], sizes = [8, 64], strides = [1, 1]} : vector<8x96xf32> to vector<8x64xf32>
    %500 = arith.addf %498, %499 : vector<8x64xf32>
    %cst_112 = arith.constant 5.000000e-01 : f32
    %501 = vector.broadcast %cst_112 : f32 to vector<8x64xf32>
    %502 = arith.mulf %501, %500 : vector<8x64xf32>
    %503 = math.tanh %502 : vector<8x64xf32>
    %cst_113 = arith.constant 1.000000e+00 : f32
    %504 = vector.broadcast %cst_113 : f32 to vector<8x64xf32>
    %505 = arith.addf %503, %504 : vector<8x64xf32>
    %cst_114 = arith.constant 5.000000e-01 : f32
    %506 = vector.broadcast %cst_114 : f32 to vector<8x64xf32>
    %507 = arith.mulf %506, %505 : vector<8x64xf32>
    %508 = vector.extract_strided_slice %507 {offsets = [0, 0], sizes = [8, 32], strides = [1, 1]} : vector<8x64xf32> to vector<8x32xf32>
    %509 = vector.extract_strided_slice %507 {offsets = [0, 32], sizes = [8, 32], strides = [1, 1]} : vector<8x64xf32> to vector<8x32xf32>
    %510 = vector.extract_strided_slice %497 {offsets = [0, 64], sizes = [8, 32], strides = [1, 1]} : vector<8x96xf32> to vector<8x32xf32>
    %511 = vector.extract_strided_slice %496 {offsets = [0, 64], sizes = [8, 32], strides = [1, 1]} : vector<8x96xf32> to vector<8x32xf32>
    %512 = vector.broadcast %446 : vector<1x32xf32> to vector<8x32xf32>
    %513 = arith.addf %511, %512 : vector<8x32xf32>
    %514 = arith.mulf %508, %513 : vector<8x32xf32>
    %515 = arith.addf %510, %514 : vector<8x32xf32>
    %516 = math.tanh %515 : vector<8x32xf32>
    %517 = arith.subf %495, %516 : vector<8x32xf32>
    %518 = arith.mulf %509, %517 : vector<8x32xf32>
    %519 = arith.addf %516, %518 : vector<8x32xf32>
    %cst_115 = arith.constant dense<0.000000e+00> : vector<8x96xf32>
    %520 = tpu.matmul %519, %445, %cst_115 {dimension_numbers = #tpu.dot_dimension_numbers<[1], [0], [0], [1], [0, 0, 1, 1], [], []>} : vector<8x32xf32>, vector<32x96xf32>, vector<8x96xf32> -> vector<8x96xf32>
    %521 = vector.extract_strided_slice %444 {offsets = [24, 0], sizes = [8, 96], strides = [1, 1]} : vector<128x96xf32> to vector<8x96xf32>
    %522 = vector.extract_strided_slice %521 {offsets = [0, 0], sizes = [8, 64], strides = [1, 1]} : vector<8x96xf32> to vector<8x64xf32>
    %523 = vector.extract_strided_slice %520 {offsets = [0, 0], sizes = [8, 64], strides = [1, 1]} : vector<8x96xf32> to vector<8x64xf32>
    %524 = arith.addf %522, %523 : vector<8x64xf32>
    %cst_116 = arith.constant 5.000000e-01 : f32
    %525 = vector.broadcast %cst_116 : f32 to vector<8x64xf32>
    %526 = arith.mulf %525, %524 : vector<8x64xf32>
    %527 = math.tanh %526 : vector<8x64xf32>
    %cst_117 = arith.constant 1.000000e+00 : f32
    %528 = vector.broadcast %cst_117 : f32 to vector<8x64xf32>
    %529 = arith.addf %527, %528 : vector<8x64xf32>
    %cst_118 = arith.constant 5.000000e-01 : f32
    %530 = vector.broadcast %cst_118 : f32 to vector<8x64xf32>
    %531 = arith.mulf %530, %529 : vector<8x64xf32>
    %532 = vector.extract_strided_slice %531 {offsets = [0, 0], sizes = [8, 32], strides = [1, 1]} : vector<8x64xf32> to vector<8x32xf32>
    %533 = vector.extract_strided_slice %531 {offsets = [0, 32], sizes = [8, 32], strides = [1, 1]} : vector<8x64xf32> to vector<8x32xf32>
    %534 = vector.extract_strided_slice %521 {offsets = [0, 64], sizes = [8, 32], strides = [1, 1]} : vector<8x96xf32> to vector<8x32xf32>
    %535 = vector.extract_strided_slice %520 {offsets = [0, 64], sizes = [8, 32], strides = [1, 1]} : vector<8x96xf32> to vector<8x32xf32>
    %536 = vector.broadcast %446 : vector<1x32xf32> to vector<8x32xf32>
    %537 = arith.addf %535, %536 : vector<8x32xf32>
    %538 = arith.mulf %532, %537 : vector<8x32xf32>
    %539 = arith.addf %534, %538 : vector<8x32xf32>
    %540 = math.tanh %539 : vector<8x32xf32>
    %541 = arith.subf %519, %540 : vector<8x32xf32>
    %542 = arith.mulf %533, %541 : vector<8x32xf32>
    %543 = arith.addf %540, %542 : vector<8x32xf32>
    %cst_119 = arith.constant dense<0.000000e+00> : vector<8x96xf32>
    %544 = tpu.matmul %543, %445, %cst_119 {dimension_numbers = #tpu.dot_dimension_numbers<[1], [0], [0], [1], [0, 0, 1, 1], [], []>} : vector<8x32xf32>, vector<32x96xf32>, vector<8x96xf32> -> vector<8x96xf32>
    %545 = vector.extract_strided_slice %444 {offsets = [32, 0], sizes = [8, 96], strides = [1, 1]} : vector<128x96xf32> to vector<8x96xf32>
    %546 = vector.extract_strided_slice %545 {offsets = [0, 0], sizes = [8, 64], strides = [1, 1]} : vector<8x96xf32> to vector<8x64xf32>
    %547 = vector.extract_strided_slice %544 {offsets = [0, 0], sizes = [8, 64], strides = [1, 1]} : vector<8x96xf32> to vector<8x64xf32>
    %548 = arith.addf %546, %547 : vector<8x64xf32>
    %cst_120 = arith.constant 5.000000e-01 : f32
    %549 = vector.broadcast %cst_120 : f32 to vector<8x64xf32>
    %550 = arith.mulf %549, %548 : vector<8x64xf32>
    %551 = math.tanh %550 : vector<8x64xf32>
    %cst_121 = arith.constant 1.000000e+00 : f32
    %552 = vector.broadcast %cst_121 : f32 to vector<8x64xf32>
    %553 = arith.addf %551, %552 : vector<8x64xf32>
    %cst_122 = arith.constant 5.000000e-01 : f32
    %554 = vector.broadcast %cst_122 : f32 to vector<8x64xf32>
    %555 = arith.mulf %554, %553 : vector<8x64xf32>
    %556 = vector.extract_strided_slice %555 {offsets = [0, 0], sizes = [8, 32], strides = [1, 1]} : vector<8x64xf32> to vector<8x32xf32>
    %557 = vector.extract_strided_slice %555 {offsets = [0, 32], sizes = [8, 32], strides = [1, 1]} : vector<8x64xf32> to vector<8x32xf32>
    %558 = vector.extract_strided_slice %545 {offsets = [0, 64], sizes = [8, 32], strides = [1, 1]} : vector<8x96xf32> to vector<8x32xf32>
    %559 = vector.extract_strided_slice %544 {offsets = [0, 64], sizes = [8, 32], strides = [1, 1]} : vector<8x96xf32> to vector<8x32xf32>
    %560 = vector.broadcast %446 : vector<1x32xf32> to vector<8x32xf32>
    %561 = arith.addf %559, %560 : vector<8x32xf32>
    %562 = arith.mulf %556, %561 : vector<8x32xf32>
    %563 = arith.addf %558, %562 : vector<8x32xf32>
    %564 = math.tanh %563 : vector<8x32xf32>
    %565 = arith.subf %543, %564 : vector<8x32xf32>
    %566 = arith.mulf %557, %565 : vector<8x32xf32>
    %567 = arith.addf %564, %566 : vector<8x32xf32>
    %cst_123 = arith.constant dense<0.000000e+00> : vector<8x96xf32>
    %568 = tpu.matmul %567, %445, %cst_123 {dimension_numbers = #tpu.dot_dimension_numbers<[1], [0], [0], [1], [0, 0, 1, 1], [], []>} : vector<8x32xf32>, vector<32x96xf32>, vector<8x96xf32> -> vector<8x96xf32>
    %569 = vector.extract_strided_slice %444 {offsets = [40, 0], sizes = [8, 96], strides = [1, 1]} : vector<128x96xf32> to vector<8x96xf32>
    %570 = vector.extract_strided_slice %569 {offsets = [0, 0], sizes = [8, 64], strides = [1, 1]} : vector<8x96xf32> to vector<8x64xf32>
    %571 = vector.extract_strided_slice %568 {offsets = [0, 0], sizes = [8, 64], strides = [1, 1]} : vector<8x96xf32> to vector<8x64xf32>
    %572 = arith.addf %570, %571 : vector<8x64xf32>
    %cst_124 = arith.constant 5.000000e-01 : f32
    %573 = vector.broadcast %cst_124 : f32 to vector<8x64xf32>
    %574 = arith.mulf %573, %572 : vector<8x64xf32>
    %575 = math.tanh %574 : vector<8x64xf32>
    %cst_125 = arith.constant 1.000000e+00 : f32
    %576 = vector.broadcast %cst_125 : f32 to vector<8x64xf32>
    %577 = arith.addf %575, %576 : vector<8x64xf32>
    %cst_126 = arith.constant 5.000000e-01 : f32
    %578 = vector.broadcast %cst_126 : f32 to vector<8x64xf32>
    %579 = arith.mulf %578, %577 : vector<8x64xf32>
    %580 = vector.extract_strided_slice %579 {offsets = [0, 0], sizes = [8, 32], strides = [1, 1]} : vector<8x64xf32> to vector<8x32xf32>
    %581 = vector.extract_strided_slice %579 {offsets = [0, 32], sizes = [8, 32], strides = [1, 1]} : vector<8x64xf32> to vector<8x32xf32>
    %582 = vector.extract_strided_slice %569 {offsets = [0, 64], sizes = [8, 32], strides = [1, 1]} : vector<8x96xf32> to vector<8x32xf32>
    %583 = vector.extract_strided_slice %568 {offsets = [0, 64], sizes = [8, 32], strides = [1, 1]} : vector<8x96xf32> to vector<8x32xf32>
    %584 = vector.broadcast %446 : vector<1x32xf32> to vector<8x32xf32>
    %585 = arith.addf %583, %584 : vector<8x32xf32>
    %586 = arith.mulf %580, %585 : vector<8x32xf32>
    %587 = arith.addf %582, %586 : vector<8x32xf32>
    %588 = math.tanh %587 : vector<8x32xf32>
    %589 = arith.subf %567, %588 : vector<8x32xf32>
    %590 = arith.mulf %581, %589 : vector<8x32xf32>
    %591 = arith.addf %588, %590 : vector<8x32xf32>
    %cst_127 = arith.constant dense<0.000000e+00> : vector<8x96xf32>
    %592 = tpu.matmul %591, %445, %cst_127 {dimension_numbers = #tpu.dot_dimension_numbers<[1], [0], [0], [1], [0, 0, 1, 1], [], []>} : vector<8x32xf32>, vector<32x96xf32>, vector<8x96xf32> -> vector<8x96xf32>
    %593 = vector.extract_strided_slice %444 {offsets = [48, 0], sizes = [8, 96], strides = [1, 1]} : vector<128x96xf32> to vector<8x96xf32>
    %594 = vector.extract_strided_slice %593 {offsets = [0, 0], sizes = [8, 64], strides = [1, 1]} : vector<8x96xf32> to vector<8x64xf32>
    %595 = vector.extract_strided_slice %592 {offsets = [0, 0], sizes = [8, 64], strides = [1, 1]} : vector<8x96xf32> to vector<8x64xf32>
    %596 = arith.addf %594, %595 : vector<8x64xf32>
    %cst_128 = arith.constant 5.000000e-01 : f32
    %597 = vector.broadcast %cst_128 : f32 to vector<8x64xf32>
    %598 = arith.mulf %597, %596 : vector<8x64xf32>
    %599 = math.tanh %598 : vector<8x64xf32>
    %cst_129 = arith.constant 1.000000e+00 : f32
    %600 = vector.broadcast %cst_129 : f32 to vector<8x64xf32>
    %601 = arith.addf %599, %600 : vector<8x64xf32>
    %cst_130 = arith.constant 5.000000e-01 : f32
    %602 = vector.broadcast %cst_130 : f32 to vector<8x64xf32>
    %603 = arith.mulf %602, %601 : vector<8x64xf32>
    %604 = vector.extract_strided_slice %603 {offsets = [0, 0], sizes = [8, 32], strides = [1, 1]} : vector<8x64xf32> to vector<8x32xf32>
    %605 = vector.extract_strided_slice %603 {offsets = [0, 32], sizes = [8, 32], strides = [1, 1]} : vector<8x64xf32> to vector<8x32xf32>
    %606 = vector.extract_strided_slice %593 {offsets = [0, 64], sizes = [8, 32], strides = [1, 1]} : vector<8x96xf32> to vector<8x32xf32>
    %607 = vector.extract_strided_slice %592 {offsets = [0, 64], sizes = [8, 32], strides = [1, 1]} : vector<8x96xf32> to vector<8x32xf32>
    %608 = vector.broadcast %446 : vector<1x32xf32> to vector<8x32xf32>
    %609 = arith.addf %607, %608 : vector<8x32xf32>
    %610 = arith.mulf %604, %609 : vector<8x32xf32>
    %611 = arith.addf %606, %610 : vector<8x32xf32>
    %612 = math.tanh %611 : vector<8x32xf32>
    %613 = arith.subf %591, %612 : vector<8x32xf32>
    %614 = arith.mulf %605, %613 : vector<8x32xf32>
    %615 = arith.addf %612, %614 : vector<8x32xf32>
    %cst_131 = arith.constant dense<0.000000e+00> : vector<8x96xf32>
    %616 = tpu.matmul %615, %445, %cst_131 {dimension_numbers = #tpu.dot_dimension_numbers<[1], [0], [0], [1], [0, 0, 1, 1], [], []>} : vector<8x32xf32>, vector<32x96xf32>, vector<8x96xf32> -> vector<8x96xf32>
    %617 = vector.extract_strided_slice %444 {offsets = [56, 0], sizes = [8, 96], strides = [1, 1]} : vector<128x96xf32> to vector<8x96xf32>
    %618 = vector.extract_strided_slice %617 {offsets = [0, 0], sizes = [8, 64], strides = [1, 1]} : vector<8x96xf32> to vector<8x64xf32>
    %619 = vector.extract_strided_slice %616 {offsets = [0, 0], sizes = [8, 64], strides = [1, 1]} : vector<8x96xf32> to vector<8x64xf32>
    %620 = arith.addf %618, %619 : vector<8x64xf32>
    %cst_132 = arith.constant 5.000000e-01 : f32
    %621 = vector.broadcast %cst_132 : f32 to vector<8x64xf32>
    %622 = arith.mulf %621, %620 : vector<8x64xf32>
    %623 = math.tanh %622 : vector<8x64xf32>
    %cst_133 = arith.constant 1.000000e+00 : f32
    %624 = vector.broadcast %cst_133 : f32 to vector<8x64xf32>
    %625 = arith.addf %623, %624 : vector<8x64xf32>
    %cst_134 = arith.constant 5.000000e-01 : f32
    %626 = vector.broadcast %cst_134 : f32 to vector<8x64xf32>
    %627 = arith.mulf %626, %625 : vector<8x64xf32>
    %628 = vector.extract_strided_slice %627 {offsets = [0, 0], sizes = [8, 32], strides = [1, 1]} : vector<8x64xf32> to vector<8x32xf32>
    %629 = vector.extract_strided_slice %627 {offsets = [0, 32], sizes = [8, 32], strides = [1, 1]} : vector<8x64xf32> to vector<8x32xf32>
    %630 = vector.extract_strided_slice %617 {offsets = [0, 64], sizes = [8, 32], strides = [1, 1]} : vector<8x96xf32> to vector<8x32xf32>
    %631 = vector.extract_strided_slice %616 {offsets = [0, 64], sizes = [8, 32], strides = [1, 1]} : vector<8x96xf32> to vector<8x32xf32>
    %632 = vector.broadcast %446 : vector<1x32xf32> to vector<8x32xf32>
    %633 = arith.addf %631, %632 : vector<8x32xf32>
    %634 = arith.mulf %628, %633 : vector<8x32xf32>
    %635 = arith.addf %630, %634 : vector<8x32xf32>
    %636 = math.tanh %635 : vector<8x32xf32>
    %637 = arith.subf %615, %636 : vector<8x32xf32>
    %638 = arith.mulf %629, %637 : vector<8x32xf32>
    %639 = arith.addf %636, %638 : vector<8x32xf32>
    %cst_135 = arith.constant dense<0.000000e+00> : vector<8x96xf32>
    %640 = tpu.matmul %639, %445, %cst_135 {dimension_numbers = #tpu.dot_dimension_numbers<[1], [0], [0], [1], [0, 0, 1, 1], [], []>} : vector<8x32xf32>, vector<32x96xf32>, vector<8x96xf32> -> vector<8x96xf32>
    %641 = vector.extract_strided_slice %444 {offsets = [64, 0], sizes = [8, 96], strides = [1, 1]} : vector<128x96xf32> to vector<8x96xf32>
    %642 = vector.extract_strided_slice %641 {offsets = [0, 0], sizes = [8, 64], strides = [1, 1]} : vector<8x96xf32> to vector<8x64xf32>
    %643 = vector.extract_strided_slice %640 {offsets = [0, 0], sizes = [8, 64], strides = [1, 1]} : vector<8x96xf32> to vector<8x64xf32>
    %644 = arith.addf %642, %643 : vector<8x64xf32>
    %cst_136 = arith.constant 5.000000e-01 : f32
    %645 = vector.broadcast %cst_136 : f32 to vector<8x64xf32>
    %646 = arith.mulf %645, %644 : vector<8x64xf32>
    %647 = math.tanh %646 : vector<8x64xf32>
    %cst_137 = arith.constant 1.000000e+00 : f32
    %648 = vector.broadcast %cst_137 : f32 to vector<8x64xf32>
    %649 = arith.addf %647, %648 : vector<8x64xf32>
    %cst_138 = arith.constant 5.000000e-01 : f32
    %650 = vector.broadcast %cst_138 : f32 to vector<8x64xf32>
    %651 = arith.mulf %650, %649 : vector<8x64xf32>
    %652 = vector.extract_strided_slice %651 {offsets = [0, 0], sizes = [8, 32], strides = [1, 1]} : vector<8x64xf32> to vector<8x32xf32>
    %653 = vector.extract_strided_slice %651 {offsets = [0, 32], sizes = [8, 32], strides = [1, 1]} : vector<8x64xf32> to vector<8x32xf32>
    %654 = vector.extract_strided_slice %641 {offsets = [0, 64], sizes = [8, 32], strides = [1, 1]} : vector<8x96xf32> to vector<8x32xf32>
    %655 = vector.extract_strided_slice %640 {offsets = [0, 64], sizes = [8, 32], strides = [1, 1]} : vector<8x96xf32> to vector<8x32xf32>
    %656 = vector.broadcast %446 : vector<1x32xf32> to vector<8x32xf32>
    %657 = arith.addf %655, %656 : vector<8x32xf32>
    %658 = arith.mulf %652, %657 : vector<8x32xf32>
    %659 = arith.addf %654, %658 : vector<8x32xf32>
    %660 = math.tanh %659 : vector<8x32xf32>
    %661 = arith.subf %639, %660 : vector<8x32xf32>
    %662 = arith.mulf %653, %661 : vector<8x32xf32>
    %663 = arith.addf %660, %662 : vector<8x32xf32>
    %cst_139 = arith.constant dense<0.000000e+00> : vector<8x96xf32>
    %664 = tpu.matmul %663, %445, %cst_139 {dimension_numbers = #tpu.dot_dimension_numbers<[1], [0], [0], [1], [0, 0, 1, 1], [], []>} : vector<8x32xf32>, vector<32x96xf32>, vector<8x96xf32> -> vector<8x96xf32>
    %665 = vector.extract_strided_slice %444 {offsets = [72, 0], sizes = [8, 96], strides = [1, 1]} : vector<128x96xf32> to vector<8x96xf32>
    %666 = vector.extract_strided_slice %665 {offsets = [0, 0], sizes = [8, 64], strides = [1, 1]} : vector<8x96xf32> to vector<8x64xf32>
    %667 = vector.extract_strided_slice %664 {offsets = [0, 0], sizes = [8, 64], strides = [1, 1]} : vector<8x96xf32> to vector<8x64xf32>
    %668 = arith.addf %666, %667 : vector<8x64xf32>
    %cst_140 = arith.constant 5.000000e-01 : f32
    %669 = vector.broadcast %cst_140 : f32 to vector<8x64xf32>
    %670 = arith.mulf %669, %668 : vector<8x64xf32>
    %671 = math.tanh %670 : vector<8x64xf32>
    %cst_141 = arith.constant 1.000000e+00 : f32
    %672 = vector.broadcast %cst_141 : f32 to vector<8x64xf32>
    %673 = arith.addf %671, %672 : vector<8x64xf32>
    %cst_142 = arith.constant 5.000000e-01 : f32
    %674 = vector.broadcast %cst_142 : f32 to vector<8x64xf32>
    %675 = arith.mulf %674, %673 : vector<8x64xf32>
    %676 = vector.extract_strided_slice %675 {offsets = [0, 0], sizes = [8, 32], strides = [1, 1]} : vector<8x64xf32> to vector<8x32xf32>
    %677 = vector.extract_strided_slice %675 {offsets = [0, 32], sizes = [8, 32], strides = [1, 1]} : vector<8x64xf32> to vector<8x32xf32>
    %678 = vector.extract_strided_slice %665 {offsets = [0, 64], sizes = [8, 32], strides = [1, 1]} : vector<8x96xf32> to vector<8x32xf32>
    %679 = vector.extract_strided_slice %664 {offsets = [0, 64], sizes = [8, 32], strides = [1, 1]} : vector<8x96xf32> to vector<8x32xf32>
    %680 = vector.broadcast %446 : vector<1x32xf32> to vector<8x32xf32>
    %681 = arith.addf %679, %680 : vector<8x32xf32>
    %682 = arith.mulf %676, %681 : vector<8x32xf32>
    %683 = arith.addf %678, %682 : vector<8x32xf32>
    %684 = math.tanh %683 : vector<8x32xf32>
    %685 = arith.subf %663, %684 : vector<8x32xf32>
    %686 = arith.mulf %677, %685 : vector<8x32xf32>
    %687 = arith.addf %684, %686 : vector<8x32xf32>
    %cst_143 = arith.constant dense<0.000000e+00> : vector<8x96xf32>
    %688 = tpu.matmul %687, %445, %cst_143 {dimension_numbers = #tpu.dot_dimension_numbers<[1], [0], [0], [1], [0, 0, 1, 1], [], []>} : vector<8x32xf32>, vector<32x96xf32>, vector<8x96xf32> -> vector<8x96xf32>
    %689 = vector.extract_strided_slice %444 {offsets = [80, 0], sizes = [8, 96], strides = [1, 1]} : vector<128x96xf32> to vector<8x96xf32>
    %690 = vector.extract_strided_slice %689 {offsets = [0, 0], sizes = [8, 64], strides = [1, 1]} : vector<8x96xf32> to vector<8x64xf32>
    %691 = vector.extract_strided_slice %688 {offsets = [0, 0], sizes = [8, 64], strides = [1, 1]} : vector<8x96xf32> to vector<8x64xf32>
    %692 = arith.addf %690, %691 : vector<8x64xf32>
    %cst_144 = arith.constant 5.000000e-01 : f32
    %693 = vector.broadcast %cst_144 : f32 to vector<8x64xf32>
    %694 = arith.mulf %693, %692 : vector<8x64xf32>
    %695 = math.tanh %694 : vector<8x64xf32>
    %cst_145 = arith.constant 1.000000e+00 : f32
    %696 = vector.broadcast %cst_145 : f32 to vector<8x64xf32>
    %697 = arith.addf %695, %696 : vector<8x64xf32>
    %cst_146 = arith.constant 5.000000e-01 : f32
    %698 = vector.broadcast %cst_146 : f32 to vector<8x64xf32>
    %699 = arith.mulf %698, %697 : vector<8x64xf32>
    %700 = vector.extract_strided_slice %699 {offsets = [0, 0], sizes = [8, 32], strides = [1, 1]} : vector<8x64xf32> to vector<8x32xf32>
    %701 = vector.extract_strided_slice %699 {offsets = [0, 32], sizes = [8, 32], strides = [1, 1]} : vector<8x64xf32> to vector<8x32xf32>
    %702 = vector.extract_strided_slice %689 {offsets = [0, 64], sizes = [8, 32], strides = [1, 1]} : vector<8x96xf32> to vector<8x32xf32>
    %703 = vector.extract_strided_slice %688 {offsets = [0, 64], sizes = [8, 32], strides = [1, 1]} : vector<8x96xf32> to vector<8x32xf32>
    %704 = vector.broadcast %446 : vector<1x32xf32> to vector<8x32xf32>
    %705 = arith.addf %703, %704 : vector<8x32xf32>
    %706 = arith.mulf %700, %705 : vector<8x32xf32>
    %707 = arith.addf %702, %706 : vector<8x32xf32>
    %708 = math.tanh %707 : vector<8x32xf32>
    %709 = arith.subf %687, %708 : vector<8x32xf32>
    %710 = arith.mulf %701, %709 : vector<8x32xf32>
    %711 = arith.addf %708, %710 : vector<8x32xf32>
    %cst_147 = arith.constant dense<0.000000e+00> : vector<8x96xf32>
    %712 = tpu.matmul %711, %445, %cst_147 {dimension_numbers = #tpu.dot_dimension_numbers<[1], [0], [0], [1], [0, 0, 1, 1], [], []>} : vector<8x32xf32>, vector<32x96xf32>, vector<8x96xf32> -> vector<8x96xf32>
    %713 = vector.extract_strided_slice %444 {offsets = [88, 0], sizes = [8, 96], strides = [1, 1]} : vector<128x96xf32> to vector<8x96xf32>
    %714 = vector.extract_strided_slice %713 {offsets = [0, 0], sizes = [8, 64], strides = [1, 1]} : vector<8x96xf32> to vector<8x64xf32>
    %715 = vector.extract_strided_slice %712 {offsets = [0, 0], sizes = [8, 64], strides = [1, 1]} : vector<8x96xf32> to vector<8x64xf32>
    %716 = arith.addf %714, %715 : vector<8x64xf32>
    %cst_148 = arith.constant 5.000000e-01 : f32
    %717 = vector.broadcast %cst_148 : f32 to vector<8x64xf32>
    %718 = arith.mulf %717, %716 : vector<8x64xf32>
    %719 = math.tanh %718 : vector<8x64xf32>
    %cst_149 = arith.constant 1.000000e+00 : f32
    %720 = vector.broadcast %cst_149 : f32 to vector<8x64xf32>
    %721 = arith.addf %719, %720 : vector<8x64xf32>
    %cst_150 = arith.constant 5.000000e-01 : f32
    %722 = vector.broadcast %cst_150 : f32 to vector<8x64xf32>
    %723 = arith.mulf %722, %721 : vector<8x64xf32>
    %724 = vector.extract_strided_slice %723 {offsets = [0, 0], sizes = [8, 32], strides = [1, 1]} : vector<8x64xf32> to vector<8x32xf32>
    %725 = vector.extract_strided_slice %723 {offsets = [0, 32], sizes = [8, 32], strides = [1, 1]} : vector<8x64xf32> to vector<8x32xf32>
    %726 = vector.extract_strided_slice %713 {offsets = [0, 64], sizes = [8, 32], strides = [1, 1]} : vector<8x96xf32> to vector<8x32xf32>
    %727 = vector.extract_strided_slice %712 {offsets = [0, 64], sizes = [8, 32], strides = [1, 1]} : vector<8x96xf32> to vector<8x32xf32>
    %728 = vector.broadcast %446 : vector<1x32xf32> to vector<8x32xf32>
    %729 = arith.addf %727, %728 : vector<8x32xf32>
    %730 = arith.mulf %724, %729 : vector<8x32xf32>
    %731 = arith.addf %726, %730 : vector<8x32xf32>
    %732 = math.tanh %731 : vector<8x32xf32>
    %733 = arith.subf %711, %732 : vector<8x32xf32>
    %734 = arith.mulf %725, %733 : vector<8x32xf32>
    %735 = arith.addf %732, %734 : vector<8x32xf32>
    %cst_151 = arith.constant dense<0.000000e+00> : vector<8x96xf32>
    %736 = tpu.matmul %735, %445, %cst_151 {dimension_numbers = #tpu.dot_dimension_numbers<[1], [0], [0], [1], [0, 0, 1, 1], [], []>} : vector<8x32xf32>, vector<32x96xf32>, vector<8x96xf32> -> vector<8x96xf32>
    %737 = vector.extract_strided_slice %444 {offsets = [96, 0], sizes = [8, 96], strides = [1, 1]} : vector<128x96xf32> to vector<8x96xf32>
    %738 = vector.extract_strided_slice %737 {offsets = [0, 0], sizes = [8, 64], strides = [1, 1]} : vector<8x96xf32> to vector<8x64xf32>
    %739 = vector.extract_strided_slice %736 {offsets = [0, 0], sizes = [8, 64], strides = [1, 1]} : vector<8x96xf32> to vector<8x64xf32>
    %740 = arith.addf %738, %739 : vector<8x64xf32>
    %cst_152 = arith.constant 5.000000e-01 : f32
    %741 = vector.broadcast %cst_152 : f32 to vector<8x64xf32>
    %742 = arith.mulf %741, %740 : vector<8x64xf32>
    %743 = math.tanh %742 : vector<8x64xf32>
    %cst_153 = arith.constant 1.000000e+00 : f32
    %744 = vector.broadcast %cst_153 : f32 to vector<8x64xf32>
    %745 = arith.addf %743, %744 : vector<8x64xf32>
    %cst_154 = arith.constant 5.000000e-01 : f32
    %746 = vector.broadcast %cst_154 : f32 to vector<8x64xf32>
    %747 = arith.mulf %746, %745 : vector<8x64xf32>
    %748 = vector.extract_strided_slice %747 {offsets = [0, 0], sizes = [8, 32], strides = [1, 1]} : vector<8x64xf32> to vector<8x32xf32>
    %749 = vector.extract_strided_slice %747 {offsets = [0, 32], sizes = [8, 32], strides = [1, 1]} : vector<8x64xf32> to vector<8x32xf32>
    %750 = vector.extract_strided_slice %737 {offsets = [0, 64], sizes = [8, 32], strides = [1, 1]} : vector<8x96xf32> to vector<8x32xf32>
    %751 = vector.extract_strided_slice %736 {offsets = [0, 64], sizes = [8, 32], strides = [1, 1]} : vector<8x96xf32> to vector<8x32xf32>
    %752 = vector.broadcast %446 : vector<1x32xf32> to vector<8x32xf32>
    %753 = arith.addf %751, %752 : vector<8x32xf32>
    %754 = arith.mulf %748, %753 : vector<8x32xf32>
    %755 = arith.addf %750, %754 : vector<8x32xf32>
    %756 = math.tanh %755 : vector<8x32xf32>
    %757 = arith.subf %735, %756 : vector<8x32xf32>
    %758 = arith.mulf %749, %757 : vector<8x32xf32>
    %759 = arith.addf %756, %758 : vector<8x32xf32>
    %cst_155 = arith.constant dense<0.000000e+00> : vector<8x96xf32>
    %760 = tpu.matmul %759, %445, %cst_155 {dimension_numbers = #tpu.dot_dimension_numbers<[1], [0], [0], [1], [0, 0, 1, 1], [], []>} : vector<8x32xf32>, vector<32x96xf32>, vector<8x96xf32> -> vector<8x96xf32>
    %761 = vector.extract_strided_slice %444 {offsets = [104, 0], sizes = [8, 96], strides = [1, 1]} : vector<128x96xf32> to vector<8x96xf32>
    %762 = vector.extract_strided_slice %761 {offsets = [0, 0], sizes = [8, 64], strides = [1, 1]} : vector<8x96xf32> to vector<8x64xf32>
    %763 = vector.extract_strided_slice %760 {offsets = [0, 0], sizes = [8, 64], strides = [1, 1]} : vector<8x96xf32> to vector<8x64xf32>
    %764 = arith.addf %762, %763 : vector<8x64xf32>
    %cst_156 = arith.constant 5.000000e-01 : f32
    %765 = vector.broadcast %cst_156 : f32 to vector<8x64xf32>
    %766 = arith.mulf %765, %764 : vector<8x64xf32>
    %767 = math.tanh %766 : vector<8x64xf32>
    %cst_157 = arith.constant 1.000000e+00 : f32
    %768 = vector.broadcast %cst_157 : f32 to vector<8x64xf32>
    %769 = arith.addf %767, %768 : vector<8x64xf32>
    %cst_158 = arith.constant 5.000000e-01 : f32
    %770 = vector.broadcast %cst_158 : f32 to vector<8x64xf32>
    %771 = arith.mulf %770, %769 : vector<8x64xf32>
    %772 = vector.extract_strided_slice %771 {offsets = [0, 0], sizes = [8, 32], strides = [1, 1]} : vector<8x64xf32> to vector<8x32xf32>
    %773 = vector.extract_strided_slice %771 {offsets = [0, 32], sizes = [8, 32], strides = [1, 1]} : vector<8x64xf32> to vector<8x32xf32>
    %774 = vector.extract_strided_slice %761 {offsets = [0, 64], sizes = [8, 32], strides = [1, 1]} : vector<8x96xf32> to vector<8x32xf32>
    %775 = vector.extract_strided_slice %760 {offsets = [0, 64], sizes = [8, 32], strides = [1, 1]} : vector<8x96xf32> to vector<8x32xf32>
    %776 = vector.broadcast %446 : vector<1x32xf32> to vector<8x32xf32>
    %777 = arith.addf %775, %776 : vector<8x32xf32>
    %778 = arith.mulf %772, %777 : vector<8x32xf32>
    %779 = arith.addf %774, %778 : vector<8x32xf32>
    %780 = math.tanh %779 : vector<8x32xf32>
    %781 = arith.subf %759, %780 : vector<8x32xf32>
    %782 = arith.mulf %773, %781 : vector<8x32xf32>
    %783 = arith.addf %780, %782 : vector<8x32xf32>
    %cst_159 = arith.constant dense<0.000000e+00> : vector<8x96xf32>
    %784 = tpu.matmul %783, %445, %cst_159 {dimension_numbers = #tpu.dot_dimension_numbers<[1], [0], [0], [1], [0, 0, 1, 1], [], []>} : vector<8x32xf32>, vector<32x96xf32>, vector<8x96xf32> -> vector<8x96xf32>
    %785 = vector.extract_strided_slice %444 {offsets = [112, 0], sizes = [8, 96], strides = [1, 1]} : vector<128x96xf32> to vector<8x96xf32>
    %786 = vector.extract_strided_slice %785 {offsets = [0, 0], sizes = [8, 64], strides = [1, 1]} : vector<8x96xf32> to vector<8x64xf32>
    %787 = vector.extract_strided_slice %784 {offsets = [0, 0], sizes = [8, 64], strides = [1, 1]} : vector<8x96xf32> to vector<8x64xf32>
    %788 = arith.addf %786, %787 : vector<8x64xf32>
    %cst_160 = arith.constant 5.000000e-01 : f32
    %789 = vector.broadcast %cst_160 : f32 to vector<8x64xf32>
    %790 = arith.mulf %789, %788 : vector<8x64xf32>
    %791 = math.tanh %790 : vector<8x64xf32>
    %cst_161 = arith.constant 1.000000e+00 : f32
    %792 = vector.broadcast %cst_161 : f32 to vector<8x64xf32>
    %793 = arith.addf %791, %792 : vector<8x64xf32>
    %cst_162 = arith.constant 5.000000e-01 : f32
    %794 = vector.broadcast %cst_162 : f32 to vector<8x64xf32>
    %795 = arith.mulf %794, %793 : vector<8x64xf32>
    %796 = vector.extract_strided_slice %795 {offsets = [0, 0], sizes = [8, 32], strides = [1, 1]} : vector<8x64xf32> to vector<8x32xf32>
    %797 = vector.extract_strided_slice %795 {offsets = [0, 32], sizes = [8, 32], strides = [1, 1]} : vector<8x64xf32> to vector<8x32xf32>
    %798 = vector.extract_strided_slice %785 {offsets = [0, 64], sizes = [8, 32], strides = [1, 1]} : vector<8x96xf32> to vector<8x32xf32>
    %799 = vector.extract_strided_slice %784 {offsets = [0, 64], sizes = [8, 32], strides = [1, 1]} : vector<8x96xf32> to vector<8x32xf32>
    %800 = vector.broadcast %446 : vector<1x32xf32> to vector<8x32xf32>
    %801 = arith.addf %799, %800 : vector<8x32xf32>
    %802 = arith.mulf %796, %801 : vector<8x32xf32>
    %803 = arith.addf %798, %802 : vector<8x32xf32>
    %804 = math.tanh %803 : vector<8x32xf32>
    %805 = arith.subf %783, %804 : vector<8x32xf32>
    %806 = arith.mulf %797, %805 : vector<8x32xf32>
    %807 = arith.addf %804, %806 : vector<8x32xf32>
    %cst_163 = arith.constant dense<0.000000e+00> : vector<8x96xf32>
    %808 = tpu.matmul %807, %445, %cst_163 {dimension_numbers = #tpu.dot_dimension_numbers<[1], [0], [0], [1], [0, 0, 1, 1], [], []>} : vector<8x32xf32>, vector<32x96xf32>, vector<8x96xf32> -> vector<8x96xf32>
    %809 = vector.extract_strided_slice %444 {offsets = [120, 0], sizes = [8, 96], strides = [1, 1]} : vector<128x96xf32> to vector<8x96xf32>
    %810 = vector.extract_strided_slice %809 {offsets = [0, 0], sizes = [8, 64], strides = [1, 1]} : vector<8x96xf32> to vector<8x64xf32>
    %811 = vector.extract_strided_slice %808 {offsets = [0, 0], sizes = [8, 64], strides = [1, 1]} : vector<8x96xf32> to vector<8x64xf32>
    %812 = arith.addf %810, %811 : vector<8x64xf32>
    %cst_164 = arith.constant 5.000000e-01 : f32
    %813 = vector.broadcast %cst_164 : f32 to vector<8x64xf32>
    %814 = arith.mulf %813, %812 : vector<8x64xf32>
    %815 = math.tanh %814 : vector<8x64xf32>
    %cst_165 = arith.constant 1.000000e+00 : f32
    %816 = vector.broadcast %cst_165 : f32 to vector<8x64xf32>
    %817 = arith.addf %815, %816 : vector<8x64xf32>
    %cst_166 = arith.constant 5.000000e-01 : f32
    %818 = vector.broadcast %cst_166 : f32 to vector<8x64xf32>
    %819 = arith.mulf %818, %817 : vector<8x64xf32>
    %820 = vector.extract_strided_slice %819 {offsets = [0, 0], sizes = [8, 32], strides = [1, 1]} : vector<8x64xf32> to vector<8x32xf32>
    %821 = vector.extract_strided_slice %819 {offsets = [0, 32], sizes = [8, 32], strides = [1, 1]} : vector<8x64xf32> to vector<8x32xf32>
    %822 = vector.extract_strided_slice %809 {offsets = [0, 64], sizes = [8, 32], strides = [1, 1]} : vector<8x96xf32> to vector<8x32xf32>
    %823 = vector.extract_strided_slice %808 {offsets = [0, 64], sizes = [8, 32], strides = [1, 1]} : vector<8x96xf32> to vector<8x32xf32>
    %824 = vector.broadcast %446 : vector<1x32xf32> to vector<8x32xf32>
    %825 = arith.addf %823, %824 : vector<8x32xf32>
    %826 = arith.mulf %820, %825 : vector<8x32xf32>
    %827 = arith.addf %822, %826 : vector<8x32xf32>
    %828 = math.tanh %827 : vector<8x32xf32>
    %829 = arith.subf %807, %828 : vector<8x32xf32>
    %830 = arith.mulf %821, %829 : vector<8x32xf32>
    %831 = arith.addf %828, %830 : vector<8x32xf32>
    %c0_167 = arith.constant 0 : index
    %c0_168 = arith.constant 0 : index
    %832 = vector.load %arg2[%c0_167, %c0_168] : memref<8x5xf32, #tpu.memory_space<vmem>>, vector<8x5xf32>
    %c0_169 = arith.constant 0 : index
    %c0_170 = arith.constant 0 : index
    %833 = vector.load %arg3[%c0_169, %c0_170] : memref<5x32xf32, #tpu.memory_space<vmem>>, vector<5x32xf32>
    %cst_171 = arith.constant dense<0.000000e+00> : vector<8x32xf32>
    %834 = tpu.matmul %832, %833, %cst_171 {dimension_numbers = #tpu.dot_dimension_numbers<[1], [0], [0], [1], [0, 0, 1, 1], [], []>} : vector<8x5xf32>, vector<5x32xf32>, vector<8x32xf32> -> vector<8x32xf32>
    %c0_172 = arith.constant 0 : index
    %c0_173 = arith.constant 0 : index
    %835 = vector.load %arg4[%c0_172, %c0_173] : memref<1x32xf32, #tpu.memory_space<vmem>>, vector<1x32xf32>
    %836 = vector.broadcast %835 : vector<1x32xf32> to vector<8x32xf32>
    %837 = arith.addf %834, %836 : vector<8x32xf32>
    %c0_174 = arith.constant 0 : index
    %c0_175 = arith.constant 0 : index
    %838 = vector.load %arg5[%c0_174, %c0_175] : memref<32x128xf32, #tpu.memory_space<vmem>>, vector<32x128xf32>
    %cst_176 = arith.constant dense<0.000000e+00> : vector<8x128xf32>
    %839 = tpu.matmul %837, %838, %cst_176 {dimension_numbers = #tpu.dot_dimension_numbers<[1], [0], [0], [1], [0, 0, 1, 1], [], []>} : vector<8x32xf32>, vector<32x128xf32>, vector<8x128xf32> -> vector<8x128xf32>
    %c0_177 = arith.constant 0 : index
    %c0_178 = arith.constant 0 : index
    %840 = vector.load %arg6[%c0_177, %c0_178] : memref<32x128xf32, #tpu.memory_space<vmem>>, vector<32x128xf32>
    %cst_179 = arith.constant dense<0.000000e+00> : vector<8x128xf32>
    %841 = tpu.matmul %831, %840, %cst_179 {dimension_numbers = #tpu.dot_dimension_numbers<[1], [0], [0], [1], [0, 0, 1, 1], [], []>} : vector<8x32xf32>, vector<32x128xf32>, vector<8x128xf32> -> vector<8x128xf32>
    %842 = arith.addf %839, %841 : vector<8x128xf32>
    %c0_180 = arith.constant 0 : index
    %c0_181 = arith.constant 0 : index
    %843 = vector.load %arg7[%c0_180, %c0_181] : memref<1x128xf32, #tpu.memory_space<vmem>>, vector<1x128xf32>
    %844 = vector.broadcast %843 : vector<1x128xf32> to vector<8x128xf32>
    %845 = arith.addf %842, %844 : vector<8x128xf32>
    %c0_182 = arith.constant 0 : index
    %c0_183 = arith.constant 0 : index
    %846 = vector.load %arg15[%c0_182, %c0_183] : memref<8x128xf32, #tpu.memory_space<vmem>>, vector<8x128xf32>
    tpu.vector_store %arg15[%c0_182, %c0_183], %845 {strides = array<i32>} : memref<8x128xf32, #tpu.memory_space<vmem>>, vector<8x128xf32>,
    return
  }
}

</mosaic_0001>

<llo_original>
// kernel: custom-call
$region0: #{custom-call}
  %s0 = inlined_call_operand.hbm [shape: c64[2,4,16], index: 0, kind: input, shape index: {}]
  %s1 = inlined_call_operand.vmem [shape: f32[2,4,16], index: 1, kind: output, shape index: {}]
  $region1: #{custom-call} parent=0
    #allocation0 [shape = 's32[1]{0}', space=sflag, size = 0x4, scoped, tag = 'scoped memory for custom-call']
    %2 = vsyncpa [#allocation0], 0
    %s3 = sshll.u32 %s1, 4
    %s4 = int_to_ptr.vmem [resolvable:$true] %s3
    %6 = dma.hbm_to_vmem [thread:$0]  %s0, 128, %s4, [#allocation0]
    %7 = dma.done [#allocation0], 128
    %8 = vsyncpa [#allocation0], 1

// kernel: custom-call.1
$region0: #{custom-call.1}
  %s0 = inlined_call_operand.hbm [shape: c64[2,4,16], index: 0, kind: input, shape index: {}]
  %s1 = inlined_call_operand.vmem [shape: f32[2,4,16], index: 1, kind: output, shape index: {}]
  %s2 = scalar_lea.hbm %s0, 128
  $region1: #{custom-call.1} parent=0
    #allocation0 [shape = 's32[1]{0}', space=sflag, size = 0x4, scoped, tag = 'scoped memory for custom-call.1']
    %3 = vsyncpa [#allocation0], 0
    %s4 = sshll.u32 %s1, 4
    %s5 = int_to_ptr.vmem [resolvable:$true] %s4
    %7 = dma.hbm_to_vmem [thread:$0]  %s2, 128, %s5, [#allocation0]
    %8 = dma.done [#allocation0], 128
    %9 = vsyncpa [#allocation0], 1

// kernel: _lambda_.1
$region0: #{_lambda_.1}
  #allocation0 [shape = 'u32[]', space=smem, size = 0x4, offset = 0x4, fixed_abs, tag = 'smem constant byte address 0x4 - core index']
  #allocation1 [shape = 'u32[144,128]{1,0:T(1,128)}', space=vmem, size = 0x12000, scoped, tag = 'internal scratch']
  #allocation2 [shape = 'f32[128,32]{1,0:T(8,128)}', space=vmem, size = 0x10000, scoped, tag = 'scratch operand']
  %s0 = inlined_call_operand.vmem [shape: f32[8,176], index: 0, kind: input, shape index: {}]
  %s1 = inlined_call_operand.vmem [shape: f32[176,1536], index: 1, kind: input, shape index: {}]
  %s2 = inlined_call_operand.vmem [shape: f32[8,5], index: 2, kind: input, shape index: {}]
  %s3 = inlined_call_operand.vmem [shape: f32[5,32], index: 3, kind: input, shape index: {}]
  %s4 = inlined_call_operand.vmem [shape: f32[1,32], index: 4, kind: input, shape index: {}]
  %s5 = inlined_call_operand.vmem [shape: f32[32,128], index: 5, kind: input, shape index: {}]
  %s6 = inlined_call_operand.vmem [shape: f32[32,128], index: 6, kind: input, shape index: {}]
  %s7 = inlined_call_operand.vmem [shape: f32[1,128], index: 7, kind: input, shape index: {}]
  %s8 = inlined_call_operand.vmem [shape: f32[32,96], index: 8, kind: input, shape index: {}]
  %s9 = inlined_call_operand.vmem [shape: f32[1,96], index: 9, kind: input, shape index: {}]
  %s10 = inlined_call_operand.vmem [shape: f32[1,32], index: 10, kind: input, shape index: {}]
  %s11 = inlined_call_operand.vmem [shape: f32[32,96], index: 11, kind: input, shape index: {}]
  %s12 = inlined_call_operand.vmem [shape: f32[32,96], index: 12, kind: input, shape index: {}]
  %s13 = inlined_call_operand.vmem [shape: f32[1,96], index: 13, kind: input, shape index: {}]
  %s14 = inlined_call_operand.vmem [shape: f32[1,32], index: 14, kind: input, shape index: {}]
  %s15 = inlined_call_operand.vmem [shape: f32[8,128], index: 15, kind: output, shape index: {}]
  %s16 = sld [smem:[#allocation0]]
  $region70: #{_lambda_.1} parent=0
    _
  %s18 = ssub.s32 1, %s16
  %s19 = scalar_select 0, %s18, %s16
  // Predicated region
  $region2: #{_lambda_.1} parent=0 // pred_check
    _
  $region3: #{_lambda_.1} parent=0 // pred_check_branch
    %21 = sbr.rel (0) target = $region5
  $region4: #{_lambda_.1} parent=0 // pred_region
    _
  $region5: #{_lambda_.1} parent=0 // pred_fallthru
    _
  // Predicated region
  $region6: #{_lambda_.1} parent=0 // pred_check
    _
  $region7: #{_lambda_.1} parent=0 // pred_check_branch
    %23 = sbr.rel (0) target = $region9
  $region8: #{_lambda_.1} parent=0 // pred_region
    _
  $region9: #{_lambda_.1} parent=0 // pred_fallthru
    _
  // Predicated region
  $region10: #{_lambda_.1} parent=0 // pred_check
    _
  $region11: #{_lambda_.1} parent=0 // pred_check_branch
    %25 = sbr.rel (0) target = $region13
  $region12: #{_lambda_.1} parent=0 // pred_region
    _
  $region13: #{_lambda_.1} parent=0 // pred_fallthru
    _
  // Predicated region
  $region14: #{_lambda_.1} parent=0 // pred_check
    _
  $region15: #{_lambda_.1} parent=0 // pred_check_branch
    %27 = sbr.rel (0) target = $region17
  $region16: #{_lambda_.1} parent=0 // pred_region
    _
  $region17: #{_lambda_.1} parent=0 // pred_fallthru
    _
  // Predicated region
  $region18: #{_lambda_.1} parent=0 // pred_check
    _
  $region19: #{_lambda_.1} parent=0 // pred_check_branch
    %29 = sbr.rel (0) target = $region21
  $region20: #{_lambda_.1} parent=0 // pred_region
    _
  $region21: #{_lambda_.1} parent=0 // pred_fallthru
    _
  // Predicated region
  $region22: #{_lambda_.1} parent=0 // pred_check
    _
  $region23: #{_lambda_.1} parent=0 // pred_check_branch
    %31 = sbr.rel (0) target = $region25
  $region24: #{_lambda_.1} parent=0 // pred_region
    _
  $region25: #{_lambda_.1} parent=0 // pred_fallthru
    _
  // Predicated region
  $region26: #{_lambda_.1} parent=0 // pred_check
    _
  $region27: #{_lambda_.1} parent=0 // pred_check_branch
    %33 = sbr.rel (0) target = $region29
  $region28: #{_lambda_.1} parent=0 // pred_region
    _
  $region29: #{_lambda_.1} parent=0 // pred_fallthru
    _
  // Predicated region
  $region30: #{_lambda_.1} parent=0 // pred_check
    _
  $region31: #{_lambda_.1} parent=0 // pred_check_branch
    %35 = sbr.rel (0) target = $region33
  $region32: #{_lambda_.1} parent=0 // pred_region
    _
  $region33: #{_lambda_.1} parent=0 // pred_fallthru
    _
  // Predicated region
  $region34: #{_lambda_.1} parent=0 // pred_check
    _
  $region35: #{_lambda_.1} parent=0 // pred_check_branch
    %37 = sbr.rel (0) target = $region37
  $region36: #{_lambda_.1} parent=0 // pred_region
    _
  $region37: #{_lambda_.1} parent=0 // pred_fallthru
    _
  // Predicated region
  $region38: #{_lambda_.1} parent=0 // pred_check
    _
  $region39: #{_lambda_.1} parent=0 // pred_check_branch
    %39 = sbr.rel (0) target = $region41
  $region40: #{_lambda_.1} parent=0 // pred_region
    _
  $region41: #{_lambda_.1} parent=0 // pred_fallthru
    _
  // Predicated region
  $region42: #{_lambda_.1} parent=0 // pred_check
    _
  $region43: #{_lambda_.1} parent=0 // pred_check_branch
    %41 = sbr.rel (0) target = $region45
  $region44: #{_lambda_.1} parent=0 // pred_region
    _
  $region45: #{_lambda_.1} parent=0 // pred_fallthru
    _
  // Predicated region
  $region46: #{_lambda_.1} parent=0 // pred_check
    _
  $region47: #{_lambda_.1} parent=0 // pred_check_branch
    %43 = sbr.rel (0) target = $region49
  $region48: #{_lambda_.1} parent=0 // pred_region
    _
  $region49: #{_lambda_.1} parent=0 // pred_fallthru
    _
  // Predicated region
  $region50: #{_lambda_.1} parent=0 // pred_check
    _
  $region51: #{_lambda_.1} parent=0 // pred_check_branch
    %45 = sbr.rel (0) target = $region53
  $region52: #{_lambda_.1} parent=0 // pred_region
    _
  $region53: #{_lambda_.1} parent=0 // pred_fallthru
    _
  // Predicated region
  $region54: #{_lambda_.1} parent=0 // pred_check
    _
  $region55: #{_lambda_.1} parent=0 // pred_check_branch
    %47 = sbr.rel (0) target = $region57
  $region56: #{_lambda_.1} parent=0 // pred_region
    _
  $region57: #{_lambda_.1} parent=0 // pred_fallthru
    _
  // Predicated region
  $region58: #{_lambda_.1} parent=0 // pred_check
    _
  $region59: #{_lambda_.1} parent=0 // pred_check_branch
    %49 = sbr.rel (0) target = $region61
  $region60: #{_lambda_.1} parent=0 // pred_region
    _
  $region61: #{_lambda_.1} parent=0 // pred_fallthru
    _
  %v50 = vld [vmem:[%s0] sm:$0xff]
  %v51 = vld [vmem:[%s0 + $0x8] sm:$0xff]
  %v52 = vld [vmem:[%s1] sm:$0xff]
  %v53 = vld [vmem:[%s1 + $0x8] sm:$0xff]
  %v54 = vld [vmem:[%s1 + $0x10] sm:$0xff]
  %v55 = vld [vmem:[%s1 + $0x18] sm:$0xff]
  %v56 = vld [vmem:[%s1 + $0x20] sm:$0xff]
  %v57 = vld [vmem:[%s1 + $0x28] sm:$0xff]
  %v58 = vld [vmem:[%s1 + $0x30] sm:$0xff]
  %v59 = vld [vmem:[%s1 + $0x38] sm:$0xff]
  %v60 = vld [vmem:[%s1 + $0x40] sm:$0xff]
  %v61 = vld [vmem:[%s1 + $0x48] sm:$0xff]
  %v62 = vld [vmem:[%s1 + $0x50] sm:$0xff]
  %v63 = vld [vmem:[%s1 + $0x58] sm:$0xff]
  %v64 = vld [vmem:[%s1 + $0x60] sm:$0xff]
  %v65 = vld [vmem:[%s1 + $0x68] sm:$0xff]
  %v66 = vld [vmem:[%s1 + $0x70] sm:$0xff]
  %v67 = vld [vmem:[%s1 + $0x78] sm:$0xff]
  %v68 = vld [vmem:[%s1 + $0x80] sm:$0xff]
  %v69 = vld [vmem:[%s1 + $0x88] sm:$0xff]
  %v70 = vld [vmem:[%s1 + $0x90] sm:$0xff]
  %v71 = vld [vmem:[%s1 + $0x98] sm:$0xff]
  %v72 = vld [vmem:[%s1 + $0xa0] sm:$0xff]
  %v73 = vld [vmem:[%s1 + $0xa8] sm:$0xff]
  %v74 = vld [vmem:[%s1 + $0xb0] sm:$0xff]
  %v75 = vld [vmem:[%s1 + $0xb8] sm:$0xff]
  %v76 = vld [vmem:[%s1 + $0xc0] sm:$0xff]
  %v77 = vld [vmem:[%s1 + $0xc8] sm:$0xff]
  %v78 = vld [vmem:[%s1 + $0xd0] sm:$0xff]
  %v79 = vld [vmem:[%s1 + $0xd8] sm:$0xff]
  %v80 = vld [vmem:[%s1 + $0xe0] sm:$0xff]
  %v81 = vld [vmem:[%s1 + $0xe8] sm:$0xff]
  %v82 = vld [vmem:[%s1 + $0xf0] sm:$0xff]
  %v83 = vld [vmem:[%s1 + $0xf8] sm:$0xff]
  %v84 = vld [vmem:[%s1 + $0x100] sm:$0xff]
  %v85 = vld [vmem:[%s1 + $0x108] sm:$0xff]
  %v86 = vld [vmem:[%s1 + $0x110] sm:$0xff]
  %v87 = vld [vmem:[%s1 + $0x118] sm:$0xff]
  %v88 = vld [vmem:[%s1 + $0x120] sm:$0xff]
  %v89 = vld [vmem:[%s1 + $0x128] sm:$0xff]
  %v90 = vld [vmem:[%s1 + $0x130] sm:$0xff]
  %v91 = vld [vmem:[%s1 + $0x138] sm:$0xff]
  %v92 = vld [vmem:[%s1 + $0x140] sm:$0xff]
  %v93 = vld [vmem:[%s1 + $0x148] sm:$0xff]
  %v94 = vld [vmem:[%s1 + $0x150] sm:$0xff]
  %v95 = vld [vmem:[%s1 + $0x158] sm:$0xff]
  %v96 = vld [vmem:[%s1 + $0x160] sm:$0xff]
  %v97 = vld [vmem:[%s1 + $0x168] sm:$0xff]
  %v98 = vld [vmem:[%s1 + $0x170] sm:$0xff]
  %v99 = vld [vmem:[%s1 + $0x178] sm:$0xff]
  %v100 = vld [vmem:[%s1 + $0x180] sm:$0xff]
  %v101 = vld [vmem:[%s1 + $0x188] sm:$0xff]
  %v102 = vld [vmem:[%s1 + $0x190] sm:$0xff]
  %v103 = vld [vmem:[%s1 + $0x198] sm:$0xff]
  %v104 = vld [vmem:[%s1 + $0x1a0] sm:$0xff]
  %v105 = vld [vmem:[%s1 + $0x1a8] sm:$0xff]
  %v106 = vld [vmem:[%s1 + $0x1b0] sm:$0xff]
  %v107 = vld [vmem:[%s1 + $0x1b8] sm:$0xff]
  %v108 = vld [vmem:[%s1 + $0x1c0] sm:$0xff]
  %v109 = vld [vmem:[%s1 + $0x1c8] sm:$0xff]
  %v110 = vld [vmem:[%s1 + $0x1d0] sm:$0xff]
  %v111 = vld [vmem:[%s1 + $0x1d8] sm:$0xff]
  %v112 = vld [vmem:[%s1 + $0x1e0] sm:$0xff]
  %v113 = vld [vmem:[%s1 + $0x1e8] sm:$0xff]
  %v114 = vld [vmem:[%s1 + $0x1f0] sm:$0xff]
  %v115 = vld [vmem:[%s1 + $0x1f8] sm:$0xff]
  %v116 = vld [vmem:[%s1 + $0x200] sm:$0xff]
  %v117 = vld [vmem:[%s1 + $0x208] sm:$0xff]
  %v118 = vld [vmem:[%s1 + $0x210] sm:$0xff]
  %v119 = vld [vmem:[%s1 + $0x218] sm:$0xff]
  %v120 = vld [vmem:[%s1 + $0x220] sm:$0xff]
  %v121 = vld [vmem:[%s1 + $0x228] sm:$0xff]
  %v122 = vld [vmem:[%s1 + $0x230] sm:$0xff]
  %v123 = vld [vmem:[%s1 + $0x238] sm:$0xff]
  %v124 = vld [vmem:[%s1 + $0x240] sm:$0xff]
  %v125 = vld [vmem:[%s1 + $0x248] sm:$0xff]
  %v126 = vld [vmem:[%s1 + $0x250] sm:$0xff]
  %v127 = vld [vmem:[%s1 + $0x258] sm:$0xff]
  %v128 = vld [vmem:[%s1 + $0x260] sm:$0xff]
  %v129 = vld [vmem:[%s1 + $0x268] sm:$0xff]
  %v130 = vld [vmem:[%s1 + $0x270] sm:$0xff]
  %v131 = vld [vmem:[%s1 + $0x278] sm:$0xff]
  %v132 = vld [vmem:[%s1 + $0x280] sm:$0xff]
  %v133 = vld [vmem:[%s1 + $0x288] sm:$0xff]
  %v134 = vld [vmem:[%s1 + $0x290] sm:$0xff]
  %v135 = vld [vmem:[%s1 + $0x298] sm:$0xff]
  %v136 = vld [vmem:[%s1 + $0x2a0] sm:$0xff]
  %v137 = vld [vmem:[%s1 + $0x2a8] sm:$0xff]
  %v138 = vld [vmem:[%s1 + $0x2b0] sm:$0xff]
  %v139 = vld [vmem:[%s1 + $0x2b8] sm:$0xff]
  %v140 = vld [vmem:[%s1 + $0x2c0] sm:$0xff]
  %v141 = vld [vmem:[%s1 + $0x2c8] sm:$0xff]
  %v142 = vld [vmem:[%s1 + $0x2d0] sm:$0xff]
  %v143 = vld [vmem:[%s1 + $0x2d8] sm:$0xff]
  %v144 = vld [vmem:[%s1 + $0x2e0] sm:$0xff]
  %v145 = vld [vmem:[%s1 + $0x2e8] sm:$0xff]
  %v146 = vld [vmem:[%s1 + $0x2f0] sm:$0xff]
  %v147 = vld [vmem:[%s1 + $0x2f8] sm:$0xff]
  %v148 = vld [vmem:[%s1 + $0x300] sm:$0xff]
  %v149 = vld [vmem:[%s1 + $0x308] sm:$0xff]
  %v150 = vld [vmem:[%s1 + $0x310] sm:$0xff]
  %v151 = vld [vmem:[%s1 + $0x318] sm:$0xff]
  %v152 = vld [vmem:[%s1 + $0x320] sm:$0xff]
  %v153 = vld [vmem:[%s1 + $0x328] sm:$0xff]
  %v154 = vld [vmem:[%s1 + $0x330] sm:$0xff]
  %v155 = vld [vmem:[%s1 + $0x338] sm:$0xff]
  %v156 = vld [vmem:[%s1 + $0x340] sm:$0xff]
  %v157 = vld [vmem:[%s1 + $0x348] sm:$0xff]
  %v158 = vld [vmem:[%s1 + $0x350] sm:$0xff]
  %v159 = vld [vmem:[%s1 + $0x358] sm:$0xff]
  %v160 = vld [vmem:[%s1 + $0x360] sm:$0xff]
  %v161 = vld [vmem:[%s1 + $0x368] sm:$0xff]
  %v162 = vld [vmem:[%s1 + $0x370] sm:$0xff]
  %v163 = vld [vmem:[%s1 + $0x378] sm:$0xff]
  %v164 = vld [vmem:[%s1 + $0x380] sm:$0xff]
  %v165 = vld [vmem:[%s1 + $0x388] sm:$0xff]
  %v166 = vld [vmem:[%s1 + $0x390] sm:$0xff]
  %v167 = vld [vmem:[%s1 + $0x398] sm:$0xff]
  %v168 = vld [vmem:[%s1 + $0x3a0] sm:$0xff]
  %v169 = vld [vmem:[%s1 + $0x3a8] sm:$0xff]
  %v170 = vld [vmem:[%s1 + $0x3b0] sm:$0xff]
  %v171 = vld [vmem:[%s1 + $0x3b8] sm:$0xff]
  %v172 = vld [vmem:[%s1 + $0x3c0] sm:$0xff]
  %v173 = vld [vmem:[%s1 + $0x3c8] sm:$0xff]
  %v174 = vld [vmem:[%s1 + $0x3d0] sm:$0xff]
  %v175 = vld [vmem:[%s1 + $0x3d8] sm:$0xff]
  %v176 = vld [vmem:[%s1 + $0x3e0] sm:$0xff]
  %v177 = vld [vmem:[%s1 + $0x3e8] sm:$0xff]
  %v178 = vld [vmem:[%s1 + $0x3f0] sm:$0xff]
  %v179 = vld [vmem:[%s1 + $0x3f8] sm:$0xff]
  %v180 = vld [vmem:[%s1 + $0x400] sm:$0xff]
  %v181 = vld [vmem:[%s1 + $0x408] sm:$0xff]
  %v182 = vld [vmem:[%s1 + $0x410] sm:$0xff]
  %v183 = vld [vmem:[%s1 + $0x418] sm:$0xff]
  %v184 = vld [vmem:[%s1 + $0x420] sm:$0xff]
  %v185 = vld [vmem:[%s1 + $0x428] sm:$0xff]
  %v186 = vld [vmem:[%s1 + $0x430] sm:$0xff]
  %v187 = vld [vmem:[%s1 + $0x438] sm:$0xff]
  %v188 = vld [vmem:[%s1 + $0x440] sm:$0xff]
  %v189 = vld [vmem:[%s1 + $0x448] sm:$0xff]
  %v190 = vld [vmem:[%s1 + $0x450] sm:$0xff]
  %v191 = vld [vmem:[%s1 + $0x458] sm:$0xff]
  %v192 = vld [vmem:[%s1 + $0x460] sm:$0xff]
  %v193 = vld [vmem:[%s1 + $0x468] sm:$0xff]
  %v194 = vld [vmem:[%s1 + $0x470] sm:$0xff]
  %v195 = vld [vmem:[%s1 + $0x478] sm:$0xff]
  %v196 = vld [vmem:[%s1 + $0x480] sm:$0xff]
  %v197 = vld [vmem:[%s1 + $0x488] sm:$0xff]
  %v198 = vld [vmem:[%s1 + $0x490] sm:$0xff]
  %v199 = vld [vmem:[%s1 + $0x498] sm:$0xff]
  %v200 = vld [vmem:[%s1 + $0x4a0] sm:$0xff]
  %v201 = vld [vmem:[%s1 + $0x4a8] sm:$0xff]
  %v202 = vld [vmem:[%s1 + $0x4b0] sm:$0xff]
  %v203 = vld [vmem:[%s1 + $0x4b8] sm:$0xff]
  %v204 = vld [vmem:[%s1 + $0x4c0] sm:$0xff]
  %v205 = vld [vmem:[%s1 + $0x4c8] sm:$0xff]
  %v206 = vld [vmem:[%s1 + $0x4d0] sm:$0xff]
  %v207 = vld [vmem:[%s1 + $0x4d8] sm:$0xff]
  %v208 = vld [vmem:[%s1 + $0x4e0] sm:$0xff]
  %v209 = vld [vmem:[%s1 + $0x4e8] sm:$0xff]
  %v210 = vld [vmem:[%s1 + $0x4f0] sm:$0xff]
  %v211 = vld [vmem:[%s1 + $0x4f8] sm:$0xff]
  %v212 = vld [vmem:[%s1 + $0x500] sm:$0xff]
  %v213 = vld [vmem:[%s1 + $0x508] sm:$0xff]
  %v214 = vld [vmem:[%s1 + $0x510] sm:$0xff]
  %v215 = vld [vmem:[%s1 + $0x518] sm:$0xff]
  %v216 = vld [vmem:[%s1 + $0x520] sm:$0xff]
  %v217 = vld [vmem:[%s1 + $0x528] sm:$0xff]
  %v218 = vld [vmem:[%s1 + $0x530] sm:$0xff]
  %v219 = vld [vmem:[%s1 + $0x538] sm:$0xff]
  %v220 = vld [vmem:[%s1 + $0x540] sm:$0xff]
  %v221 = vld [vmem:[%s1 + $0x548] sm:$0xff]
  %v222 = vld [vmem:[%s1 + $0x550] sm:$0xff]
  %v223 = vld [vmem:[%s1 + $0x558] sm:$0xff]
  %v224 = vld [vmem:[%s1 + $0x560] sm:$0xff]
  %v225 = vld [vmem:[%s1 + $0x568] sm:$0xff]
  %v226 = vld [vmem:[%s1 + $0x570] sm:$0xff]
  %v227 = vld [vmem:[%s1 + $0x578] sm:$0xff]
  %v228 = vld [vmem:[%s1 + $0x580] sm:$0xff]
  %v229 = vld [vmem:[%s1 + $0x588] sm:$0xff]
  %v230 = vld [vmem:[%s1 + $0x590] sm:$0xff]
  %v231 = vld [vmem:[%s1 + $0x598] sm:$0xff]
  %v232 = vld [vmem:[%s1 + $0x5a0] sm:$0xff]
  %v233 = vld [vmem:[%s1 + $0x5a8] sm:$0xff]
  %v234 = vld [vmem:[%s1 + $0x5b0] sm:$0xff]
  %v235 = vld [vmem:[%s1 + $0x5b8] sm:$0xff]
  %v236 = vld [vmem:[%s1 + $0x5c0] sm:$0xff]
  %v237 = vld [vmem:[%s1 + $0x5c8] sm:$0xff]
  %v238 = vld [vmem:[%s1 + $0x5d0] sm:$0xff]
  %v239 = vld [vmem:[%s1 + $0x5d8] sm:$0xff]
  %v240 = vld [vmem:[%s1 + $0x5e0] sm:$0xff]
  %v241 = vld [vmem:[%s1 + $0x5e8] sm:$0xff]
  %v242 = vld [vmem:[%s1 + $0x5f0] sm:$0xff]
  %v243 = vld [vmem:[%s1 + $0x5f8] sm:$0xff]
  %v244 = vld [vmem:[%s1 + $0x600] sm:$0xff]
  %v245 = vld [vmem:[%s1 + $0x608] sm:$0xff]
  %v246 = vld [vmem:[%s1 + $0x610] sm:$0xff]
  %v247 = vld [vmem:[%s1 + $0x618] sm:$0xff]
  %v248 = vld [vmem:[%s1 + $0x620] sm:$0xff]
  %v249 = vld [vmem:[%s1 + $0x628] sm:$0xff]
  %v250 = vld [vmem:[%s1 + $0x630] sm:$0xff]
  %v251 = vld [vmem:[%s1 + $0x638] sm:$0xff]
  %v252 = vld [vmem:[%s1 + $0x640] sm:$0xff]
  %v253 = vld [vmem:[%s1 + $0x648] sm:$0xff]
  %v254 = vld [vmem:[%s1 + $0x650] sm:$0xff]
  %v255 = vld [vmem:[%s1 + $0x658] sm:$0xff]
  %v256 = vld [vmem:[%s1 + $0x660] sm:$0xff]
  %v257 = vld [vmem:[%s1 + $0x668] sm:$0xff]
  %v258 = vld [vmem:[%s1 + $0x670] sm:$0xff]
  %v259 = vld [vmem:[%s1 + $0x678] sm:$0xff]
  %v260 = vld [vmem:[%s1 + $0x680] sm:$0xff]
  %v261 = vld [vmem:[%s1 + $0x688] sm:$0xff]
  %v262 = vld [vmem:[%s1 + $0x690] sm:$0xff]
  %v263 = vld [vmem:[%s1 + $0x698] sm:$0xff]
  %v264 = vld [vmem:[%s1 + $0x6a0] sm:$0xff]
  %v265 = vld [vmem:[%s1 + $0x6a8] sm:$0xff]
  %v266 = vld [vmem:[%s1 + $0x6b0] sm:$0xff]
  %v267 = vld [vmem:[%s1 + $0x6b8] sm:$0xff]
  %v268 = vld [vmem:[%s1 + $0x6c0] sm:$0xff]
  %v269 = vld [vmem:[%s1 + $0x6c8] sm:$0xff]
  %v270 = vld [vmem:[%s1 + $0x6d0] sm:$0xff]
  %v271 = vld [vmem:[%s1 + $0x6d8] sm:$0xff]
  %v272 = vld [vmem:[%s1 + $0x6e0] sm:$0xff]
  %v273 = vld [vmem:[%s1 + $0x6e8] sm:$0xff]
  %v274 = vld [vmem:[%s1 + $0x6f0] sm:$0xff]
  %v275 = vld [vmem:[%s1 + $0x6f8] sm:$0xff]
  %v276 = vld [vmem:[%s1 + $0x700] sm:$0xff]
  %v277 = vld [vmem:[%s1 + $0x708] sm:$0xff]
  %v278 = vld [vmem:[%s1 + $0x710] sm:$0xff]
  %v279 = vld [vmem:[%s1 + $0x718] sm:$0xff]
  %v280 = vld [vmem:[%s1 + $0x720] sm:$0xff]
  %v281 = vld [vmem:[%s1 + $0x728] sm:$0xff]
  %v282 = vld [vmem:[%s1 + $0x730] sm:$0xff]
  %v283 = vld [vmem:[%s1 + $0x738] sm:$0xff]
  %v284 = vld [vmem:[%s1 + $0x740] sm:$0xff]
  %v285 = vld [vmem:[%s1 + $0x748] sm:$0xff]
  %v286 = vld [vmem:[%s1 + $0x750] sm:$0xff]
  %v287 = vld [vmem:[%s1 + $0x758] sm:$0xff]
  %v288 = vld [vmem:[%s1 + $0x760] sm:$0xff]
  %v289 = vld [vmem:[%s1 + $0x768] sm:$0xff]
  %v290 = vld [vmem:[%s1 + $0x770] sm:$0xff]
  %v291 = vld [vmem:[%s1 + $0x778] sm:$0xff]
  %v292 = vld [vmem:[%s1 + $0x780] sm:$0xff]
  %v293 = vld [vmem:[%s1 + $0x788] sm:$0xff]
  %v294 = vld [vmem:[%s1 + $0x790] sm:$0xff]
  %v295 = vld [vmem:[%s1 + $0x798] sm:$0xff]
  %v296 = vld [vmem:[%s1 + $0x7a0] sm:$0xff]
  %v297 = vld [vmem:[%s1 + $0x7a8] sm:$0xff]
  %v298 = vld [vmem:[%s1 + $0x7b0] sm:$0xff]
  %v299 = vld [vmem:[%s1 + $0x7b8] sm:$0xff]
  %v300 = vld [vmem:[%s1 + $0x7c0] sm:$0xff]
  %v301 = vld [vmem:[%s1 + $0x7c8] sm:$0xff]
  %v302 = vld [vmem:[%s1 + $0x7d0] sm:$0xff]
  %v303 = vld [vmem:[%s1 + $0x7d8] sm:$0xff]
  %v304 = vld [vmem:[%s1 + $0x7e0] sm:$0xff]
  %v305 = vld [vmem:[%s1 + $0x7e8] sm:$0xff]
  %v306 = vld [vmem:[%s1 + $0x7f0] sm:$0xff]
  %v307 = vld [vmem:[%s1 + $0x7f8] sm:$0xff]
  %v308 = vld [vmem:[%s1 + $0x800] sm:$0xff]
  %v309 = vld [vmem:[%s1 + $0x808] sm:$0xff]
  %v310 = vld [vmem:[%s1 + $0x810] sm:$0xff]
  %v311 = vld [vmem:[%s1 + $0x818] sm:$0xff]
  %v312 = vld [vmem:[%s1 + $0x820] sm:$0xff]
  %v313 = vld [vmem:[%s1 + $0x828] sm:$0xff]
  %v314 = vld [vmem:[%s1 + $0x830] sm:$0xff]
  %v315 = vld [vmem:[%s1 + $0x838] sm:$0xff]
  %vm316 = vcmask 392192
  %v318 = vsel %vm316, %v51, 0
  %320 = vmatprep.subr.mxu0 %v53
  %321 = vmatpush1.msra.mxu0 %v52
  %322 = vmatprep.subr.mxu0 %v65
  %323 = vmatpush1.msra.mxu0 %v64
  %324 = vmatprep.subr.mxu0 %v77
  %325 = vmatpush1.msra.mxu0 %v76
  %326 = vmatprep.subr.mxu0 %v89
  %327 = vmatpush1.msra.mxu0 %v88
  %328 = vmatprep.subr.mxu0 %v101
  %329 = vmatpush1.msra.mxu0 %v100
  %330 = vmatprep.subr.mxu0 %v113
  %331 = vmatpush1.msra.mxu0 %v112
  %332 = vmatprep.subr.mxu0 %v125
  %333 = vmatpush1.msra.mxu0 %v124
  %334 = vmatprep.subr.mxu0 %v137
  %335 = vmatpush1.msra.mxu0 %v136
  %336 = vmatprep.subr.mxu0 %v149
  %337 = vmatpush1.msra.mxu0 %v148
  %338 = vmatprep.subr.mxu0 %v161
  %339 = vmatpush1.msra.mxu0 %v160
  %340 = vmatprep.subr.mxu0 %v173
  %341 = vmatpush1.msra.mxu0 %v172
  %342 = vmatprep.subr.mxu0 %v185
  %343 = vmatpush1.msra.mxu0 %v184
  %344 = vmatprep.subr.mxu0 %v197
  %345 = vmatpush1.msra.mxu0 %v196
  %346 = vmatprep.subr.mxu0 %v209
  %347 = vmatpush1.msra.mxu0 %v208
  %348 = vmatprep.subr.mxu0 %v221
  %349 = vmatpush1.msra.mxu0 %v220
  %350 = vmatprep.subr.mxu0 %v233
  %351 = vmatpush1.msra.mxu0 %v232
  %352 = vmatprep.subr.mxu0 %v245
  %353 = vmatpush1.msra.mxu0 %v244
  %354 = vmatprep.subr.mxu0 %v257
  %355 = vmatpush1.msra.mxu0 %v256
  %356 = vmatprep.subr.mxu0 %v269
  %357 = vmatpush1.msra.mxu0 %v268
  %358 = vmatprep.subr.mxu0 %v281
  %359 = vmatpush1.msra.mxu0 %v280
  %360 = vmatprep.subr.mxu0 %v293
  %361 = vmatpush1.msra.mxu0 %v292
  %362 = vmatprep.subr.mxu0 %v305
  %363 = vmatpush1.msra.mxu0 %v304
  %364 = vmatprep.subr.mxu0 0.0
  %365 = vmatpush1.msra.mxu0 0.0
  %366 = vmatprep.subr.mxu0 0.0
  %367 = vmatpush1.msra.mxu0 0.0
  %368 = vmatprep.subr.mxu0 0.0
  %369 = vmatpush1.msra.mxu0 0.0
  %370 = vmatprep.subr.mxu0 0.0
  %371 = vmatpush1.msra.mxu0 0.0
  %372 = vmatprep.subr.mxu0 0.0
  %373 = vmatpush1.msra.mxu0 0.0
  %374 = vmatprep.subr.mxu0 0.0
  %375 = vmatpush1.msra.mxu0 0.0
  %376 = vmatprep.subr.mxu0 0.0
  %377 = vmatpush1.msra.mxu0 0.0
  %378 = vmatprep.subr.mxu0 0.0
  %379 = vmatpush1.msra.mxu0 0.0
  %380 = vmatprep.subr.mxu0 0.0
  %381 = vmatpush1.msra.mxu0 0.0
  %382 = vmatprep.subr.mxu0 0.0
  %383 = vmatpush1.msra.mxu0 0.0
  %384 = vmatprep.mubr.f32.mxu0 %v318
  %385 = vmatmul.mubr.f32.gmra.mrb[0].mxu0 %v50
  %v386 = vpop.f32.mrb[0].mxu0
  %v387 = vadd.f32 0.0, %v386
  %v388 = vpop.f32.mrb[0].mxu0
  %v389 = vadd.f32 0.0, %v388
  %390 = vdwg.mxu0
  %391 = vmatprep.subr.mxu0 %v55
  %392 = vmatpush1.msra.mxu0 %v54
  %393 = vmatprep.subr.mxu0 %v67
  %394 = vmatpush1.msra.mxu0 %v66
  %395 = vmatprep.subr.mxu0 %v79
  %396 = vmatpush1.msra.mxu0 %v78
  %397 = vmatprep.subr.mxu0 %v91
  %398 = vmatpush1.msra.mxu0 %v90
  %399 = vmatprep.subr.mxu0 %v103
  %400 = vmatpush1.msra.mxu0 %v102
  %401 = vmatprep.subr.mxu0 %v115
  %402 = vmatpush1.msra.mxu0 %v114
  %403 = vmatprep.subr.mxu0 %v127
  %404 = vmatpush1.msra.mxu0 %v126
  %405 = vmatprep.subr.mxu0 %v139
  %406 = vmatpush1.msra.mxu0 %v138
  %407 = vmatprep.subr.mxu0 %v151
  %408 = vmatpush1.msra.mxu0 %v150
  %409 = vmatprep.subr.mxu0 %v163
  %410 = vmatpush1.msra.mxu0 %v162
  %411 = vmatprep.subr.mxu0 %v175
  %412 = vmatpush1.msra.mxu0 %v174
  %413 = vmatprep.subr.mxu0 %v187
  %414 = vmatpush1.msra.mxu0 %v186
  %415 = vmatprep.subr.mxu0 %v199
  %416 = vmatpush1.msra.mxu0 %v198
  %417 = vmatprep.subr.mxu0 %v211
  %418 = vmatpush1.msra.mxu0 %v210
  %419 = vmatprep.subr.mxu0 %v223
  %420 = vmatpush1.msra.mxu0 %v222
  %421 = vmatprep.subr.mxu0 %v235
  %422 = vmatpush1.msra.mxu0 %v234
  %423 = vmatprep.subr.mxu0 %v247
  %424 = vmatpush1.msra.mxu0 %v246
  %425 = vmatprep.subr.mxu0 %v259
  %426 = vmatpush1.msra.mxu0 %v258
  %427 = vmatprep.subr.mxu0 %v271
  %428 = vmatpush1.msra.mxu0 %v270
  %429 = vmatprep.subr.mxu0 %v283
  %430 = vmatpush1.msra.mxu0 %v282
  %431 = vmatprep.subr.mxu0 %v295
  %432 = vmatpush1.msra.mxu0 %v294
  %433 = vmatprep.subr.mxu0 %v307
  %434 = vmatpush1.msra.mxu0 %v306
  %435 = vmatprep.subr.mxu0 0.0
  %436 = vmatpush1.msra.mxu0 0.0
  %437 = vmatprep.subr.mxu0 0.0
  %438 = vmatpush1.msra.mxu0 0.0
  %439 = vmatprep.subr.mxu0 0.0
  %440 = vmatpush1.msra.mxu0 0.0
  %441 = vmatprep.subr.mxu0 0.0
  %442 = vmatpush1.msra.mxu0 0.0
  %443 = vmatprep.subr.mxu0 0.0
  %444 = vmatpush1.msra.mxu0 0.0
  %445 = vmatprep.subr.mxu0 0.0
  %446 = vmatpush1.msra.mxu0 0.0
  %447 = vmatprep.subr.mxu0 0.0
  %448 = vmatpush1.msra.mxu0 0.0
  %449 = vmatprep.subr.mxu0 0.0
  %450 = vmatpush1.msra.mxu0 0.0
  %451 = vmatprep.subr.mxu0 0.0
  %452 = vmatpush1.msra.mxu0 0.0
  %453 = vmatprep.subr.mxu0 0.0
  %454 = vmatpush1.msra.mxu0 0.0
  %455 = vmatprep.mubr.f32.mxu0 %v318
  %456 = vmatmul.mubr.f32.gmra.mrb[0].mxu0 %v50
  %v457 = vpop.f32.mrb[0].mxu0
  %v458 = vadd.f32 0.0, %v457
  %v459 = vpop.f32.mrb[0].mxu0
  %v460 = vadd.f32 0.0, %v459
  %461 = vdwg.mxu0
  %462 = vmatprep.subr.mxu0 %v57
  %463 = vmatpush1.msra.mxu0 %v56
  %464 = vmatprep.subr.mxu0 %v69
  %465 = vmatpush1.msra.mxu0 %v68
  %466 = vmatprep.subr.mxu0 %v81
  %467 = vmatpush1.msra.mxu0 %v80
  %468 = vmatprep.subr.mxu0 %v93
  %469 = vmatpush1.msra.mxu0 %v92
  %470 = vmatprep.subr.mxu0 %v105
  %471 = vmatpush1.msra.mxu0 %v104
  %472 = vmatprep.subr.mxu0 %v117
  %473 = vmatpush1.msra.mxu0 %v116
  %474 = vmatprep.subr.mxu0 %v129
  %475 = vmatpush1.msra.mxu0 %v128
  %476 = vmatprep.subr.mxu0 %v141
  %477 = vmatpush1.msra.mxu0 %v140
  %478 = vmatprep.subr.mxu0 %v153
  %479 = vmatpush1.msra.mxu0 %v152
  %480 = vmatprep.subr.mxu0 %v165
  %481 = vmatpush1.msra.mxu0 %v164
  %482 = vmatprep.subr.mxu0 %v177
  %483 = vmatpush1.msra.mxu0 %v176
  %484 = vmatprep.subr.mxu0 %v189
  %485 = vmatpush1.msra.mxu0 %v188
  %486 = vmatprep.subr.mxu0 %v201
  %487 = vmatpush1.msra.mxu0 %v200
  %488 = vmatprep.subr.mxu0 %v213
  %489 = vmatpush1.msra.mxu0 %v212
  %490 = vmatprep.subr.mxu0 %v225
  %491 = vmatpush1.msra.mxu0 %v224
  %492 = vmatprep.subr.mxu0 %v237
  %493 = vmatpush1.msra.mxu0 %v236
  %494 = vmatprep.subr.mxu0 %v249
  %495 = vmatpush1.msra.mxu0 %v248
  %496 = vmatprep.subr.mxu0 %v261
  %497 = vmatpush1.msra.mxu0 %v260
  %498 = vmatprep.subr.mxu0 %v273
  %499 = vmatpush1.msra.mxu0 %v272
  %500 = vmatprep.subr.mxu0 %v285
  %501 = vmatpush1.msra.mxu0 %v284
  %502 = vmatprep.subr.mxu0 %v297
  %503 = vmatpush1.msra.mxu0 %v296
  %504 = vmatprep.subr.mxu0 %v309
  %505 = vmatpush1.msra.mxu0 %v308
  %506 = vmatprep.subr.mxu0 0.0
  %507 = vmatpush1.msra.mxu0 0.0
  %508 = vmatprep.subr.mxu0 0.0
  %509 = vmatpush1.msra.mxu0 0.0
  %510 = vmatprep.subr.mxu0 0.0
  %511 = vmatpush1.msra.mxu0 0.0
  %512 = vmatprep.subr.mxu0 0.0
  %513 = vmatpush1.msra.mxu0 0.0
  %514 = vmatprep.subr.mxu0 0.0
  %515 = vmatpush1.msra.mxu0 0.0
  %516 = vmatprep.subr.mxu0 0.0
  %517 = vmatpush1.msra.mxu0 0.0
  %518 = vmatprep.subr.mxu0 0.0
  %519 = vmatpush1.msra.mxu0 0.0
  %520 = vmatprep.subr.mxu0 0.0
  %521 = vmatpush1.msra.mxu0 0.0
  %522 = vmatprep.subr.mxu0 0.0
  %523 = vmatpush1.msra.mxu0 0.0
  %524 = vmatprep.subr.mxu0 0.0
  %525 = vmatpush1.msra.mxu0 0.0
  %526 = vmatprep.mubr.f32.mxu0 %v318
  %527 = vmatmul.mubr.f32.gmra.mrb[0].mxu0 %v50
  %v528 = vpop.f32.mrb[0].mxu0
  %v529 = vadd.f32 0.0, %v528
  %v530 = vpop.f32.mrb[0].mxu0
  %v531 = vadd.f32 0.0, %v530
  %532 = vdwg.mxu0
  %533 = vmatprep.subr.mxu0 %v59
  %534 = vmatpush1.msra.mxu0 %v58
  %535 = vmatprep.subr.mxu0 %v71
  %536 = vmatpush1.msra.mxu0 %v70
  %537 = vmatprep.subr.mxu0 %v83
  %538 = vmatpush1.msra.mxu0 %v82
  %539 = vmatprep.subr.mxu0 %v95
  %540 = vmatpush1.msra.mxu0 %v94
  %541 = vmatprep.subr.mxu0 %v107
  %542 = vmatpush1.msra.mxu0 %v106
  %543 = vmatprep.subr.mxu0 %v119
  %544 = vmatpush1.msra.mxu0 %v118
  %545 = vmatprep.subr.mxu0 %v131
  %546 = vmatpush1.msra.mxu0 %v130
  %547 = vmatprep.subr.mxu0 %v143
  %548 = vmatpush1.msra.mxu0 %v142
  %549 = vmatprep.subr.mxu0 %v155
  %550 = vmatpush1.msra.mxu0 %v154
  %551 = vmatprep.subr.mxu0 %v167
  %552 = vmatpush1.msra.mxu0 %v166
  %553 = vmatprep.subr.mxu0 %v179
  %554 = vmatpush1.msra.mxu0 %v178
  %555 = vmatprep.subr.mxu0 %v191
  %556 = vmatpush1.msra.mxu0 %v190
  %557 = vmatprep.subr.mxu0 %v203
  %558 = vmatpush1.msra.mxu0 %v202
  %559 = vmatprep.subr.mxu0 %v215
  %560 = vmatpush1.msra.mxu0 %v214
  %561 = vmatprep.subr.mxu0 %v227
  %562 = vmatpush1.msra.mxu0 %v226
  %563 = vmatprep.subr.mxu0 %v239
  %564 = vmatpush1.msra.mxu0 %v238
  %565 = vmatprep.subr.mxu0 %v251
  %566 = vmatpush1.msra.mxu0 %v250
  %567 = vmatprep.subr.mxu0 %v263
  %568 = vmatpush1.msra.mxu0 %v262
  %569 = vmatprep.subr.mxu0 %v275
  %570 = vmatpush1.msra.mxu0 %v274
  %571 = vmatprep.subr.mxu0 %v287
  %572 = vmatpush1.msra.mxu0 %v286
  %573 = vmatprep.subr.mxu0 %v299
  %574 = vmatpush1.msra.mxu0 %v298
  %575 = vmatprep.subr.mxu0 %v311
  %576 = vmatpush1.msra.mxu0 %v310
  %577 = vmatprep.subr.mxu0 0.0
  %578 = vmatpush1.msra.mxu0 0.0
  %579 = vmatprep.subr.mxu0 0.0
  %580 = vmatpush1.msra.mxu0 0.0
  %581 = vmatprep.subr.mxu0 0.0
  %582 = vmatpush1.msra.mxu0 0.0
  %583 = vmatprep.subr.mxu0 0.0
  %584 = vmatpush1.msra.mxu0 0.0
  %585 = vmatprep.subr.mxu0 0.0
  %586 = vmatpush1.msra.mxu0 0.0
  %587 = vmatprep.subr.mxu0 0.0
  %588 = vmatpush1.msra.mxu0 0.0
  %589 = vmatprep.subr.mxu0 0.0
  %590 = vmatpush1.msra.mxu0 0.0
  %591 = vmatprep.subr.mxu0 0.0
  %592 = vmatpush1.msra.mxu0 0.0
  %593 = vmatprep.subr.mxu0 0.0
  %594 = vmatpush1.msra.mxu0 0.0
  %595 = vmatprep.subr.mxu0 0.0
  %596 = vmatpush1.msra.mxu0 0.0
  %597 = vmatprep.mubr.f32.mxu0 %v318
  %598 = vmatmul.mubr.f32.gmra.mrb[0].mxu0 %v50
  %v599 = vpop.f32.mrb[0].mxu0
  %v600 = vadd.f32 0.0, %v599
  %v601 = vpop.f32.mrb[0].mxu0
  %v602 = vadd.f32 0.0, %v601
  %603 = vdwg.mxu0
  %604 = vmatprep.subr.mxu0 %v61
  %605 = vmatpush1.msra.mxu0 %v60
  %606 = vmatprep.subr.mxu0 %v73
  %607 = vmatpush1.msra.mxu0 %v72
  %608 = vmatprep.subr.mxu0 %v85
  %609 = vmatpush1.msra.mxu0 %v84
  %610 = vmatprep.subr.mxu0 %v97
  %611 = vmatpush1.msra.mxu0 %v96
  %612 = vmatprep.subr.mxu0 %v109
  %613 = vmatpush1.msra.mxu0 %v108
  %614 = vmatprep.subr.mxu0 %v121
  %615 = vmatpush1.msra.mxu0 %v120
  %616 = vmatprep.subr.mxu0 %v133
  %617 = vmatpush1.msra.mxu0 %v132
  %618 = vmatprep.subr.mxu0 %v145
  %619 = vmatpush1.msra.mxu0 %v144
  %620 = vmatprep.subr.mxu0 %v157
  %621 = vmatpush1.msra.mxu0 %v156
  %622 = vmatprep.subr.mxu0 %v169
  %623 = vmatpush1.msra.mxu0 %v168
  %624 = vmatprep.subr.mxu0 %v181
  %625 = vmatpush1.msra.mxu0 %v180
  %626 = vmatprep.subr.mxu0 %v193
  %627 = vmatpush1.msra.mxu0 %v192
  %628 = vmatprep.subr.mxu0 %v205
  %629 = vmatpush1.msra.mxu0 %v204
  %630 = vmatprep.subr.mxu0 %v217
  %631 = vmatpush1.msra.mxu0 %v216
  %632 = vmatprep.subr.mxu0 %v229
  %633 = vmatpush1.msra.mxu0 %v228
  %634 = vmatprep.subr.mxu0 %v241
  %635 = vmatpush1.msra.mxu0 %v240
  %636 = vmatprep.subr.mxu0 %v253
  %637 = vmatpush1.msra.mxu0 %v252
  %638 = vmatprep.subr.mxu0 %v265
  %639 = vmatpush1.msra.mxu0 %v264
  %640 = vmatprep.subr.mxu0 %v277
  %641 = vmatpush1.msra.mxu0 %v276
  %642 = vmatprep.subr.mxu0 %v289
  %643 = vmatpush1.msra.mxu0 %v288
  %644 = vmatprep.subr.mxu0 %v301
  %645 = vmatpush1.msra.mxu0 %v300
  %646 = vmatprep.subr.mxu0 %v313
  %647 = vmatpush1.msra.mxu0 %v312
  %648 = vmatprep.subr.mxu0 0.0
  %649 = vmatpush1.msra.mxu0 0.0
  %650 = vmatprep.subr.mxu0 0.0
  %651 = vmatpush1.msra.mxu0 0.0
  %652 = vmatprep.subr.mxu0 0.0
  %653 = vmatpush1.msra.mxu0 0.0
  %654 = vmatprep.subr.mxu0 0.0
  %655 = vmatpush1.msra.mxu0 0.0
  %656 = vmatprep.subr.mxu0 0.0
  %657 = vmatpush1.msra.mxu0 0.0
  %658 = vmatprep.subr.mxu0 0.0
  %659 = vmatpush1.msra.mxu0 0.0
  %660 = vmatprep.subr.mxu0 0.0
  %661 = vmatpush1.msra.mxu0 0.0
  %662 = vmatprep.subr.mxu0 0.0
  %663 = vmatpush1.msra.mxu0 0.0
  %664 = vmatprep.subr.mxu0 0.0
  %665 = vmatpush1.msra.mxu0 0.0
  %666 = vmatprep.subr.mxu0 0.0
  %667 = vmatpush1.msra.mxu0 0.0
  %668 = vmatprep.mubr.f32.mxu0 %v318
  %669 = vmatmul.mubr.f32.gmra.mrb[0].mxu0 %v50
  %v670 = vpop.f32.mrb[0].mxu0
  %v671 = vadd.f32 0.0, %v670
  %v672 = vpop.f32.mrb[0].mxu0
  %v673 = vadd.f32 0.0, %v672
  %674 = vdwg.mxu0
  %675 = vmatprep.subr.mxu0 %v63
  %676 = vmatpush1.msra.mxu0 %v62
  %677 = vmatprep.subr.mxu0 %v75
  %678 = vmatpush1.msra.mxu0 %v74
  %679 = vmatprep.subr.mxu0 %v87
  %680 = vmatpush1.msra.mxu0 %v86
  %681 = vmatprep.subr.mxu0 %v99
  %682 = vmatpush1.msra.mxu0 %v98
  %683 = vmatprep.subr.mxu0 %v111
  %684 = vmatpush1.msra.mxu0 %v110
  %685 = vmatprep.subr.mxu0 %v123
  %686 = vmatpush1.msra.mxu0 %v122
  %687 = vmatprep.subr.mxu0 %v135
  %688 = vmatpush1.msra.mxu0 %v134
  %689 = vmatprep.subr.mxu0 %v147
  %690 = vmatpush1.msra.mxu0 %v146
  %691 = vmatprep.subr.mxu0 %v159
  %692 = vmatpush1.msra.mxu0 %v158
  %693 = vmatprep.subr.mxu0 %v171
  %694 = vmatpush1.msra.mxu0 %v170
  %695 = vmatprep.subr.mxu0 %v183
  %696 = vmatpush1.msra.mxu0 %v182
  %697 = vmatprep.subr.mxu0 %v195
  %698 = vmatpush1.msra.mxu0 %v194
  %699 = vmatprep.subr.mxu0 %v207
  %700 = vmatpush1.msra.mxu0 %v206
  %701 = vmatprep.subr.mxu0 %v219
  %702 = vmatpush1.msra.mxu0 %v218
  %703 = vmatprep.subr.mxu0 %v231
  %704 = vmatpush1.msra.mxu0 %v230
  %705 = vmatprep.subr.mxu0 %v243
  %706 = vmatpush1.msra.mxu0 %v242
  %707 = vmatprep.subr.mxu0 %v255
  %708 = vmatpush1.msra.mxu0 %v254
  %709 = vmatprep.subr.mxu0 %v267
  %710 = vmatpush1.msra.mxu0 %v266
  %711 = vmatprep.subr.mxu0 %v279
  %712 = vmatpush1.msra.mxu0 %v278
  %713 = vmatprep.subr.mxu0 %v291
  %714 = vmatpush1.msra.mxu0 %v290
  %715 = vmatprep.subr.mxu0 %v303
  %716 = vmatpush1.msra.mxu0 %v302
  %717 = vmatprep.subr.mxu0 %v315
  %718 = vmatpush1.msra.mxu0 %v314
  %719 = vmatprep.subr.mxu0 0.0
  %720 = vmatpush1.msra.mxu0 0.0
  %721 = vmatprep.subr.mxu0 0.0
  %722 = vmatpush1.msra.mxu0 0.0
  %723 = vmatprep.subr.mxu0 0.0
  %724 = vmatpush1.msra.mxu0 0.0
  %725 = vmatprep.subr.mxu0 0.0
  %726 = vmatpush1.msra.mxu0 0.0
  %727 = vmatprep.subr.mxu0 0.0
  %728 = vmatpush1.msra.mxu0 0.0
  %729 = vmatprep.subr.mxu0 0.0
  %730 = vmatpush1.msra.mxu0 0.0
  %731 = vmatprep.subr.mxu0 0.0
  %732 = vmatpush1.msra.mxu0 0.0
  %733 = vmatprep.subr.mxu0 0.0
  %734 = vmatpush1.msra.mxu0 0.0
  %735 = vmatprep.subr.mxu0 0.0
  %736 = vmatpush1.msra.mxu0 0.0
  %737 = vmatprep.subr.mxu0 0.0
  %738 = vmatpush1.msra.mxu0 0.0
  %739 = vmatprep.mubr.f32.mxu0 %v318
  %740 = vmatmul.mubr.f32.gmra.mrb[0].mxu0 %v50
  %v741 = vpop.f32.mrb[0].mxu0
  %v742 = vadd.f32 0.0, %v741
  %v743 = vpop.f32.mrb[0].mxu0
  %v744 = vadd.f32 0.0, %v743
  %745 = vdwg.mxu0
  %v746 = vld [vmem:[%s8] sm:$0xff]
  %v747 = vld [vmem:[%s8 + $0x8] sm:$0xff]
  %v748 = vld [vmem:[%s8 + $0x10] sm:$0xff]
  %v749 = vld [vmem:[%s8 + $0x18] sm:$0xff]
  %v750 = vld [vmem:[%s9] sm:$0x1]
  %v751 = vld [vmem:[%s10] sm:$0x1]
  %vm752 = vcmask 261120
  %v754 = vsel %vm752, 0.0, 0
  %756 = vmatprep.subr.mxu0 0.0
  %757 = vmatpush1.msra.mxu0 %v746
  %758 = vmatprep.subr.mxu0 0.0
  %759 = vmatpush1.msra.mxu0 %v747
  %760 = vmatprep.subr.mxu0 0.0
  %761 = vmatpush1.msra.mxu0 %v748
  %762 = vmatprep.subr.mxu0 0.0
  %763 = vmatpush1.msra.mxu0 %v749
  %764 = vmatprep.subr.mxu0 0.0
  %765 = vmatpush1.msra.mxu0 0.0
  %766 = vmatprep.subr.mxu0 0.0
  %767 = vmatpush1.msra.mxu0 0.0
  %768 = vmatprep.subr.mxu0 0.0
  %769 = vmatpush1.msra.mxu0 0.0
  %770 = vmatprep.subr.mxu0 0.0
  %771 = vmatpush1.msra.mxu0 0.0
  %772 = vmatprep.subr.mxu0 0.0
  %773 = vmatpush1.msra.mxu0 0.0
  %774 = vmatprep.subr.mxu0 0.0
  %775 = vmatpush1.msra.mxu0 0.0
  %776 = vmatprep.subr.mxu0 0.0
  %777 = vmatpush1.msra.mxu0 0.0
  %778 = vmatprep.subr.mxu0 0.0
  %779 = vmatpush1.msra.mxu0 0.0
  %780 = vmatprep.subr.mxu0 0.0
  %781 = vmatpush1.msra.mxu0 0.0
  %782 = vmatprep.subr.mxu0 0.0
  %783 = vmatpush1.msra.mxu0 0.0
  %784 = vmatprep.subr.mxu0 0.0
  %785 = vmatpush1.msra.mxu0 0.0
  %786 = vmatprep.subr.mxu0 0.0
  %787 = vmatpush1.msra.mxu0 0.0
  %788 = vmatprep.subr.mxu0 0.0
  %789 = vmatpush1.msra.mxu0 0.0
  %790 = vmatprep.subr.mxu0 0.0
  %791 = vmatpush1.msra.mxu0 0.0
  %792 = vmatprep.subr.mxu0 0.0
  %793 = vmatpush1.msra.mxu0 0.0
  %794 = vmatprep.subr.mxu0 0.0
  %795 = vmatpush1.msra.mxu0 0.0
  %796 = vmatprep.subr.mxu0 0.0
  %797 = vmatpush1.msra.mxu0 0.0
  %798 = vmatprep.subr.mxu0 0.0
  %799 = vmatpush1.msra.mxu0 0.0
  %800 = vmatprep.subr.mxu0 0.0
  %801 = vmatpush1.msra.mxu0 0.0
  %802 = vmatprep.subr.mxu0 0.0
  %803 = vmatpush1.msra.mxu0 0.0
  %804 = vmatprep.subr.mxu0 0.0
  %805 = vmatpush1.msra.mxu0 0.0
  %806 = vmatprep.subr.mxu0 0.0
  %807 = vmatpush1.msra.mxu0 0.0
  %808 = vmatprep.subr.mxu0 0.0
  %809 = vmatpush1.msra.mxu0 0.0
  %810 = vmatprep.subr.mxu0 0.0
  %811 = vmatpush1.msra.mxu0 0.0
  %812 = vmatprep.subr.mxu0 0.0
  %813 = vmatpush1.msra.mxu0 0.0
  %814 = vmatprep.subr.mxu0 0.0
  %815 = vmatpush1.msra.mxu0 0.0
  %816 = vmatprep.subr.mxu0 0.0
  %817 = vmatpush1.msra.mxu0 0.0
  %818 = vmatprep.subr.mxu0 0.0
  %819 = vmatpush1.msra.mxu0 0.0
  %820 = vmatprep.mubr.f32.mxu0 0.0
  %821 = vmatmul.mubr.f32.gmra.mrb[0].mxu0 %v754
  %v822 = vpop.f32.mrb[0].mxu0
  %v823 = vadd.f32 0.0, %v822
  %v824 = vpop.f32.mrb[0].mxu0
  %825 = vdwg.mxu0
  %v827 = vlaneseq
  %v828 = vshrl.u32 %v827, 7
  %v829 = vsub.s32 0, %v828
  %v830 = vrot.slane %v750, %v829
  %v832 = vadd.f32 %v387, %v830
  %v833 = vadd.f32 %v832, %v823
  %v834 = vmul.f32 %v833, 0.5
  %v835 = vtanh.pop %v834
  %v836 = vadd.f32 %v835, 1.0
  %v837 = vmul.f32 %v836, 0.5
  %v839 = vlaneseq
  %v840 = vshrl.u32 %v839, 7
  %v841 = vsub.s32 0, %v840
  %v842 = vrot.slane %v751, %v841
  %843 = vrot.lane.b32.xlu0 %v842, 64
  %v844 = vpop.permute.xlu0 %843
  %v846 = vadd.f32 %v823, %v844
  %848 = vrot.lane.b32.xlu0 %v846, 64
  %v849 = vpop.permute.xlu0 %848
  %v851 = vmul.f32 %v837, %v849
  %853 = vrot.lane.b32.xlu0 %v851, 64
  %v854 = vpop.permute.xlu0 %853
  %v856 = vadd.f32 %v832, %v854
  %v857 = vtanh.pop %v856
  %v858 = vsub.f32 0.0, %v857
  %860 = vrot.lane.b32.xlu0 %v858, 96
  %v861 = vpop.permute.xlu0 %860
  %v863 = vmul.f32 %v837, %v861
  %865 = vrot.lane.b32.xlu0 %v863, 32
  %v866 = vpop.permute.xlu0 %865
  %v868 = vadd.f32 %v857, %v866
  %870 = vrot.lane.b32.xlu0 %v868, 64
  %v871 = vpop.permute.xlu0 %870
  %873 = vst.msk [vmem:[#allocation2] sm:$0xff] %vm752, %v871
  %v874 = vsel %vm752, %v871, 0
  %876 = vmatprep.subr.mxu0 0.0
  %877 = vmatpush1.msra.mxu0 %v746
  %878 = vmatprep.subr.mxu0 0.0
  %879 = vmatpush1.msra.mxu0 %v747
  %880 = vmatprep.subr.mxu0 0.0
  %881 = vmatpush1.msra.mxu0 %v748
  %882 = vmatprep.subr.mxu0 0.0
  %883 = vmatpush1.msra.mxu0 %v749
  %884 = vmatprep.subr.mxu0 0.0
  %885 = vmatpush1.msra.mxu0 0.0
  %886 = vmatprep.subr.mxu0 0.0
  %887 = vmatpush1.msra.mxu0 0.0
  %888 = vmatprep.subr.mxu0 0.0
  %889 = vmatpush1.msra.mxu0 0.0
  %890 = vmatprep.subr.mxu0 0.0
  %891 = vmatpush1.msra.mxu0 0.0
  %892 = vmatprep.subr.mxu0 0.0
  %893 = vmatpush1.msra.mxu0 0.0
  %894 = vmatprep.subr.mxu0 0.0
  %895 = vmatpush1.msra.mxu0 0.0
  %896 = vmatprep.subr.mxu0 0.0
  %897 = vmatpush1.msra.mxu0 0.0
  %898 = vmatprep.subr.mxu0 0.0
  %899 = vmatpush1.msra.mxu0 0.0
  %900 = vmatprep.subr.mxu0 0.0
  %901 = vmatpush1.msra.mxu0 0.0
  %902 = vmatprep.subr.mxu0 0.0
  %903 = vmatpush1.msra.mxu0 0.0
  %904 = vmatprep.subr.mxu0 0.0
  %905 = vmatpush1.msra.mxu0 0.0
  %906 = vmatprep.subr.mxu0 0.0
  %907 = vmatpush1.msra.mxu0 0.0
  %908 = vmatprep.subr.mxu0 0.0
  %909 = vmatpush1.msra.mxu0 0.0
  %910 = vmatprep.subr.mxu0 0.0
  %911 = vmatpush1.msra.mxu0 0.0
  %912 = vmatprep.subr.mxu0 0.0
  %913 = vmatpush1.msra.mxu0 0.0
  %914 = vmatprep.subr.mxu0 0.0
  %915 = vmatpush1.msra.mxu0 0.0
  %916 = vmatprep.subr.mxu0 0.0
  %917 = vmatpush1.msra.mxu0 0.0
  %918 = vmatprep.subr.mxu0 0.0
  %919 = vmatpush1.msra.mxu0 0.0
  %920 = vmatprep.subr.mxu0 0.0
  %921 = vmatpush1.msra.mxu0 0.0
  %922 = vmatprep.subr.mxu0 0.0
  %923 = vmatpush1.msra.mxu0 0.0
  %924 = vmatprep.subr.mxu0 0.0
  %925 = vmatpush1.msra.mxu0 0.0
  %926 = vmatprep.subr.mxu0 0.0
  %927 = vmatpush1.msra.mxu0 0.0
  %928 = vmatprep.subr.mxu0 0.0
  %929 = vmatpush1.msra.mxu0 0.0
  %930 = vmatprep.subr.mxu0 0.0
  %931 = vmatpush1.msra.mxu0 0.0
  %932 = vmatprep.subr.mxu0 0.0
  %933 = vmatpush1.msra.mxu0 0.0
  %934 = vmatprep.subr.mxu0 0.0
  %935 = vmatpush1.msra.mxu0 0.0
  %936 = vmatprep.subr.mxu0 0.0
  %937 = vmatpush1.msra.mxu0 0.0
  %938 = vmatprep.subr.mxu0 0.0
  %939 = vmatpush1.msra.mxu0 0.0
  %940 = vmatprep.mubr.f32.mxu0 0.0
  %941 = vmatmul.mubr.f32.gmra.mrb[0].mxu0 %v874
  %v942 = vpop.f32.mrb[0].mxu0
  %v943 = vadd.f32 0.0, %v942
  %v944 = vpop.f32.mrb[0].mxu0
  %945 = vdwg.mxu0
  %946 = vrot.lane.b32.xlu0 %v830, 96
  %v947 = vpop.permute.xlu0 %946
  %v949 = vadd.f32 %v387, %v947
  %v950 = vadd.f32 %v389, %v947
  %952 = vrot.lane.b32.xlu0 %v943, 96
  %v953 = vpop.permute.xlu0 %952
  %v955 = vadd.f32 %v949, %v953
  %v956 = vadd.f32 %v950, %v953
  %v957 = vmul.f32 %v955, 0.5
  %v958 = vmul.f32 %v956, 0.5
  %v959 = vtanh.pop %v957
  %v960 = vtanh.pop %v958
  %v961 = vadd.f32 %v959, 1.0
  %v962 = vadd.f32 %v960, 1.0
  %v963 = vmul.f32 %v961, 0.5
  %v964 = vmul.f32 %v962, 0.5
  %v965 = vadd.f32 %v943, %v844
  %967 = vrot.lane.b32.xlu0 %v965, 32
  %v968 = vpop.permute.xlu0 %967
  %v970 = vmul.f32 %v963, %v968
  %972 = vrot.lane.b32.xlu0 %v970, 64
  %v973 = vpop.permute.xlu0 %972
  %v975 = vadd.f32 %v950, %v973
  %v976 = vtanh.pop %v975
  %978 = vrot.lane.b32.xlu0 %v976, 32
  %v979 = vpop.permute.xlu0 %978
  %v981 = vsub.f32 %v868, %v979
  %983 = vrot.lane.b32.xlu0 %v981, 64
  %v984 = vpop.permute.xlu0 %983
  %v986 = vmul.f32 %v964, %v984
  %988 = vrot.lane.b32.xlu0 %v986, 32
  %v989 = vpop.permute.xlu0 %988
  %v991 = vadd.f32 %v976, %v989
  %993 = vrot.lane.b32.xlu0 %v991, 96
  %v994 = vpop.permute.xlu0 %993
  %996 = vst.msk [vmem:[#allocation2 + $0x8] sm:$0xff] %vm752, %v994
  %v997 = vsel %vm752, %v994, 0
  %999 = vmatprep.subr.mxu0 0.0
  %1000 = vmatpush1.msra.mxu0 %v746
  %1001 = vmatprep.subr.mxu0 0.0
  %1002 = vmatpush1.msra.mxu0 %v747
  %1003 = vmatprep.subr.mxu0 0.0
  %1004 = vmatpush1.msra.mxu0 %v748
  %1005 = vmatprep.subr.mxu0 0.0
  %1006 = vmatpush1.msra.mxu0 %v749
  %1007 = vmatprep.subr.mxu0 0.0
  %1008 = vmatpush1.msra.mxu0 0.0
  %1009 = vmatprep.subr.mxu0 0.0
  %1010 = vmatpush1.msra.mxu0 0.0
  %1011 = vmatprep.subr.mxu0 0.0
  %1012 = vmatpush1.msra.mxu0 0.0
  %1013 = vmatprep.subr.mxu0 0.0
  %1014 = vmatpush1.msra.mxu0 0.0
  %1015 = vmatprep.subr.mxu0 0.0
  %1016 = vmatpush1.msra.mxu0 0.0
  %1017 = vmatprep.subr.mxu0 0.0
  %1018 = vmatpush1.msra.mxu0 0.0
  %1019 = vmatprep.subr.mxu0 0.0
  %1020 = vmatpush1.msra.mxu0 0.0
  %1021 = vmatprep.subr.mxu0 0.0
  %1022 = vmatpush1.msra.mxu0 0.0
  %1023 = vmatprep.subr.mxu0 0.0
  %1024 = vmatpush1.msra.mxu0 0.0
  %1025 = vmatprep.subr.mxu0 0.0
  %1026 = vmatpush1.msra.mxu0 0.0
  %1027 = vmatprep.subr.mxu0 0.0
  %1028 = vmatpush1.msra.mxu0 0.0
  %1029 = vmatprep.subr.mxu0 0.0
  %1030 = vmatpush1.msra.mxu0 0.0
  %1031 = vmatprep.subr.mxu0 0.0
  %1032 = vmatpush1.msra.mxu0 0.0
  %1033 = vmatprep.subr.mxu0 0.0
  %1034 = vmatpush1.msra.mxu0 0.0
  %1035 = vmatprep.subr.mxu0 0.0
  %1036 = vmatpush1.msra.mxu0 0.0
  %1037 = vmatprep.subr.mxu0 0.0
  %1038 = vmatpush1.msra.mxu0 0.0
  %1039 = vmatprep.subr.mxu0 0.0
  %1040 = vmatpush1.msra.mxu0 0.0
  %1041 = vmatprep.subr.mxu0 0.0
  %1042 = vmatpush1.msra.mxu0 0.0
  %1043 = vmatprep.subr.mxu0 0.0
  %1044 = vmatpush1.msra.mxu0 0.0
  %1045 = vmatprep.subr.mxu0 0.0
  %1046 = vmatpush1.msra.mxu0 0.0
  %1047 = vmatprep.subr.mxu0 0.0
  %1048 = vmatpush1.msra.mxu0 0.0
  %1049 = vmatprep.subr.mxu0 0.0
  %1050 = vmatpush1.msra.mxu0 0.0
  %1051 = vmatprep.subr.mxu0 0.0
  %1052 = vmatpush1.msra.mxu0 0.0
  %1053 = vmatprep.subr.mxu0 0.0
  %1054 = vmatpush1.msra.mxu0 0.0
  %1055 = vmatprep.subr.mxu0 0.0
  %1056 = vmatpush1.msra.mxu0 0.0
  %1057 = vmatprep.subr.mxu0 0.0
  %1058 = vmatpush1.msra.mxu0 0.0
  %1059 = vmatprep.subr.mxu0 0.0
  %1060 = vmatpush1.msra.mxu0 0.0
  %1061 = vmatprep.subr.mxu0 0.0
  %1062 = vmatpush1.msra.mxu0 0.0
  %1063 = vmatprep.mubr.f32.mxu0 0.0
  %1064 = vmatmul.mubr.f32.gmra.mrb[0].mxu0 %v997
  %v1065 = vpop.f32.mrb[0].mxu0
  %v1066 = vadd.f32 0.0, %v1065
  %v1067 = vpop.f32.mrb[0].mxu0
  %1068 = vdwg.mxu0
  %1069 = vrot.lane.b32.xlu0 %v830, 64
  %v1070 = vpop.permute.xlu0 %1069
  %v1072 = vadd.f32 %v389, %v1070
  %v1073 = vadd.f32 %v458, %v1070
  %1075 = vrot.lane.b32.xlu0 %v1066, 64
  %v1076 = vpop.permute.xlu0 %1075
  %v1078 = vadd.f32 %v1072, %v1076
  %v1079 = vmul.f32 %v1078, 0.5
  %v1080 = vtanh.pop %v1079
  %v1081 = vadd.f32 %v1080, 1.0
  %v1082 = vmul.f32 %v1081, 0.5
  %v1083 = vadd.f32 %v1066, %v844
  %v1084 = vmul.f32 %v1082, %v1083
  %1086 = vrot.lane.b32.xlu0 %v1084, 64
  %v1087 = vpop.permute.xlu0 %1086
  %v1089 = vadd.f32 %v1073, %v1087
  %v1090 = vtanh.pop %v1089
  %1092 = vrot.lane.b32.xlu0 %v1090, 32
  %v1093 = vpop.permute.xlu0 %1092
  %v1095 = vsub.f32 %v991, %v1093
  %1097 = vrot.lane.b32.xlu0 %v1095, 64
  %v1098 = vpop.permute.xlu0 %1097
  %v1100 = vmul.f32 %v1082, %v1098
  %1102 = vrot.lane.b32.xlu0 %v1100, 32
  %v1103 = vpop.permute.xlu0 %1102
  %v1105 = vadd.f32 %v1090, %v1103
  %1106 = vst.msk [vmem:[#allocation2 + $0x10] sm:$0xff] %vm752, %v1105
  %v1108 = vsel %vm752, %v1105, 0
  %1110 = vmatprep.subr.mxu0 0.0
  %1111 = vmatpush1.msra.mxu0 %v746
  %1112 = vmatprep.subr.mxu0 0.0
  %1113 = vmatpush1.msra.mxu0 %v747
  %1114 = vmatprep.subr.mxu0 0.0
  %1115 = vmatpush1.msra.mxu0 %v748
  %1116 = vmatprep.subr.mxu0 0.0
  %1117 = vmatpush1.msra.mxu0 %v749
  %1118 = vmatprep.subr.mxu0 0.0
  %1119 = vmatpush1.msra.mxu0 0.0
  %1120 = vmatprep.subr.mxu0 0.0
  %1121 = vmatpush1.msra.mxu0 0.0
  %1122 = vmatprep.subr.mxu0 0.0
  %1123 = vmatpush1.msra.mxu0 0.0
  %1124 = vmatprep.subr.mxu0 0.0
  %1125 = vmatpush1.msra.mxu0 0.0
  %1126 = vmatprep.subr.mxu0 0.0
  %1127 = vmatpush1.msra.mxu0 0.0
  %1128 = vmatprep.subr.mxu0 0.0
  %1129 = vmatpush1.msra.mxu0 0.0
  %1130 = vmatprep.subr.mxu0 0.0
  %1131 = vmatpush1.msra.mxu0 0.0
  %1132 = vmatprep.subr.mxu0 0.0
  %1133 = vmatpush1.msra.mxu0 0.0
  %1134 = vmatprep.subr.mxu0 0.0
  %1135 = vmatpush1.msra.mxu0 0.0
  %1136 = vmatprep.subr.mxu0 0.0
  %1137 = vmatpush1.msra.mxu0 0.0
  %1138 = vmatprep.subr.mxu0 0.0
  %1139 = vmatpush1.msra.mxu0 0.0
  %1140 = vmatprep.subr.mxu0 0.0
  %1141 = vmatpush1.msra.mxu0 0.0
  %1142 = vmatprep.subr.mxu0 0.0
  %1143 = vmatpush1.msra.mxu0 0.0
  %1144 = vmatprep.subr.mxu0 0.0
  %1145 = vmatpush1.msra.mxu0 0.0
  %1146 = vmatprep.subr.mxu0 0.0
  %1147 = vmatpush1.msra.mxu0 0.0
  %1148 = vmatprep.subr.mxu0 0.0
  %1149 = vmatpush1.msra.mxu0 0.0
  %1150 = vmatprep.subr.mxu0 0.0
  %1151 = vmatpush1.msra.mxu0 0.0
  %1152 = vmatprep.subr.mxu0 0.0
  %1153 = vmatpush1.msra.mxu0 0.0
  %1154 = vmatprep.subr.mxu0 0.0
  %1155 = vmatpush1.msra.mxu0 0.0
  %1156 = vmatprep.subr.mxu0 0.0
  %1157 = vmatpush1.msra.mxu0 0.0
  %1158 = vmatprep.subr.mxu0 0.0
  %1159 = vmatpush1.msra.mxu0 0.0
  %1160 = vmatprep.subr.mxu0 0.0
  %1161 = vmatpush1.msra.mxu0 0.0
  %1162 = vmatprep.subr.mxu0 0.0
  %1163 = vmatpush1.msra.mxu0 0.0
  %1164 = vmatprep.subr.mxu0 0.0
  %1165 = vmatpush1.msra.mxu0 0.0
  %1166 = vmatprep.subr.mxu0 0.0
  %1167 = vmatpush1.msra.mxu0 0.0
  %1168 = vmatprep.subr.mxu0 0.0
  %1169 = vmatpush1.msra.mxu0 0.0
  %1170 = vmatprep.subr.mxu0 0.0
  %1171 = vmatpush1.msra.mxu0 0.0
  %1172 = vmatprep.subr.mxu0 0.0
  %1173 = vmatpush1.msra.mxu0 0.0
  %1174 = vmatprep.mubr.f32.mxu0 0.0
  %1175 = vmatmul.mubr.f32.gmra.mrb[0].mxu0 %v1108
  %v1176 = vpop.f32.mrb[0].mxu0
  %v1177 = vadd.f32 0.0, %v1176
  %v1178 = vpop.f32.mrb[0].mxu0
  %1179 = vdwg.mxu0
  %1180 = vrot.lane.b32.xlu0 %v830, 32
  %v1181 = vpop.permute.xlu0 %1180
  %v1183 = vadd.f32 %v458, %v1181
  %1185 = vrot.lane.b32.xlu0 %v1177, 32
  %v1186 = vpop.permute.xlu0 %1185
  %v1188 = vadd.f32 %v1183, %v1186
  %v1189 = vmul.f32 %v1188, 0.5
  %v1190 = vtanh.pop %v1189
  %v1191 = vadd.f32 %v1190, 1.0
  %v1192 = vmul.f32 %v1191, 0.5
  %v1193 = vadd.f32 %v1177, %v844
  %1195 = vrot.lane.b32.xlu0 %v1193, 96
  %v1196 = vpop.permute.xlu0 %1195
  %v1198 = vmul.f32 %v1192, %v1196
  %1200 = vrot.lane.b32.xlu0 %v1198, 64
  %v1201 = vpop.permute.xlu0 %1200
  %v1203 = vadd.f32 %v1183, %v1201
  %v1204 = vtanh.pop %v1203
  %1206 = vrot.lane.b32.xlu0 %v1204, 32
  %v1207 = vpop.permute.xlu0 %1206
  %v1209 = vsub.f32 %v1105, %v1207
  %1211 = vrot.lane.b32.xlu0 %v1209, 64
  %v1212 = vpop.permute.xlu0 %1211
  %v1214 = vmul.f32 %v1192, %v1212
  %1216 = vrot.lane.b32.xlu0 %v1214, 32
  %v1217 = vpop.permute.xlu0 %1216
  %v1219 = vadd.f32 %v1204, %v1217
  %1221 = vrot.lane.b32.xlu0 %v1219, 32
  %v1222 = vpop.permute.xlu0 %1221
  %1224 = vst.msk [vmem:[#allocation2 + $0x18] sm:$0xff] %vm752, %v1222
  %v1225 = vsel %vm752, %v1222, 0
  %1227 = vmatprep.subr.mxu0 0.0
  %1228 = vmatpush1.msra.mxu0 %v746
  %1229 = vmatprep.subr.mxu0 0.0
  %1230 = vmatpush1.msra.mxu0 %v747
  %1231 = vmatprep.subr.mxu0 0.0
  %1232 = vmatpush1.msra.mxu0 %v748
  %1233 = vmatprep.subr.mxu0 0.0
  %1234 = vmatpush1.msra.mxu0 %v749
  %1235 = vmatprep.subr.mxu0 0.0
  %1236 = vmatpush1.msra.mxu0 0.0
  %1237 = vmatprep.subr.mxu0 0.0
  %1238 = vmatpush1.msra.mxu0 0.0
  %1239 = vmatprep.subr.mxu0 0.0
  %1240 = vmatpush1.msra.mxu0 0.0
  %1241 = vmatprep.subr.mxu0 0.0
  %1242 = vmatpush1.msra.mxu0 0.0
  %1243 = vmatprep.subr.mxu0 0.0
  %1244 = vmatpush1.msra.mxu0 0.0
  %1245 = vmatprep.subr.mxu0 0.0
  %1246 = vmatpush1.msra.mxu0 0.0
  %1247 = vmatprep.subr.mxu0 0.0
  %1248 = vmatpush1.msra.mxu0 0.0
  %1249 = vmatprep.subr.mxu0 0.0
  %1250 = vmatpush1.msra.mxu0 0.0
  %1251 = vmatprep.subr.mxu0 0.0
  %1252 = vmatpush1.msra.mxu0 0.0
  %1253 = vmatprep.subr.mxu0 0.0
  %1254 = vmatpush1.msra.mxu0 0.0
  %1255 = vmatprep.subr.mxu0 0.0
  %1256 = vmatpush1.msra.mxu0 0.0
  %1257 = vmatprep.subr.mxu0 0.0
  %1258 = vmatpush1.msra.mxu0 0.0
  %1259 = vmatprep.subr.mxu0 0.0
  %1260 = vmatpush1.msra.mxu0 0.0
  %1261 = vmatprep.subr.mxu0 0.0
  %1262 = vmatpush1.msra.mxu0 0.0
  %1263 = vmatprep.subr.mxu0 0.0
  %1264 = vmatpush1.msra.mxu0 0.0
  %1265 = vmatprep.subr.mxu0 0.0
  %1266 = vmatpush1.msra.mxu0 0.0
  %1267 = vmatprep.subr.mxu0 0.0
  %1268 = vmatpush1.msra.mxu0 0.0
  %1269 = vmatprep.subr.mxu0 0.0
  %1270 = vmatpush1.msra.mxu0 0.0
  %1271 = vmatprep.subr.mxu0 0.0
  %1272 = vmatpush1.msra.mxu0 0.0
  %1273 = vmatprep.subr.mxu0 0.0
  %1274 = vmatpush1.msra.mxu0 0.0
  %1275 = vmatprep.subr.mxu0 0.0
  %1276 = vmatpush1.msra.mxu0 0.0
  %1277 = vmatprep.subr.mxu0 0.0
  %1278 = vmatpush1.msra.mxu0 0.0
  %1279 = vmatprep.subr.mxu0 0.0
  %1280 = vmatpush1.msra.mxu0 0.0
  %1281 = vmatprep.subr.mxu0 0.0
  %1282 = vmatpush1.msra.mxu0 0.0
  %1283 = vmatprep.subr.mxu0 0.0
  %1284 = vmatpush1.msra.mxu0 0.0
  %1285 = vmatprep.subr.mxu0 0.0
  %1286 = vmatpush1.msra.mxu0 0.0
  %1287 = vmatprep.subr.mxu0 0.0
  %1288 = vmatpush1.msra.mxu0 0.0
  %1289 = vmatprep.subr.mxu0 0.0
  %1290 = vmatpush1.msra.mxu0 0.0
  %1291 = vmatprep.mubr.f32.mxu0 0.0
  %1292 = vmatmul.mubr.f32.gmra.mrb[0].mxu0 %v1225
  %v1293 = vpop.f32.mrb[0].mxu0
  %v1294 = vadd.f32 0.0, %v1293
  %v1295 = vpop.f32.mrb[0].mxu0
  %1296 = vdwg.mxu0
  %v1297 = vadd.f32 %v460, %v830
  %v1298 = vadd.f32 %v1297, %v1294
  %v1299 = vmul.f32 %v1298, 0.5
  %v1300 = vtanh.pop %v1299
  %v1301 = vadd.f32 %v1300, 1.0
  %v1302 = vmul.f32 %v1301, 0.5
  %v1303 = vadd.f32 %v1294, %v844
  %1305 = vrot.lane.b32.xlu0 %v1303, 64
  %v1306 = vpop.permute.xlu0 %1305
  %v1308 = vmul.f32 %v1302, %v1306
  %1310 = vrot.lane.b32.xlu0 %v1308, 64
  %v1311 = vpop.permute.xlu0 %1310
  %v1313 = vadd.f32 %v1297, %v1311
  %v1314 = vtanh.pop %v1313
  %1316 = vrot.lane.b32.xlu0 %v1314, 32
  %v1317 = vpop.permute.xlu0 %1316
  %v1319 = vsub.f32 %v1219, %v1317
  %1321 = vrot.lane.b32.xlu0 %v1319, 64
  %v1322 = vpop.permute.xlu0 %1321
  %v1324 = vmul.f32 %v1302, %v1322
  %1326 = vrot.lane.b32.xlu0 %v1324, 32
  %v1327 = vpop.permute.xlu0 %1326
  %v1329 = vadd.f32 %v1314, %v1327
  %1331 = vrot.lane.b32.xlu0 %v1329, 64
  %v1332 = vpop.permute.xlu0 %1331
  %1334 = vst.msk [vmem:[#allocation2 + $0x20] sm:$0xff] %vm752, %v1332
  %v1335 = vsel %vm752, %v1332, 0
  %1337 = vmatprep.subr.mxu0 0.0
  %1338 = vmatpush1.msra.mxu0 %v746
  %1339 = vmatprep.subr.mxu0 0.0
  %1340 = vmatpush1.msra.mxu0 %v747
  %1341 = vmatprep.subr.mxu0 0.0
  %1342 = vmatpush1.msra.mxu0 %v748
  %1343 = vmatprep.subr.mxu0 0.0
  %1344 = vmatpush1.msra.mxu0 %v749
  %1345 = vmatprep.subr.mxu0 0.0
  %1346 = vmatpush1.msra.mxu0 0.0
  %1347 = vmatprep.subr.mxu0 0.0
  %1348 = vmatpush1.msra.mxu0 0.0
  %1349 = vmatprep.subr.mxu0 0.0
  %1350 = vmatpush1.msra.mxu0 0.0
  %1351 = vmatprep.subr.mxu0 0.0
  %1352 = vmatpush1.msra.mxu0 0.0
  %1353 = vmatprep.subr.mxu0 0.0
  %1354 = vmatpush1.msra.mxu0 0.0
  %1355 = vmatprep.subr.mxu0 0.0
  %1356 = vmatpush1.msra.mxu0 0.0
  %1357 = vmatprep.subr.mxu0 0.0
  %1358 = vmatpush1.msra.mxu0 0.0
  %1359 = vmatprep.subr.mxu0 0.0
  %1360 = vmatpush1.msra.mxu0 0.0
  %1361 = vmatprep.subr.mxu0 0.0
  %1362 = vmatpush1.msra.mxu0 0.0
  %1363 = vmatprep.subr.mxu0 0.0
  %1364 = vmatpush1.msra.mxu0 0.0
  %1365 = vmatprep.subr.mxu0 0.0
  %1366 = vmatpush1.msra.mxu0 0.0
  %1367 = vmatprep.subr.mxu0 0.0
  %1368 = vmatpush1.msra.mxu0 0.0
  %1369 = vmatprep.subr.mxu0 0.0
  %1370 = vmatpush1.msra.mxu0 0.0
  %1371 = vmatprep.subr.mxu0 0.0
  %1372 = vmatpush1.msra.mxu0 0.0
  %1373 = vmatprep.subr.mxu0 0.0
  %1374 = vmatpush1.msra.mxu0 0.0
  %1375 = vmatprep.subr.mxu0 0.0
  %1376 = vmatpush1.msra.mxu0 0.0
  %1377 = vmatprep.subr.mxu0 0.0
  %1378 = vmatpush1.msra.mxu0 0.0
  %1379 = vmatprep.subr.mxu0 0.0
  %1380 = vmatpush1.msra.mxu0 0.0
  %1381 = vmatprep.subr.mxu0 0.0
  %1382 = vmatpush1.msra.mxu0 0.0
  %1383 = vmatprep.subr.mxu0 0.0
  %1384 = vmatpush1.msra.mxu0 0.0
  %1385 = vmatprep.subr.mxu0 0.0
  %1386 = vmatpush1.msra.mxu0 0.0
  %1387 = vmatprep.subr.mxu0 0.0
  %1388 = vmatpush1.msra.mxu0 0.0
  %1389 = vmatprep.subr.mxu0 0.0
  %1390 = vmatpush1.msra.mxu0 0.0
  %1391 = vmatprep.subr.mxu0 0.0
  %1392 = vmatpush1.msra.mxu0 0.0
  %1393 = vmatprep.subr.mxu0 0.0
  %1394 = vmatpush1.msra.mxu0 0.0
  %1395 = vmatprep.subr.mxu0 0.0
  %1396 = vmatpush1.msra.mxu0 0.0
  %1397 = vmatprep.subr.mxu0 0.0
  %1398 = vmatpush1.msra.mxu0 0.0
  %1399 = vmatprep.subr.mxu0 0.0
  %1400 = vmatpush1.msra.mxu0 0.0
  %1401 = vmatprep.mubr.f32.mxu0 0.0
  %1402 = vmatmul.mubr.f32.gmra.mrb[0].mxu0 %v1335
  %v1403 = vpop.f32.mrb[0].mxu0
  %v1404 = vadd.f32 0.0, %v1403
  %v1405 = vpop.f32.mrb[0].mxu0
  %1406 = vdwg.mxu0
  %v1407 = vadd.f32 %v460, %v947
  %v1408 = vadd.f32 %v529, %v947
  %1410 = vrot.lane.b32.xlu0 %v1404, 96
  %v1411 = vpop.permute.xlu0 %1410
  %v1413 = vadd.f32 %v1407, %v1411
  %v1414 = vadd.f32 %v1408, %v1411
  %v1415 = vmul.f32 %v1413, 0.5
  %v1416 = vmul.f32 %v1414, 0.5
  %v1417 = vtanh.pop %v1415
  %v1418 = vtanh.pop %v1416
  %v1419 = vadd.f32 %v1417, 1.0
  %v1420 = vadd.f32 %v1418, 1.0
  %v1421 = vmul.f32 %v1419, 0.5
  %v1422 = vmul.f32 %v1420, 0.5
  %v1423 = vadd.f32 %v1404, %v844
  %1425 = vrot.lane.b32.xlu0 %v1423, 32
  %v1426 = vpop.permute.xlu0 %1425
  %v1428 = vmul.f32 %v1421, %v1426
  %1430 = vrot.lane.b32.xlu0 %v1428, 64
  %v1431 = vpop.permute.xlu0 %1430
  %v1433 = vadd.f32 %v1408, %v1431
  %v1434 = vtanh.pop %v1433
  %1436 = vrot.lane.b32.xlu0 %v1434, 32
  %v1437 = vpop.permute.xlu0 %1436
  %v1439 = vsub.f32 %v1329, %v1437
  %1441 = vrot.lane.b32.xlu0 %v1439, 64
  %v1442 = vpop.permute.xlu0 %1441
  %v1444 = vmul.f32 %v1422, %v1442
  %1446 = vrot.lane.b32.xlu0 %v1444, 32
  %v1447 = vpop.permute.xlu0 %1446
  %v1449 = vadd.f32 %v1434, %v1447
  %1451 = vrot.lane.b32.xlu0 %v1449, 96
  %v1452 = vpop.permute.xlu0 %1451
  %1454 = vst.msk [vmem:[#allocation2 + $0x28] sm:$0xff] %vm752, %v1452
  %v1455 = vsel %vm752, %v1452, 0
  %1457 = vmatprep.subr.mxu0 0.0
  %1458 = vmatpush1.msra.mxu0 %v746
  %1459 = vmatprep.subr.mxu0 0.0
  %1460 = vmatpush1.msra.mxu0 %v747
  %1461 = vmatprep.subr.mxu0 0.0
  %1462 = vmatpush1.msra.mxu0 %v748
  %1463 = vmatprep.subr.mxu0 0.0
  %1464 = vmatpush1.msra.mxu0 %v749
  %1465 = vmatprep.subr.mxu0 0.0
  %1466 = vmatpush1.msra.mxu0 0.0
  %1467 = vmatprep.subr.mxu0 0.0
  %1468 = vmatpush1.msra.mxu0 0.0
  %1469 = vmatprep.subr.mxu0 0.0
  %1470 = vmatpush1.msra.mxu0 0.0
  %1471 = vmatprep.subr.mxu0 0.0
  %1472 = vmatpush1.msra.mxu0 0.0
  %1473 = vmatprep.subr.mxu0 0.0
  %1474 = vmatpush1.msra.mxu0 0.0
  %1475 = vmatprep.subr.mxu0 0.0
  %1476 = vmatpush1.msra.mxu0 0.0
  %1477 = vmatprep.subr.mxu0 0.0
  %1478 = vmatpush1.msra.mxu0 0.0
  %1479 = vmatprep.subr.mxu0 0.0
  %1480 = vmatpush1.msra.mxu0 0.0
  %1481 = vmatprep.subr.mxu0 0.0
  %1482 = vmatpush1.msra.mxu0 0.0
  %1483 = vmatprep.subr.mxu0 0.0
  %1484 = vmatpush1.msra.mxu0 0.0
  %1485 = vmatprep.subr.mxu0 0.0
  %1486 = vmatpush1.msra.mxu0 0.0
  %1487 = vmatprep.subr.mxu0 0.0
  %1488 = vmatpush1.msra.mxu0 0.0
  %1489 = vmatprep.subr.mxu0 0.0
  %1490 = vmatpush1.msra.mxu0 0.0
  %1491 = vmatprep.subr.mxu0 0.0
  %1492 = vmatpush1.msra.mxu0 0.0
  %1493 = vmatprep.subr.mxu0 0.0
  %1494 = vmatpush1.msra.mxu0 0.0
  %1495 = vmatprep.subr.mxu0 0.0
  %1496 = vmatpush1.msra.mxu0 0.0
  %1497 = vmatprep.subr.mxu0 0.0
  %1498 = vmatpush1.msra.mxu0 0.0
  %1499 = vmatprep.subr.mxu0 0.0
  %1500 = vmatpush1.msra.mxu0 0.0
  %1501 = vmatprep.subr.mxu0 0.0
  %1502 = vmatpush1.msra.mxu0 0.0
  %1503 = vmatprep.subr.mxu0 0.0
  %1504 = vmatpush1.msra.mxu0 0.0
  %1505 = vmatprep.subr.mxu0 0.0
  %1506 = vmatpush1.msra.mxu0 0.0
  %1507 = vmatprep.subr.mxu0 0.0
  %1508 = vmatpush1.msra.mxu0 0.0
  %1509 = vmatprep.subr.mxu0 0.0
  %1510 = vmatpush1.msra.mxu0 0.0
  %1511 = vmatprep.subr.mxu0 0.0
  %1512 = vmatpush1.msra.mxu0 0.0
  %1513 = vmatprep.subr.mxu0 0.0
  %1514 = vmatpush1.msra.mxu0 0.0
  %1515 = vmatprep.subr.mxu0 0.0
  %1516 = vmatpush1.msra.mxu0 0.0
  %1517 = vmatprep.subr.mxu0 0.0
  %1518 = vmatpush1.msra.mxu0 0.0
  %1519 = vmatprep.subr.mxu0 0.0
  %1520 = vmatpush1.msra.mxu0 0.0
  %1521 = vmatprep.mubr.f32.mxu0 0.0
  %1522 = vmatmul.mubr.f32.gmra.mrb[0].mxu0 %v1455
  %v1523 = vpop.f32.mrb[0].mxu0
  %v1524 = vadd.f32 0.0, %v1523
  %v1525 = vpop.f32.mrb[0].mxu0
  %1526 = vdwg.mxu0
  %v1527 = vadd.f32 %v529, %v1070
  %v1528 = vadd.f32 %v531, %v1070
  %1530 = vrot.lane.b32.xlu0 %v1524, 64
  %v1531 = vpop.permute.xlu0 %1530
  %v1533 = vadd.f32 %v1527, %v1531
  %v1534 = vmul.f32 %v1533, 0.5
  %v1535 = vtanh.pop %v1534
  %v1536 = vadd.f32 %v1535, 1.0
  %v1537 = vmul.f32 %v1536, 0.5
  %v1538 = vadd.f32 %v1524, %v844
  %v1539 = vmul.f32 %v1537, %v1538
  %1541 = vrot.lane.b32.xlu0 %v1539, 64
  %v1542 = vpop.permute.xlu0 %1541
  %v1544 = vadd.f32 %v1528, %v1542
  %v1545 = vtanh.pop %v1544
  %1547 = vrot.lane.b32.xlu0 %v1545, 32
  %v1548 = vpop.permute.xlu0 %1547
  %v1550 = vsub.f32 %v1449, %v1548
  %1552 = vrot.lane.b32.xlu0 %v1550, 64
  %v1553 = vpop.permute.xlu0 %1552
  %v1555 = vmul.f32 %v1537, %v1553
  %1557 = vrot.lane.b32.xlu0 %v1555, 32
  %v1558 = vpop.permute.xlu0 %1557
  %v1560 = vadd.f32 %v1545, %v1558
  %1561 = vst.msk [vmem:[#allocation2 + $0x30] sm:$0xff] %vm752, %v1560
  %v1563 = vsel %vm752, %v1560, 0
  %1565 = vmatprep.subr.mxu0 0.0
  %1566 = vmatpush1.msra.mxu0 %v746
  %1567 = vmatprep.subr.mxu0 0.0
  %1568 = vmatpush1.msra.mxu0 %v747
  %1569 = vmatprep.subr.mxu0 0.0
  %1570 = vmatpush1.msra.mxu0 %v748
  %1571 = vmatprep.subr.mxu0 0.0
  %1572 = vmatpush1.msra.mxu0 %v749
  %1573 = vmatprep.subr.mxu0 0.0
  %1574 = vmatpush1.msra.mxu0 0.0
  %1575 = vmatprep.subr.mxu0 0.0
  %1576 = vmatpush1.msra.mxu0 0.0
  %1577 = vmatprep.subr.mxu0 0.0
  %1578 = vmatpush1.msra.mxu0 0.0
  %1579 = vmatprep.subr.mxu0 0.0
  %1580 = vmatpush1.msra.mxu0 0.0
  %1581 = vmatprep.subr.mxu0 0.0
  %1582 = vmatpush1.msra.mxu0 0.0
  %1583 = vmatprep.subr.mxu0 0.0
  %1584 = vmatpush1.msra.mxu0 0.0
  %1585 = vmatprep.subr.mxu0 0.0
  %1586 = vmatpush1.msra.mxu0 0.0
  %1587 = vmatprep.subr.mxu0 0.0
  %1588 = vmatpush1.msra.mxu0 0.0
  %1589 = vmatprep.subr.mxu0 0.0
  %1590 = vmatpush1.msra.mxu0 0.0
  %1591 = vmatprep.subr.mxu0 0.0
  %1592 = vmatpush1.msra.mxu0 0.0
  %1593 = vmatprep.subr.mxu0 0.0
  %1594 = vmatpush1.msra.mxu0 0.0
  %1595 = vmatprep.subr.mxu0 0.0
  %1596 = vmatpush1.msra.mxu0 0.0
  %1597 = vmatprep.subr.mxu0 0.0
  %1598 = vmatpush1.msra.mxu0 0.0
  %1599 = vmatprep.subr.mxu0 0.0
  %1600 = vmatpush1.msra.mxu0 0.0
  %1601 = vmatprep.subr.mxu0 0.0
  %1602 = vmatpush1.msra.mxu0 0.0
  %1603 = vmatprep.subr.mxu0 0.0
  %1604 = vmatpush1.msra.mxu0 0.0
  %1605 = vmatprep.subr.mxu0 0.0
  %1606 = vmatpush1.msra.mxu0 0.0
  %1607 = vmatprep.subr.mxu0 0.0
  %1608 = vmatpush1.msra.mxu0 0.0
  %1609 = vmatprep.subr.mxu0 0.0
  %1610 = vmatpush1.msra.mxu0 0.0
  %1611 = vmatprep.subr.mxu0 0.0
  %1612 = vmatpush1.msra.mxu0 0.0
  %1613 = vmatprep.subr.mxu0 0.0
  %1614 = vmatpush1.msra.mxu0 0.0
  %1615 = vmatprep.subr.mxu0 0.0
  %1616 = vmatpush1.msra.mxu0 0.0
  %1617 = vmatprep.subr.mxu0 0.0
  %1618 = vmatpush1.msra.mxu0 0.0
  %1619 = vmatprep.subr.mxu0 0.0
  %1620 = vmatpush1.msra.mxu0 0.0
  %1621 = vmatprep.subr.mxu0 0.0
  %1622 = vmatpush1.msra.mxu0 0.0
  %1623 = vmatprep.subr.mxu0 0.0
  %1624 = vmatpush1.msra.mxu0 0.0
  %1625 = vmatprep.subr.mxu0 0.0
  %1626 = vmatpush1.msra.mxu0 0.0
  %1627 = vmatprep.subr.mxu0 0.0
  %1628 = vmatpush1.msra.mxu0 0.0
  %1629 = vmatprep.mubr.f32.mxu0 0.0
  %1630 = vmatmul.mubr.f32.gmra.mrb[0].mxu0 %v1563
  %v1631 = vpop.f32.mrb[0].mxu0
  %v1632 = vadd.f32 0.0, %v1631
  %v1633 = vpop.f32.mrb[0].mxu0
  %1634 = vdwg.mxu0
  %v1635 = vadd.f32 %v531, %v1181
  %1637 = vrot.lane.b32.xlu0 %v1632, 32
  %v1638 = vpop.permute.xlu0 %1637
  %v1640 = vadd.f32 %v1635, %v1638
  %v1641 = vmul.f32 %v1640, 0.5
  %v1642 = vtanh.pop %v1641
  %v1643 = vadd.f32 %v1642, 1.0
  %v1644 = vmul.f32 %v1643, 0.5
  %v1645 = vadd.f32 %v1632, %v844
  %1647 = vrot.lane.b32.xlu0 %v1645, 96
  %v1648 = vpop.permute.xlu0 %1647
  %v1650 = vmul.f32 %v1644, %v1648
  %1652 = vrot.lane.b32.xlu0 %v1650, 64
  %v1653 = vpop.permute.xlu0 %1652
  %v1655 = vadd.f32 %v1635, %v1653
  %v1656 = vtanh.pop %v1655
  %1658 = vrot.lane.b32.xlu0 %v1656, 32
  %v1659 = vpop.permute.xlu0 %1658
  %v1661 = vsub.f32 %v1560, %v1659
  %1663 = vrot.lane.b32.xlu0 %v1661, 64
  %v1664 = vpop.permute.xlu0 %1663
  %v1666 = vmul.f32 %v1644, %v1664
  %1668 = vrot.lane.b32.xlu0 %v1666, 32
  %v1669 = vpop.permute.xlu0 %1668
  %v1671 = vadd.f32 %v1656, %v1669
  %1673 = vrot.lane.b32.xlu0 %v1671, 32
  %v1674 = vpop.permute.xlu0 %1673
  %1676 = vst.msk [vmem:[#allocation2 + $0x38] sm:$0xff] %vm752, %v1674
  %v1677 = vsel %vm752, %v1674, 0
  %1679 = vmatprep.subr.mxu0 0.0
  %1680 = vmatpush1.msra.mxu0 %v746
  %1681 = vmatprep.subr.mxu0 0.0
  %1682 = vmatpush1.msra.mxu0 %v747
  %1683 = vmatprep.subr.mxu0 0.0
  %1684 = vmatpush1.msra.mxu0 %v748
  %1685 = vmatprep.subr.mxu0 0.0
  %1686 = vmatpush1.msra.mxu0 %v749
  %1687 = vmatprep.subr.mxu0 0.0
  %1688 = vmatpush1.msra.mxu0 0.0
  %1689 = vmatprep.subr.mxu0 0.0
  %1690 = vmatpush1.msra.mxu0 0.0
  %1691 = vmatprep.subr.mxu0 0.0
  %1692 = vmatpush1.msra.mxu0 0.0
  %1693 = vmatprep.subr.mxu0 0.0
  %1694 = vmatpush1.msra.mxu0 0.0
  %1695 = vmatprep.subr.mxu0 0.0
  %1696 = vmatpush1.msra.mxu0 0.0
  %1697 = vmatprep.subr.mxu0 0.0
  %1698 = vmatpush1.msra.mxu0 0.0
  %1699 = vmatprep.subr.mxu0 0.0
  %1700 = vmatpush1.msra.mxu0 0.0
  %1701 = vmatprep.subr.mxu0 0.0
  %1702 = vmatpush1.msra.mxu0 0.0
  %1703 = vmatprep.subr.mxu0 0.0
  %1704 = vmatpush1.msra.mxu0 0.0
  %1705 = vmatprep.subr.mxu0 0.0
  %1706 = vmatpush1.msra.mxu0 0.0
  %1707 = vmatprep.subr.mxu0 0.0
  %1708 = vmatpush1.msra.mxu0 0.0
  %1709 = vmatprep.subr.mxu0 0.0
  %1710 = vmatpush1.msra.mxu0 0.0
  %1711 = vmatprep.subr.mxu0 0.0
  %1712 = vmatpush1.msra.mxu0 0.0
  %1713 = vmatprep.subr.mxu0 0.0
  %1714 = vmatpush1.msra.mxu0 0.0
  %1715 = vmatprep.subr.mxu0 0.0
  %1716 = vmatpush1.msra.mxu0 0.0
  %1717 = vmatprep.subr.mxu0 0.0
  %1718 = vmatpush1.msra.mxu0 0.0
  %1719 = vmatprep.subr.mxu0 0.0
  %1720 = vmatpush1.msra.mxu0 0.0
  %1721 = vmatprep.subr.mxu0 0.0
  %1722 = vmatpush1.msra.mxu0 0.0
  %1723 = vmatprep.subr.mxu0 0.0
  %1724 = vmatpush1.msra.mxu0 0.0
  %1725 = vmatprep.subr.mxu0 0.0
  %1726 = vmatpush1.msra.mxu0 0.0
  %1727 = vmatprep.subr.mxu0 0.0
  %1728 = vmatpush1.msra.mxu0 0.0
  %1729 = vmatprep.subr.mxu0 0.0
  %1730 = vmatpush1.msra.mxu0 0.0
  %1731 = vmatprep.subr.mxu0 0.0
  %1732 = vmatpush1.msra.mxu0 0.0
  %1733 = vmatprep.subr.mxu0 0.0
  %1734 = vmatpush1.msra.mxu0 0.0
  %1735 = vmatprep.subr.mxu0 0.0
  %1736 = vmatpush1.msra.mxu0 0.0
  %1737 = vmatprep.subr.mxu0 0.0
  %1738 = vmatpush1.msra.mxu0 0.0
  %1739 = vmatprep.subr.mxu0 0.0
  %1740 = vmatpush1.msra.mxu0 0.0
  %1741 = vmatprep.subr.mxu0 0.0
  %1742 = vmatpush1.msra.mxu0 0.0
  %1743 = vmatprep.mubr.f32.mxu0 0.0
  %1744 = vmatmul.mubr.f32.gmra.mrb[0].mxu0 %v1677
  %v1745 = vpop.f32.mrb[0].mxu0
  %v1746 = vadd.f32 0.0, %v1745
  %v1747 = vpop.f32.mrb[0].mxu0
  %1748 = vdwg.mxu0
  %v1749 = vadd.f32 %v600, %v830
  %v1750 = vadd.f32 %v1749, %v1746
  %v1751 = vmul.f32 %v1750, 0.5
  %v1752 = vtanh.pop %v1751
  %v1753 = vadd.f32 %v1752, 1.0
  %v1754 = vmul.f32 %v1753, 0.5
  %v1755 = vadd.f32 %v1746, %v844
  %1757 = vrot.lane.b32.xlu0 %v1755, 64
  %v1758 = vpop.permute.xlu0 %1757
  %v1760 = vmul.f32 %v1754, %v1758
  %1762 = vrot.lane.b32.xlu0 %v1760, 64
  %v1763 = vpop.permute.xlu0 %1762
  %v1765 = vadd.f32 %v1749, %v1763
  %v1766 = vtanh.pop %v1765
  %1768 = vrot.lane.b32.xlu0 %v1766, 32
  %v1769 = vpop.permute.xlu0 %1768
  %v1771 = vsub.f32 %v1671, %v1769
  %1773 = vrot.lane.b32.xlu0 %v1771, 64
  %v1774 = vpop.permute.xlu0 %1773
  %v1776 = vmul.f32 %v1754, %v1774
  %1778 = vrot.lane.b32.xlu0 %v1776, 32
  %v1779 = vpop.permute.xlu0 %1778
  %v1781 = vadd.f32 %v1766, %v1779
  %1783 = vrot.lane.b32.xlu0 %v1781, 64
  %v1784 = vpop.permute.xlu0 %1783
  %1786 = vst.msk [vmem:[#allocation2 + $0x40] sm:$0xff] %vm752, %v1784
  %v1787 = vsel %vm752, %v1784, 0
  %1789 = vmatprep.subr.mxu0 0.0
  %1790 = vmatpush1.msra.mxu0 %v746
  %1791 = vmatprep.subr.mxu0 0.0
  %1792 = vmatpush1.msra.mxu0 %v747
  %1793 = vmatprep.subr.mxu0 0.0
  %1794 = vmatpush1.msra.mxu0 %v748
  %1795 = vmatprep.subr.mxu0 0.0
  %1796 = vmatpush1.msra.mxu0 %v749
  %1797 = vmatprep.subr.mxu0 0.0
  %1798 = vmatpush1.msra.mxu0 0.0
  %1799 = vmatprep.subr.mxu0 0.0
  %1800 = vmatpush1.msra.mxu0 0.0
  %1801 = vmatprep.subr.mxu0 0.0
  %1802 = vmatpush1.msra.mxu0 0.0
  %1803 = vmatprep.subr.mxu0 0.0
  %1804 = vmatpush1.msra.mxu0 0.0
  %1805 = vmatprep.subr.mxu0 0.0
  %1806 = vmatpush1.msra.mxu0 0.0
  %1807 = vmatprep.subr.mxu0 0.0
  %1808 = vmatpush1.msra.mxu0 0.0
  %1809 = vmatprep.subr.mxu0 0.0
  %1810 = vmatpush1.msra.mxu0 0.0
  %1811 = vmatprep.subr.mxu0 0.0
  %1812 = vmatpush1.msra.mxu0 0.0
  %1813 = vmatprep.subr.mxu0 0.0
  %1814 = vmatpush1.msra.mxu0 0.0
  %1815 = vmatprep.subr.mxu0 0.0
  %1816 = vmatpush1.msra.mxu0 0.0
  %1817 = vmatprep.subr.mxu0 0.0
  %1818 = vmatpush1.msra.mxu0 0.0
  %1819 = vmatprep.subr.mxu0 0.0
  %1820 = vmatpush1.msra.mxu0 0.0
  %1821 = vmatprep.subr.mxu0 0.0
  %1822 = vmatpush1.msra.mxu0 0.0
  %1823 = vmatprep.subr.mxu0 0.0
  %1824 = vmatpush1.msra.mxu0 0.0
  %1825 = vmatprep.subr.mxu0 0.0
  %1826 = vmatpush1.msra.mxu0 0.0
  %1827 = vmatprep.subr.mxu0 0.0
  %1828 = vmatpush1.msra.mxu0 0.0
  %1829 = vmatprep.subr.mxu0 0.0
  %1830 = vmatpush1.msra.mxu0 0.0
  %1831 = vmatprep.subr.mxu0 0.0
  %1832 = vmatpush1.msra.mxu0 0.0
  %1833 = vmatprep.subr.mxu0 0.0
  %1834 = vmatpush1.msra.mxu0 0.0
  %1835 = vmatprep.subr.mxu0 0.0
  %1836 = vmatpush1.msra.mxu0 0.0
  %1837 = vmatprep.subr.mxu0 0.0
  %1838 = vmatpush1.msra.mxu0 0.0
  %1839 = vmatprep.subr.mxu0 0.0
  %1840 = vmatpush1.msra.mxu0 0.0
  %1841 = vmatprep.subr.mxu0 0.0
  %1842 = vmatpush1.msra.mxu0 0.0
  %1843 = vmatprep.subr.mxu0 0.0
  %1844 = vmatpush1.msra.mxu0 0.0
  %1845 = vmatprep.subr.mxu0 0.0
  %1846 = vmatpush1.msra.mxu0 0.0
  %1847 = vmatprep.subr.mxu0 0.0
  %1848 = vmatpush1.msra.mxu0 0.0
  %1849 = vmatprep.subr.mxu0 0.0
  %1850 = vmatpush1.msra.mxu0 0.0
  %1851 = vmatprep.subr.mxu0 0.0
  %1852 = vmatpush1.msra.mxu0 0.0
  %1853 = vmatprep.mubr.f32.mxu0 0.0
  %1854 = vmatmul.mubr.f32.gmra.mrb[0].mxu0 %v1787
  %v1855 = vpop.f32.mrb[0].mxu0
  %v1856 = vadd.f32 0.0, %v1855
  %v1857 = vpop.f32.mrb[0].mxu0
  %1858 = vdwg.mxu0
  %v1859 = vadd.f32 %v600, %v947
  %v1860 = vadd.f32 %v602, %v947
  %1862 = vrot.lane.b32.xlu0 %v1856, 96
  %v1863 = vpop.permute.xlu0 %1862
  %v1865 = vadd.f32 %v1859, %v1863
  %v1866 = vadd.f32 %v1860, %v1863
  %v1867 = vmul.f32 %v1865, 0.5
  %v1868 = vmul.f32 %v1866, 0.5
  %v1869 = vtanh.pop %v1867
  %v1870 = vtanh.pop %v1868
  %v1871 = vadd.f32 %v1869, 1.0
  %v1872 = vadd.f32 %v1870, 1.0
  %v1873 = vmul.f32 %v1871, 0.5
  %v1874 = vmul.f32 %v1872, 0.5
  %v1875 = vadd.f32 %v1856, %v844
  %1877 = vrot.lane.b32.xlu0 %v1875, 32
  %v1878 = vpop.permute.xlu0 %1877
  %v1880 = vmul.f32 %v1873, %v1878
  %1882 = vrot.lane.b32.xlu0 %v1880, 64
  %v1883 = vpop.permute.xlu0 %1882
  %v1885 = vadd.f32 %v1860, %v1883
  %v1886 = vtanh.pop %v1885
  %1888 = vrot.lane.b32.xlu0 %v1886, 32
  %v1889 = vpop.permute.xlu0 %1888
  %v1891 = vsub.f32 %v1781, %v1889
  %1893 = vrot.lane.b32.xlu0 %v1891, 64
  %v1894 = vpop.permute.xlu0 %1893
  %v1896 = vmul.f32 %v1874, %v1894
  %1898 = vrot.lane.b32.xlu0 %v1896, 32
  %v1899 = vpop.permute.xlu0 %1898
  %v1901 = vadd.f32 %v1886, %v1899
  %1903 = vrot.lane.b32.xlu0 %v1901, 96
  %v1904 = vpop.permute.xlu0 %1903
  %1906 = vst.msk [vmem:[#allocation2 + $0x48] sm:$0xff] %vm752, %v1904
  %v1907 = vsel %vm752, %v1904, 0
  %1909 = vmatprep.subr.mxu0 0.0
  %1910 = vmatpush1.msra.mxu0 %v746
  %1911 = vmatprep.subr.mxu0 0.0
  %1912 = vmatpush1.msra.mxu0 %v747
  %1913 = vmatprep.subr.mxu0 0.0
  %1914 = vmatpush1.msra.mxu0 %v748
  %1915 = vmatprep.subr.mxu0 0.0
  %1916 = vmatpush1.msra.mxu0 %v749
  %1917 = vmatprep.subr.mxu0 0.0
  %1918 = vmatpush1.msra.mxu0 0.0
  %1919 = vmatprep.subr.mxu0 0.0
  %1920 = vmatpush1.msra.mxu0 0.0
  %1921 = vmatprep.subr.mxu0 0.0
  %1922 = vmatpush1.msra.mxu0 0.0
  %1923 = vmatprep.subr.mxu0 0.0
  %1924 = vmatpush1.msra.mxu0 0.0
  %1925 = vmatprep.subr.mxu0 0.0
  %1926 = vmatpush1.msra.mxu0 0.0
  %1927 = vmatprep.subr.mxu0 0.0
  %1928 = vmatpush1.msra.mxu0 0.0
  %1929 = vmatprep.subr.mxu0 0.0
  %1930 = vmatpush1.msra.mxu0 0.0
  %1931 = vmatprep.subr.mxu0 0.0
  %1932 = vmatpush1.msra.mxu0 0.0
  %1933 = vmatprep.subr.mxu0 0.0
  %1934 = vmatpush1.msra.mxu0 0.0
  %1935 = vmatprep.subr.mxu0 0.0
  %1936 = vmatpush1.msra.mxu0 0.0
  %1937 = vmatprep.subr.mxu0 0.0
  %1938 = vmatpush1.msra.mxu0 0.0
  %1939 = vmatprep.subr.mxu0 0.0
  %1940 = vmatpush1.msra.mxu0 0.0
  %1941 = vmatprep.subr.mxu0 0.0
  %1942 = vmatpush1.msra.mxu0 0.0
  %1943 = vmatprep.subr.mxu0 0.0
  %1944 = vmatpush1.msra.mxu0 0.0
  %1945 = vmatprep.subr.mxu0 0.0
  %1946 = vmatpush1.msra.mxu0 0.0
  %1947 = vmatprep.subr.mxu0 0.0
  %1948 = vmatpush1.msra.mxu0 0.0
  %1949 = vmatprep.subr.mxu0 0.0
  %1950 = vmatpush1.msra.mxu0 0.0
  %1951 = vmatprep.subr.mxu0 0.0
  %1952 = vmatpush1.msra.mxu0 0.0
  %1953 = vmatprep.subr.mxu0 0.0
  %1954 = vmatpush1.msra.mxu0 0.0
  %1955 = vmatprep.subr.mxu0 0.0
  %1956 = vmatpush1.msra.mxu0 0.0
  %1957 = vmatprep.subr.mxu0 0.0
  %1958 = vmatpush1.msra.mxu0 0.0
  %1959 = vmatprep.subr.mxu0 0.0
  %1960 = vmatpush1.msra.mxu0 0.0
  %1961 = vmatprep.subr.mxu0 0.0
  %1962 = vmatpush1.msra.mxu0 0.0
  %1963 = vmatprep.subr.mxu0 0.0
  %1964 = vmatpush1.msra.mxu0 0.0
  %1965 = vmatprep.subr.mxu0 0.0
  %1966 = vmatpush1.msra.mxu0 0.0
  %1967 = vmatprep.subr.mxu0 0.0
  %1968 = vmatpush1.msra.mxu0 0.0
  %1969 = vmatprep.subr.mxu0 0.0
  %1970 = vmatpush1.msra.mxu0 0.0
  %1971 = vmatprep.subr.mxu0 0.0
  %1972 = vmatpush1.msra.mxu0 0.0
  %1973 = vmatprep.mubr.f32.mxu0 0.0
  %1974 = vmatmul.mubr.f32.gmra.mrb[0].mxu0 %v1907
  %v1975 = vpop.f32.mrb[0].mxu0
  %v1976 = vadd.f32 0.0, %v1975
  %v1977 = vpop.f32.mrb[0].mxu0
  %1978 = vdwg.mxu0
  %v1979 = vadd.f32 %v602, %v1070
  %v1980 = vadd.f32 %v671, %v1070
  %1982 = vrot.lane.b32.xlu0 %v1976, 64
  %v1983 = vpop.permute.xlu0 %1982
  %v1985 = vadd.f32 %v1979, %v1983
  %v1986 = vmul.f32 %v1985, 0.5
  %v1987 = vtanh.pop %v1986
  %v1988 = vadd.f32 %v1987, 1.0
  %v1989 = vmul.f32 %v1988, 0.5
  %v1990 = vadd.f32 %v1976, %v844
  %v1991 = vmul.f32 %v1989, %v1990
  %1993 = vrot.lane.b32.xlu0 %v1991, 64
  %v1994 = vpop.permute.xlu0 %1993
  %v1996 = vadd.f32 %v1980, %v1994
  %v1997 = vtanh.pop %v1996
  %1999 = vrot.lane.b32.xlu0 %v1997, 32
  %v2000 = vpop.permute.xlu0 %1999
  %v2002 = vsub.f32 %v1901, %v2000
  %2004 = vrot.lane.b32.xlu0 %v2002, 64
  %v2005 = vpop.permute.xlu0 %2004
  %v2007 = vmul.f32 %v1989, %v2005
  %2009 = vrot.lane.b32.xlu0 %v2007, 32
  %v2010 = vpop.permute.xlu0 %2009
  %v2012 = vadd.f32 %v1997, %v2010
  %2013 = vst.msk [vmem:[#allocation2 + $0x50] sm:$0xff] %vm752, %v2012
  %v2015 = vsel %vm752, %v2012, 0
  %2017 = vmatprep.subr.mxu0 0.0
  %2018 = vmatpush1.msra.mxu0 %v746
  %2019 = vmatprep.subr.mxu0 0.0
  %2020 = vmatpush1.msra.mxu0 %v747
  %2021 = vmatprep.subr.mxu0 0.0
  %2022 = vmatpush1.msra.mxu0 %v748
  %2023 = vmatprep.subr.mxu0 0.0
  %2024 = vmatpush1.msra.mxu0 %v749
  %2025 = vmatprep.subr.mxu0 0.0
  %2026 = vmatpush1.msra.mxu0 0.0
  %2027 = vmatprep.subr.mxu0 0.0
  %2028 = vmatpush1.msra.mxu0 0.0
  %2029 = vmatprep.subr.mxu0 0.0
  %2030 = vmatpush1.msra.mxu0 0.0
  %2031 = vmatprep.subr.mxu0 0.0
  %2032 = vmatpush1.msra.mxu0 0.0
  %2033 = vmatprep.subr.mxu0 0.0
  %2034 = vmatpush1.msra.mxu0 0.0
  %2035 = vmatprep.subr.mxu0 0.0
  %2036 = vmatpush1.msra.mxu0 0.0
  %2037 = vmatprep.subr.mxu0 0.0
  %2038 = vmatpush1.msra.mxu0 0.0
  %2039 = vmatprep.subr.mxu0 0.0
  %2040 = vmatpush1.msra.mxu0 0.0
  %2041 = vmatprep.subr.mxu0 0.0
  %2042 = vmatpush1.msra.mxu0 0.0
  %2043 = vmatprep.subr.mxu0 0.0
  %2044 = vmatpush1.msra.mxu0 0.0
  %2045 = vmatprep.subr.mxu0 0.0
  %2046 = vmatpush1.msra.mxu0 0.0
  %2047 = vmatprep.subr.mxu0 0.0
  %2048 = vmatpush1.msra.mxu0 0.0
  %2049 = vmatprep.subr.mxu0 0.0
  %2050 = vmatpush1.msra.mxu0 0.0
  %2051 = vmatprep.subr.mxu0 0.0
  %2052 = vmatpush1.msra.mxu0 0.0
  %2053 = vmatprep.subr.mxu0 0.0
  %2054 = vmatpush1.msra.mxu0 0.0
  %2055 = vmatprep.subr.mxu0 0.0
  %2056 = vmatpush1.msra.mxu0 0.0
  %2057 = vmatprep.subr.mxu0 0.0
  %2058 = vmatpush1.msra.mxu0 0.0
  %2059 = vmatprep.subr.mxu0 0.0
  %2060 = vmatpush1.msra.mxu0 0.0
  %2061 = vmatprep.subr.mxu0 0.0
  %2062 = vmatpush1.msra.mxu0 0.0
  %2063 = vmatprep.subr.mxu0 0.0
  %2064 = vmatpush1.msra.mxu0 0.0
  %2065 = vmatprep.subr.mxu0 0.0
  %2066 = vmatpush1.msra.mxu0 0.0
  %2067 = vmatprep.subr.mxu0 0.0
  %2068 = vmatpush1.msra.mxu0 0.0
  %2069 = vmatprep.subr.mxu0 0.0
  %2070 = vmatpush1.msra.mxu0 0.0
  %2071 = vmatprep.subr.mxu0 0.0
  %2072 = vmatpush1.msra.mxu0 0.0
  %2073 = vmatprep.subr.mxu0 0.0
  %2074 = vmatpush1.msra.mxu0 0.0
  %2075 = vmatprep.subr.mxu0 0.0
  %2076 = vmatpush1.msra.mxu0 0.0
  %2077 = vmatprep.subr.mxu0 0.0
  %2078 = vmatpush1.msra.mxu0 0.0
  %2079 = vmatprep.subr.mxu0 0.0
  %2080 = vmatpush1.msra.mxu0 0.0
  %2081 = vmatprep.mubr.f32.mxu0 0.0
  %2082 = vmatmul.mubr.f32.gmra.mrb[0].mxu0 %v2015
  %v2083 = vpop.f32.mrb[0].mxu0
  %v2084 = vadd.f32 0.0, %v2083
  %v2085 = vpop.f32.mrb[0].mxu0
  %2086 = vdwg.mxu0
  %v2087 = vadd.f32 %v671, %v1181
  %2089 = vrot.lane.b32.xlu0 %v2084, 32
  %v2090 = vpop.permute.xlu0 %2089
  %v2092 = vadd.f32 %v2087, %v2090
  %v2093 = vmul.f32 %v2092, 0.5
  %v2094 = vtanh.pop %v2093
  %v2095 = vadd.f32 %v2094, 1.0
  %v2096 = vmul.f32 %v2095, 0.5
  %v2097 = vadd.f32 %v2084, %v844
  %2099 = vrot.lane.b32.xlu0 %v2097, 96
  %v2100 = vpop.permute.xlu0 %2099
  %v2102 = vmul.f32 %v2096, %v2100
  %2104 = vrot.lane.b32.xlu0 %v2102, 64
  %v2105 = vpop.permute.xlu0 %2104
  %v2107 = vadd.f32 %v2087, %v2105
  %v2108 = vtanh.pop %v2107
  %2110 = vrot.lane.b32.xlu0 %v2108, 32
  %v2111 = vpop.permute.xlu0 %2110
  %v2113 = vsub.f32 %v2012, %v2111
  %2115 = vrot.lane.b32.xlu0 %v2113, 64
  %v2116 = vpop.permute.xlu0 %2115
  %v2118 = vmul.f32 %v2096, %v2116
  %2120 = vrot.lane.b32.xlu0 %v2118, 32
  %v2121 = vpop.permute.xlu0 %2120
  %v2123 = vadd.f32 %v2108, %v2121
  %2125 = vrot.lane.b32.xlu0 %v2123, 32
  %v2126 = vpop.permute.xlu0 %2125
  %2128 = vst.msk [vmem:[#allocation2 + $0x58] sm:$0xff] %vm752, %v2126
  %v2129 = vsel %vm752, %v2126, 0
  %2131 = vmatprep.subr.mxu0 0.0
  %2132 = vmatpush1.msra.mxu0 %v746
  %2133 = vmatprep.subr.mxu0 0.0
  %2134 = vmatpush1.msra.mxu0 %v747
  %2135 = vmatprep.subr.mxu0 0.0
  %2136 = vmatpush1.msra.mxu0 %v748
  %2137 = vmatprep.subr.mxu0 0.0
  %2138 = vmatpush1.msra.mxu0 %v749
  %2139 = vmatprep.subr.mxu0 0.0
  %2140 = vmatpush1.msra.mxu0 0.0
  %2141 = vmatprep.subr.mxu0 0.0
  %2142 = vmatpush1.msra.mxu0 0.0
  %2143 = vmatprep.subr.mxu0 0.0
  %2144 = vmatpush1.msra.mxu0 0.0
  %2145 = vmatprep.subr.mxu0 0.0
  %2146 = vmatpush1.msra.mxu0 0.0
  %2147 = vmatprep.subr.mxu0 0.0
  %2148 = vmatpush1.msra.mxu0 0.0
  %2149 = vmatprep.subr.mxu0 0.0
  %2150 = vmatpush1.msra.mxu0 0.0
  %2151 = vmatprep.subr.mxu0 0.0
  %2152 = vmatpush1.msra.mxu0 0.0
  %2153 = vmatprep.subr.mxu0 0.0
  %2154 = vmatpush1.msra.mxu0 0.0
  %2155 = vmatprep.subr.mxu0 0.0
  %2156 = vmatpush1.msra.mxu0 0.0
  %2157 = vmatprep.subr.mxu0 0.0
  %2158 = vmatpush1.msra.mxu0 0.0
  %2159 = vmatprep.subr.mxu0 0.0
  %2160 = vmatpush1.msra.mxu0 0.0
  %2161 = vmatprep.subr.mxu0 0.0
  %2162 = vmatpush1.msra.mxu0 0.0
  %2163 = vmatprep.subr.mxu0 0.0
  %2164 = vmatpush1.msra.mxu0 0.0
  %2165 = vmatprep.subr.mxu0 0.0
  %2166 = vmatpush1.msra.mxu0 0.0
  %2167 = vmatprep.subr.mxu0 0.0
  %2168 = vmatpush1.msra.mxu0 0.0
  %2169 = vmatprep.subr.mxu0 0.0
  %2170 = vmatpush1.msra.mxu0 0.0
  %2171 = vmatprep.subr.mxu0 0.0
  %2172 = vmatpush1.msra.mxu0 0.0
  %2173 = vmatprep.subr.mxu0 0.0
  %2174 = vmatpush1.msra.mxu0 0.0
  %2175 = vmatprep.subr.mxu0 0.0
  %2176 = vmatpush1.msra.mxu0 0.0
  %2177 = vmatprep.subr.mxu0 0.0
  %2178 = vmatpush1.msra.mxu0 0.0
  %2179 = vmatprep.subr.mxu0 0.0
  %2180 = vmatpush1.msra.mxu0 0.0
  %2181 = vmatprep.subr.mxu0 0.0
  %2182 = vmatpush1.msra.mxu0 0.0
  %2183 = vmatprep.subr.mxu0 0.0
  %2184 = vmatpush1.msra.mxu0 0.0
  %2185 = vmatprep.subr.mxu0 0.0
  %2186 = vmatpush1.msra.mxu0 0.0
  %2187 = vmatprep.subr.mxu0 0.0
  %2188 = vmatpush1.msra.mxu0 0.0
  %2189 = vmatprep.subr.mxu0 0.0
  %2190 = vmatpush1.msra.mxu0 0.0
  %2191 = vmatprep.subr.mxu0 0.0
  %2192 = vmatpush1.msra.mxu0 0.0
  %2193 = vmatprep.subr.mxu0 0.0
  %2194 = vmatpush1.msra.mxu0 0.0
  %2195 = vmatprep.mubr.f32.mxu0 0.0
  %2196 = vmatmul.mubr.f32.gmra.mrb[0].mxu0 %v2129
  %v2197 = vpop.f32.mrb[0].mxu0
  %v2198 = vadd.f32 0.0, %v2197
  %v2199 = vpop.f32.mrb[0].mxu0
  %2200 = vdwg.mxu0
  %v2201 = vadd.f32 %v673, %v830
  %v2202 = vadd.f32 %v2201, %v2198
  %v2203 = vmul.f32 %v2202, 0.5
  %v2204 = vtanh.pop %v2203
  %v2205 = vadd.f32 %v2204, 1.0
  %v2206 = vmul.f32 %v2205, 0.5
  %v2207 = vadd.f32 %v2198, %v844
  %2209 = vrot.lane.b32.xlu0 %v2207, 64
  %v2210 = vpop.permute.xlu0 %2209
  %v2212 = vmul.f32 %v2206, %v2210
  %2214 = vrot.lane.b32.xlu0 %v2212, 64
  %v2215 = vpop.permute.xlu0 %2214
  %v2217 = vadd.f32 %v2201, %v2215
  %v2218 = vtanh.pop %v2217
  %2220 = vrot.lane.b32.xlu0 %v2218, 32
  %v2221 = vpop.permute.xlu0 %2220
  %v2223 = vsub.f32 %v2123, %v2221
  %2225 = vrot.lane.b32.xlu0 %v2223, 64
  %v2226 = vpop.permute.xlu0 %2225
  %v2228 = vmul.f32 %v2206, %v2226
  %2230 = vrot.lane.b32.xlu0 %v2228, 32
  %v2231 = vpop.permute.xlu0 %2230
  %v2233 = vadd.f32 %v2218, %v2231
  %2235 = vrot.lane.b32.xlu0 %v2233, 64
  %v2236 = vpop.permute.xlu0 %2235
  %2238 = vst.msk [vmem:[#allocation2 + $0x60] sm:$0xff] %vm752, %v2236
  %v2239 = vsel %vm752, %v2236, 0
  %2241 = vmatprep.subr.mxu0 0.0
  %2242 = vmatpush1.msra.mxu0 %v746
  %2243 = vmatprep.subr.mxu0 0.0
  %2244 = vmatpush1.msra.mxu0 %v747
  %2245 = vmatprep.subr.mxu0 0.0
  %2246 = vmatpush1.msra.mxu0 %v748
  %2247 = vmatprep.subr.mxu0 0.0
  %2248 = vmatpush1.msra.mxu0 %v749
  %2249 = vmatprep.subr.mxu0 0.0
  %2250 = vmatpush1.msra.mxu0 0.0
  %2251 = vmatprep.subr.mxu0 0.0
  %2252 = vmatpush1.msra.mxu0 0.0
  %2253 = vmatprep.subr.mxu0 0.0
  %2254 = vmatpush1.msra.mxu0 0.0
  %2255 = vmatprep.subr.mxu0 0.0
  %2256 = vmatpush1.msra.mxu0 0.0
  %2257 = vmatprep.subr.mxu0 0.0
  %2258 = vmatpush1.msra.mxu0 0.0
  %2259 = vmatprep.subr.mxu0 0.0
  %2260 = vmatpush1.msra.mxu0 0.0
  %2261 = vmatprep.subr.mxu0 0.0
  %2262 = vmatpush1.msra.mxu0 0.0
  %2263 = vmatprep.subr.mxu0 0.0
  %2264 = vmatpush1.msra.mxu0 0.0
  %2265 = vmatprep.subr.mxu0 0.0
  %2266 = vmatpush1.msra.mxu0 0.0
  %2267 = vmatprep.subr.mxu0 0.0
  %2268 = vmatpush1.msra.mxu0 0.0
  %2269 = vmatprep.subr.mxu0 0.0
  %2270 = vmatpush1.msra.mxu0 0.0
  %2271 = vmatprep.subr.mxu0 0.0
  %2272 = vmatpush1.msra.mxu0 0.0
  %2273 = vmatprep.subr.mxu0 0.0
  %2274 = vmatpush1.msra.mxu0 0.0
  %2275 = vmatprep.subr.mxu0 0.0
  %2276 = vmatpush1.msra.mxu0 0.0
  %2277 = vmatprep.subr.mxu0 0.0
  %2278 = vmatpush1.msra.mxu0 0.0
  %2279 = vmatprep.subr.mxu0 0.0
  %2280 = vmatpush1.msra.mxu0 0.0
  %2281 = vmatprep.subr.mxu0 0.0
  %2282 = vmatpush1.msra.mxu0 0.0
  %2283 = vmatprep.subr.mxu0 0.0
  %2284 = vmatpush1.msra.mxu0 0.0
  %2285 = vmatprep.subr.mxu0 0.0
  %2286 = vmatpush1.msra.mxu0 0.0
  %2287 = vmatprep.subr.mxu0 0.0
  %2288 = vmatpush1.msra.mxu0 0.0
  %2289 = vmatprep.subr.mxu0 0.0
  %2290 = vmatpush1.msra.mxu0 0.0
  %2291 = vmatprep.subr.mxu0 0.0
  %2292 = vmatpush1.msra.mxu0 0.0
  %2293 = vmatprep.subr.mxu0 0.0
  %2294 = vmatpush1.msra.mxu0 0.0
  %2295 = vmatprep.subr.mxu0 0.0
  %2296 = vmatpush1.msra.mxu0 0.0
  %2297 = vmatprep.subr.mxu0 0.0
  %2298 = vmatpush1.msra.mxu0 0.0
  %2299 = vmatprep.subr.mxu0 0.0
  %2300 = vmatpush1.msra.mxu0 0.0
  %2301 = vmatprep.subr.mxu0 0.0
  %2302 = vmatpush1.msra.mxu0 0.0
  %2303 = vmatprep.subr.mxu0 0.0
  %2304 = vmatpush1.msra.mxu0 0.0
  %2305 = vmatprep.mubr.f32.mxu0 0.0
  %2306 = vmatmul.mubr.f32.gmra.mrb[0].mxu0 %v2239
  %v2307 = vpop.f32.mrb[0].mxu0
  %v2308 = vadd.f32 0.0, %v2307
  %v2309 = vpop.f32.mrb[0].mxu0
  %2310 = vdwg.mxu0
  %v2311 = vadd.f32 %v673, %v947
  %v2312 = vadd.f32 %v742, %v947
  %2314 = vrot.lane.b32.xlu0 %v2308, 96
  %v2315 = vpop.permute.xlu0 %2314
  %v2317 = vadd.f32 %v2311, %v2315
  %v2318 = vadd.f32 %v2312, %v2315
  %v2319 = vmul.f32 %v2317, 0.5
  %v2320 = vmul.f32 %v2318, 0.5
  %v2321 = vtanh.pop %v2319
  %v2322 = vtanh.pop %v2320
  %v2323 = vadd.f32 %v2321, 1.0
  %v2324 = vadd.f32 %v2322, 1.0
  %v2325 = vmul.f32 %v2323, 0.5
  %v2326 = vmul.f32 %v2324, 0.5
  %v2327 = vadd.f32 %v2308, %v844
  %2329 = vrot.lane.b32.xlu0 %v2327, 32
  %v2330 = vpop.permute.xlu0 %2329
  %v2332 = vmul.f32 %v2325, %v2330
  %2334 = vrot.lane.b32.xlu0 %v2332, 64
  %v2335 = vpop.permute.xlu0 %2334
  %v2337 = vadd.f32 %v2312, %v2335
  %v2338 = vtanh.pop %v2337
  %2340 = vrot.lane.b32.xlu0 %v2338, 32
  %v2341 = vpop.permute.xlu0 %2340
  %v2343 = vsub.f32 %v2233, %v2341
  %2345 = vrot.lane.b32.xlu0 %v2343, 64
  %v2346 = vpop.permute.xlu0 %2345
  %v2348 = vmul.f32 %v2326, %v2346
  %2350 = vrot.lane.b32.xlu0 %v2348, 32
  %v2351 = vpop.permute.xlu0 %2350
  %v2353 = vadd.f32 %v2338, %v2351
  %2355 = vrot.lane.b32.xlu0 %v2353, 96
  %v2356 = vpop.permute.xlu0 %2355
  %2358 = vst.msk [vmem:[#allocation2 + $0x68] sm:$0xff] %vm752, %v2356
  %v2359 = vsel %vm752, %v2356, 0
  %2361 = vmatprep.subr.mxu0 0.0
  %2362 = vmatpush1.msra.mxu0 %v746
  %2363 = vmatprep.subr.mxu0 0.0
  %2364 = vmatpush1.msra.mxu0 %v747
  %2365 = vmatprep.subr.mxu0 0.0
  %2366 = vmatpush1.msra.mxu0 %v748
  %2367 = vmatprep.subr.mxu0 0.0
  %2368 = vmatpush1.msra.mxu0 %v749
  %2369 = vmatprep.subr.mxu0 0.0
  %2370 = vmatpush1.msra.mxu0 0.0
  %2371 = vmatprep.subr.mxu0 0.0
  %2372 = vmatpush1.msra.mxu0 0.0
  %2373 = vmatprep.subr.mxu0 0.0
  %2374 = vmatpush1.msra.mxu0 0.0
  %2375 = vmatprep.subr.mxu0 0.0
  %2376 = vmatpush1.msra.mxu0 0.0
  %2377 = vmatprep.subr.mxu0 0.0
  %2378 = vmatpush1.msra.mxu0 0.0
  %2379 = vmatprep.subr.mxu0 0.0
  %2380 = vmatpush1.msra.mxu0 0.0
  %2381 = vmatprep.subr.mxu0 0.0
  %2382 = vmatpush1.msra.mxu0 0.0
  %2383 = vmatprep.subr.mxu0 0.0
  %2384 = vmatpush1.msra.mxu0 0.0
  %2385 = vmatprep.subr.mxu0 0.0
  %2386 = vmatpush1.msra.mxu0 0.0
  %2387 = vmatprep.subr.mxu0 0.0
  %2388 = vmatpush1.msra.mxu0 0.0
  %2389 = vmatprep.subr.mxu0 0.0
  %2390 = vmatpush1.msra.mxu0 0.0
  %2391 = vmatprep.subr.mxu0 0.0
  %2392 = vmatpush1.msra.mxu0 0.0
  %2393 = vmatprep.subr.mxu0 0.0
  %2394 = vmatpush1.msra.mxu0 0.0
  %2395 = vmatprep.subr.mxu0 0.0
  %2396 = vmatpush1.msra.mxu0 0.0
  %2397 = vmatprep.subr.mxu0 0.0
  %2398 = vmatpush1.msra.mxu0 0.0
  %2399 = vmatprep.subr.mxu0 0.0
  %2400 = vmatpush1.msra.mxu0 0.0
  %2401 = vmatprep.subr.mxu0 0.0
  %2402 = vmatpush1.msra.mxu0 0.0
  %2403 = vmatprep.subr.mxu0 0.0
  %2404 = vmatpush1.msra.mxu0 0.0
  %2405 = vmatprep.subr.mxu0 0.0
  %2406 = vmatpush1.msra.mxu0 0.0
  %2407 = vmatprep.subr.mxu0 0.0
  %2408 = vmatpush1.msra.mxu0 0.0
  %2409 = vmatprep.subr.mxu0 0.0
  %2410 = vmatpush1.msra.mxu0 0.0
  %2411 = vmatprep.subr.mxu0 0.0
  %2412 = vmatpush1.msra.mxu0 0.0
  %2413 = vmatprep.subr.mxu0 0.0
  %2414 = vmatpush1.msra.mxu0 0.0
  %2415 = vmatprep.subr.mxu0 0.0
  %2416 = vmatpush1.msra.mxu0 0.0
  %2417 = vmatprep.subr.mxu0 0.0
  %2418 = vmatpush1.msra.mxu0 0.0
  %2419 = vmatprep.subr.mxu0 0.0
  %2420 = vmatpush1.msra.mxu0 0.0
  %2421 = vmatprep.subr.mxu0 0.0
  %2422 = vmatpush1.msra.mxu0 0.0
  %2423 = vmatprep.subr.mxu0 0.0
  %2424 = vmatpush1.msra.mxu0 0.0
  %2425 = vmatprep.mubr.f32.mxu0 0.0
  %2426 = vmatmul.mubr.f32.gmra.mrb[0].mxu0 %v2359
  %v2427 = vpop.f32.mrb[0].mxu0
  %v2428 = vadd.f32 0.0, %v2427
  %v2429 = vpop.f32.mrb[0].mxu0
  %2430 = vdwg.mxu0
  %v2431 = vadd.f32 %v742, %v1070
  %v2432 = vadd.f32 %v744, %v1070
  %2434 = vrot.lane.b32.xlu0 %v2428, 64
  %v2435 = vpop.permute.xlu0 %2434
  %v2437 = vadd.f32 %v2431, %v2435
  %v2438 = vmul.f32 %v2437, 0.5
  %v2439 = vtanh.pop %v2438
  %v2440 = vadd.f32 %v2439, 1.0
  %v2441 = vmul.f32 %v2440, 0.5
  %v2442 = vadd.f32 %v2428, %v844
  %v2443 = vmul.f32 %v2441, %v2442
  %2445 = vrot.lane.b32.xlu0 %v2443, 64
  %v2446 = vpop.permute.xlu0 %2445
  %v2448 = vadd.f32 %v2432, %v2446
  %v2449 = vtanh.pop %v2448
  %2451 = vrot.lane.b32.xlu0 %v2449, 32
  %v2452 = vpop.permute.xlu0 %2451
  %v2454 = vsub.f32 %v2353, %v2452
  %2456 = vrot.lane.b32.xlu0 %v2454, 64
  %v2457 = vpop.permute.xlu0 %2456
  %v2459 = vmul.f32 %v2441, %v2457
  %2461 = vrot.lane.b32.xlu0 %v2459, 32
  %v2462 = vpop.permute.xlu0 %2461
  %v2464 = vadd.f32 %v2449, %v2462
  %2465 = vst.msk [vmem:[#allocation2 + $0x70] sm:$0xff] %vm752, %v2464
  %v2467 = vsel %vm752, %v2464, 0
  %2469 = vmatprep.subr.mxu0 0.0
  %2470 = vmatpush1.msra.mxu0 %v746
  %2471 = vmatprep.subr.mxu0 0.0
  %2472 = vmatpush1.msra.mxu0 %v747
  %2473 = vmatprep.subr.mxu0 0.0
  %2474 = vmatpush1.msra.mxu0 %v748
  %2475 = vmatprep.subr.mxu0 0.0
  %2476 = vmatpush1.msra.mxu0 %v749
  %2477 = vmatprep.subr.mxu0 0.0
  %2478 = vmatpush1.msra.mxu0 0.0
  %2479 = vmatprep.subr.mxu0 0.0
  %2480 = vmatpush1.msra.mxu0 0.0
  %2481 = vmatprep.subr.mxu0 0.0
  %2482 = vmatpush1.msra.mxu0 0.0
  %2483 = vmatprep.subr.mxu0 0.0
  %2484 = vmatpush1.msra.mxu0 0.0
  %2485 = vmatprep.subr.mxu0 0.0
  %2486 = vmatpush1.msra.mxu0 0.0
  %2487 = vmatprep.subr.mxu0 0.0
  %2488 = vmatpush1.msra.mxu0 0.0
  %2489 = vmatprep.subr.mxu0 0.0
  %2490 = vmatpush1.msra.mxu0 0.0
  %2491 = vmatprep.subr.mxu0 0.0
  %2492 = vmatpush1.msra.mxu0 0.0
  %2493 = vmatprep.subr.mxu0 0.0
  %2494 = vmatpush1.msra.mxu0 0.0
  %2495 = vmatprep.subr.mxu0 0.0
  %2496 = vmatpush1.msra.mxu0 0.0
  %2497 = vmatprep.subr.mxu0 0.0
  %2498 = vmatpush1.msra.mxu0 0.0
  %2499 = vmatprep.subr.mxu0 0.0
  %2500 = vmatpush1.msra.mxu0 0.0
  %2501 = vmatprep.subr.mxu0 0.0
  %2502 = vmatpush1.msra.mxu0 0.0
  %2503 = vmatprep.subr.mxu0 0.0
  %2504 = vmatpush1.msra.mxu0 0.0
  %2505 = vmatprep.subr.mxu0 0.0
  %2506 = vmatpush1.msra.mxu0 0.0
  %2507 = vmatprep.subr.mxu0 0.0
  %2508 = vmatpush1.msra.mxu0 0.0
  %2509 = vmatprep.subr.mxu0 0.0
  %2510 = vmatpush1.msra.mxu0 0.0
  %2511 = vmatprep.subr.mxu0 0.0
  %2512 = vmatpush1.msra.mxu0 0.0
  %2513 = vmatprep.subr.mxu0 0.0
  %2514 = vmatpush1.msra.mxu0 0.0
  %2515 = vmatprep.subr.mxu0 0.0
  %2516 = vmatpush1.msra.mxu0 0.0
  %2517 = vmatprep.subr.mxu0 0.0
  %2518 = vmatpush1.msra.mxu0 0.0
  %2519 = vmatprep.subr.mxu0 0.0
  %2520 = vmatpush1.msra.mxu0 0.0
  %2521 = vmatprep.subr.mxu0 0.0
  %2522 = vmatpush1.msra.mxu0 0.0
  %2523 = vmatprep.subr.mxu0 0.0
  %2524 = vmatpush1.msra.mxu0 0.0
  %2525 = vmatprep.subr.mxu0 0.0
  %2526 = vmatpush1.msra.mxu0 0.0
  %2527 = vmatprep.subr.mxu0 0.0
  %2528 = vmatpush1.msra.mxu0 0.0
  %2529 = vmatprep.subr.mxu0 0.0
  %2530 = vmatpush1.msra.mxu0 0.0
  %2531 = vmatprep.subr.mxu0 0.0
  %2532 = vmatpush1.msra.mxu0 0.0
  %2533 = vmatprep.mubr.f32.mxu0 0.0
  %2534 = vmatmul.mubr.f32.gmra.mrb[0].mxu0 %v2467
  %v2535 = vpop.f32.mrb[0].mxu0
  %v2536 = vadd.f32 0.0, %v2535
  %v2537 = vpop.f32.mrb[0].mxu0
  %2538 = vdwg.mxu0
  %v2539 = vadd.f32 %v744, %v1181
  %2541 = vrot.lane.b32.xlu0 %v2536, 32
  %v2542 = vpop.permute.xlu0 %2541
  %v2544 = vadd.f32 %v2539, %v2542
  %v2545 = vmul.f32 %v2544, 0.5
  %v2546 = vtanh.pop %v2545
  %v2547 = vadd.f32 %v2546, 1.0
  %v2548 = vmul.f32 %v2547, 0.5
  %v2549 = vadd.f32 %v2536, %v844
  %2551 = vrot.lane.b32.xlu0 %v2549, 96
  %v2552 = vpop.permute.xlu0 %2551
  %v2554 = vmul.f32 %v2548, %v2552
  %2556 = vrot.lane.b32.xlu0 %v2554, 64
  %v2557 = vpop.permute.xlu0 %2556
  %v2559 = vadd.f32 %v2539, %v2557
  %v2560 = vtanh.pop %v2559
  %2562 = vrot.lane.b32.xlu0 %v2560, 32
  %v2563 = vpop.permute.xlu0 %2562
  %v2565 = vsub.f32 %v2464, %v2563
  %2567 = vrot.lane.b32.xlu0 %v2565, 64
  %v2568 = vpop.permute.xlu0 %2567
  %v2570 = vmul.f32 %v2548, %v2568
  %2572 = vrot.lane.b32.xlu0 %v2570, 32
  %v2573 = vpop.permute.xlu0 %2572
  %v2575 = vadd.f32 %v2560, %v2573
  %2577 = vrot.lane.b32.xlu0 %v2575, 32
  %v2578 = vpop.permute.xlu0 %2577
  %2580 = vst.msk [vmem:[#allocation2 + $0x78] sm:$0xff] %vm752, %v2578
  %v2581 = vld [vmem:[#allocation2] sm:$0xff]
  %v2582 = vld [vmem:[#allocation2 + $0x8] sm:$0xff]
  %v2583 = vld [vmem:[#allocation2 + $0x10] sm:$0xff]
  %v2584 = vld [vmem:[#allocation2 + $0x18] sm:$0xff]
  %v2585 = vld [vmem:[#allocation2 + $0x20] sm:$0xff]
  %v2586 = vld [vmem:[#allocation2 + $0x28] sm:$0xff]
  %v2587 = vld [vmem:[#allocation2 + $0x30] sm:$0xff]
  %v2588 = vld [vmem:[#allocation2 + $0x38] sm:$0xff]
  %v2589 = vld [vmem:[#allocation2 + $0x40] sm:$0xff]
  %v2590 = vld [vmem:[#allocation2 + $0x48] sm:$0xff]
  %v2591 = vld [vmem:[#allocation2 + $0x50] sm:$0xff]
  %v2592 = vld [vmem:[#allocation2 + $0x58] sm:$0xff]
  %v2593 = vld [vmem:[#allocation2 + $0x60] sm:$0xff]
  %v2594 = vld [vmem:[#allocation2 + $0x68] sm:$0xff]
  %v2595 = vld [vmem:[#allocation2 + $0x70] sm:$0xff]
  %v2596 = vld [vmem:[#allocation2 + $0x78] sm:$0xff]
  %v2597 = vld [vmem:[%s11] sm:$0xff]
  %v2598 = vld [vmem:[%s11 + $0x8] sm:$0xff]
  %v2599 = vld [vmem:[%s11 + $0x10] sm:$0xff]
  %v2600 = vld [vmem:[%s11 + $0x18] sm:$0xff]
  %v2601 = vld [vmem:[%s13] sm:$0x1]
  %v2603 = vlaneseq
  %v2604 = vshrl.u32 %v2603, 7
  %v2605 = vsub.s32 0, %v2604
  %v2606 = vrot.slane %v2601, %v2605
  %v2609 = vsel %vm752, %v2581, 0
  %v2612 = vsel %vm752, %v2582, 0
  %v2615 = vsel %vm752, %v2583, 0
  %v2618 = vsel %vm752, %v2584, 0
  %v2621 = vsel %vm752, %v2585, 0
  %v2624 = vsel %vm752, %v2586, 0
  %v2627 = vsel %vm752, %v2587, 0
  %v2630 = vsel %vm752, %v2588, 0
  %v2633 = vsel %vm752, %v2589, 0
  %v2636 = vsel %vm752, %v2590, 0
  %v2639 = vsel %vm752, %v2591, 0
  %v2642 = vsel %vm752, %v2592, 0
  %v2645 = vsel %vm752, %v2593, 0
  %v2648 = vsel %vm752, %v2594, 0
  %v2651 = vsel %vm752, %v2595, 0
  %v2654 = vsel %vm752, %v2596, 0
  %2656 = vmatprep.subr.mxu0 0.0
  %2657 = vmatpush1.msra.mxu0 %v2597
  %2658 = vmatprep.subr.mxu0 0.0
  %2659 = vmatpush1.msra.mxu0 %v2598
  %2660 = vmatprep.subr.mxu0 0.0
  %2661 = vmatpush1.msra.mxu0 %v2599
  %2662 = vmatprep.subr.mxu0 0.0
  %2663 = vmatpush1.msra.mxu0 %v2600
  %2664 = vmatprep.subr.mxu0 0.0
  %2665 = vmatpush1.msra.mxu0 0.0
  %2666 = vmatprep.subr.mxu0 0.0
  %2667 = vmatpush1.msra.mxu0 0.0
  %2668 = vmatprep.subr.mxu0 0.0
  %2669 = vmatpush1.msra.mxu0 0.0
  %2670 = vmatprep.subr.mxu0 0.0
  %2671 = vmatpush1.msra.mxu0 0.0
  %2672 = vmatprep.subr.mxu0 0.0
  %2673 = vmatpush1.msra.mxu0 0.0
  %2674 = vmatprep.subr.mxu0 0.0
  %2675 = vmatpush1.msra.mxu0 0.0
  %2676 = vmatprep.subr.mxu0 0.0
  %2677 = vmatpush1.msra.mxu0 0.0
  %2678 = vmatprep.subr.mxu0 0.0
  %2679 = vmatpush1.msra.mxu0 0.0
  %2680 = vmatprep.subr.mxu0 0.0
  %2681 = vmatpush1.msra.mxu0 0.0
  %2682 = vmatprep.subr.mxu0 0.0
  %2683 = vmatpush1.msra.mxu0 0.0
  %2684 = vmatprep.subr.mxu0 0.0
  %2685 = vmatpush1.msra.mxu0 0.0
  %2686 = vmatprep.subr.mxu0 0.0
  %2687 = vmatpush1.msra.mxu0 0.0
  %2688 = vmatprep.subr.mxu0 0.0
  %2689 = vmatpush1.msra.mxu0 0.0
  %2690 = vmatprep.subr.mxu0 0.0
  %2691 = vmatpush1.msra.mxu0 0.0
  %2692 = vmatprep.subr.mxu0 0.0
  %2693 = vmatpush1.msra.mxu0 0.0
  %2694 = vmatprep.subr.mxu0 0.0
  %2695 = vmatpush1.msra.mxu0 0.0
  %2696 = vmatprep.subr.mxu0 0.0
  %2697 = vmatpush1.msra.mxu0 0.0
  %2698 = vmatprep.subr.mxu0 0.0
  %2699 = vmatpush1.msra.mxu0 0.0
  %2700 = vmatprep.subr.mxu0 0.0
  %2701 = vmatpush1.msra.mxu0 0.0
  %2702 = vmatprep.subr.mxu0 0.0
  %2703 = vmatpush1.msra.mxu0 0.0
  %2704 = vmatprep.subr.mxu0 0.0
  %2705 = vmatpush1.msra.mxu0 0.0
  %2706 = vmatprep.subr.mxu0 0.0
  %2707 = vmatpush1.msra.mxu0 0.0
  %2708 = vmatprep.subr.mxu0 0.0
  %2709 = vmatpush1.msra.mxu0 0.0
  %2710 = vmatprep.subr.mxu0 0.0
  %2711 = vmatpush1.msra.mxu0 0.0
  %2712 = vmatprep.subr.mxu0 0.0
  %2713 = vmatpush1.msra.mxu0 0.0
  %2714 = vmatprep.subr.mxu0 0.0
  %2715 = vmatpush1.msra.mxu0 0.0
  %2716 = vmatprep.subr.mxu0 0.0
  %2717 = vmatpush1.msra.mxu0 0.0
  %2718 = vmatprep.subr.mxu0 0.0
  %2719 = vmatpush1.msra.mxu0 0.0
  %2720 = vmatprep.mubr.f32.mxu0 0.0
  %2721 = vmatmul.mubr.f32.gmra.mrb[0].mxu0 %v2609
  %v2722 = vpop.f32.mrb[0].mxu0
  %v2723 = vadd.f32 %v2606, %v2722
  %v2724 = vpop.f32.mrb[0].mxu0
  %2725 = vmatprep.mubr.f32.mxu0 0.0
  %2726 = vmatmul.mubr.f32.gmra.mrb[0].mxu0 %v2612
  %v2727 = vpop.f32.mrb[0].mxu0
  %v2728 = vadd.f32 %v2606, %v2727
  %v2729 = vpop.f32.mrb[0].mxu0
  %2730 = vmatprep.mubr.f32.mxu0 0.0
  %2731 = vmatmul.mubr.f32.gmra.mrb[0].mxu0 %v2615
  %v2732 = vpop.f32.mrb[0].mxu0
  %v2733 = vadd.f32 %v2606, %v2732
  %v2734 = vpop.f32.mrb[0].mxu0
  %2735 = vmatprep.mubr.f32.mxu0 0.0
  %2736 = vmatmul.mubr.f32.gmra.mrb[0].mxu0 %v2618
  %v2737 = vpop.f32.mrb[0].mxu0
  %v2738 = vadd.f32 %v2606, %v2737
  %v2739 = vpop.f32.mrb[0].mxu0
  %2740 = vmatprep.mubr.f32.mxu0 0.0
  %2741 = vmatmul.mubr.f32.gmra.mrb[0].mxu0 %v2621
  %v2742 = vpop.f32.mrb[0].mxu0
  %v2743 = vadd.f32 %v2606, %v2742
  %v2744 = vpop.f32.mrb[0].mxu0
  %2745 = vmatprep.mubr.f32.mxu0 0.0
  %2746 = vmatmul.mubr.f32.gmra.mrb[0].mxu0 %v2624
  %v2747 = vpop.f32.mrb[0].mxu0
  %v2748 = vadd.f32 %v2606, %v2747
  %v2749 = vpop.f32.mrb[0].mxu0
  %2750 = vmatprep.mubr.f32.mxu0 0.0
  %2751 = vmatmul.mubr.f32.gmra.mrb[0].mxu0 %v2627
  %v2752 = vpop.f32.mrb[0].mxu0
  %v2753 = vadd.f32 %v2606, %v2752
  %v2754 = vpop.f32.mrb[0].mxu0
  %2755 = vmatprep.mubr.f32.mxu0 0.0
  %2756 = vmatmul.mubr.f32.gmra.mrb[0].mxu0 %v2630
  %v2757 = vpop.f32.mrb[0].mxu0
  %v2758 = vadd.f32 %v2606, %v2757
  %v2759 = vpop.f32.mrb[0].mxu0
  %2760 = vmatprep.mubr.f32.mxu0 0.0
  %2761 = vmatmul.mubr.f32.gmra.mrb[0].mxu0 %v2633
  %v2762 = vpop.f32.mrb[0].mxu0
  %v2763 = vadd.f32 %v2606, %v2762
  %v2764 = vpop.f32.mrb[0].mxu0
  %2765 = vmatprep.mubr.f32.mxu0 0.0
  %2766 = vmatmul.mubr.f32.gmra.mrb[0].mxu0 %v2636
  %v2767 = vpop.f32.mrb[0].mxu0
  %v2768 = vadd.f32 %v2606, %v2767
  %v2769 = vpop.f32.mrb[0].mxu0
  %2770 = vmatprep.mubr.f32.mxu0 0.0
  %2771 = vmatmul.mubr.f32.gmra.mrb[0].mxu0 %v2639
  %v2772 = vpop.f32.mrb[0].mxu0
  %v2773 = vadd.f32 %v2606, %v2772
  %v2774 = vpop.f32.mrb[0].mxu0
  %2775 = vmatprep.mubr.f32.mxu0 0.0
  %2776 = vmatmul.mubr.f32.gmra.mrb[0].mxu0 %v2642
  %v2777 = vpop.f32.mrb[0].mxu0
  %v2778 = vadd.f32 %v2606, %v2777
  %v2779 = vpop.f32.mrb[0].mxu0
  %2780 = vmatprep.mubr.f32.mxu0 0.0
  %2781 = vmatmul.mubr.f32.gmra.mrb[0].mxu0 %v2645
  %v2782 = vpop.f32.mrb[0].mxu0
  %v2783 = vadd.f32 %v2606, %v2782
  %v2784 = vpop.f32.mrb[0].mxu0
  %2785 = vmatprep.mubr.f32.mxu0 0.0
  %2786 = vmatmul.mubr.f32.gmra.mrb[0].mxu0 %v2648
  %v2787 = vpop.f32.mrb[0].mxu0
  %v2788 = vadd.f32 %v2606, %v2787
  %v2789 = vpop.f32.mrb[0].mxu0
  %2790 = vmatprep.mubr.f32.mxu0 0.0
  %2791 = vmatmul.mubr.f32.gmra.mrb[0].mxu0 %v2651
  %v2792 = vpop.f32.mrb[0].mxu0
  %v2793 = vadd.f32 %v2606, %v2792
  %v2794 = vpop.f32.mrb[0].mxu0
  %2795 = vmatprep.mubr.f32.mxu0 0.0
  %2796 = vmatmul.mubr.f32.gmra.mrb[0].mxu0 %v2654
  %v2797 = vpop.f32.mrb[0].mxu0
  %v2798 = vadd.f32 %v2606, %v2797
  %v2799 = vpop.f32.mrb[0].mxu0
  %2800 = vdwg.mxu0
  %v2801 = vld [vmem:[%s12] sm:$0xff]
  %v2802 = vld [vmem:[%s12 + $0x8] sm:$0xff]
  %v2803 = vld [vmem:[%s12 + $0x10] sm:$0xff]
  %v2804 = vld [vmem:[%s12 + $0x18] sm:$0xff]
  %v2805 = vld [vmem:[%s14] sm:$0x1]
  %2806 = vmatprep.subr.mxu0 0.0
  %2807 = vmatpush1.msra.mxu0 %v2801
  %2808 = vmatprep.subr.mxu0 0.0
  %2809 = vmatpush1.msra.mxu0 %v2802
  %2810 = vmatprep.subr.mxu0 0.0
  %2811 = vmatpush1.msra.mxu0 %v2803
  %2812 = vmatprep.subr.mxu0 0.0
  %2813 = vmatpush1.msra.mxu0 %v2804
  %2814 = vmatprep.subr.mxu0 0.0
  %2815 = vmatpush1.msra.mxu0 0.0
  %2816 = vmatprep.subr.mxu0 0.0
  %2817 = vmatpush1.msra.mxu0 0.0
  %2818 = vmatprep.subr.mxu0 0.0
  %2819 = vmatpush1.msra.mxu0 0.0
  %2820 = vmatprep.subr.mxu0 0.0
  %2821 = vmatpush1.msra.mxu0 0.0
  %2822 = vmatprep.subr.mxu0 0.0
  %2823 = vmatpush1.msra.mxu0 0.0
  %2824 = vmatprep.subr.mxu0 0.0
  %2825 = vmatpush1.msra.mxu0 0.0
  %2826 = vmatprep.subr.mxu0 0.0
  %2827 = vmatpush1.msra.mxu0 0.0
  %2828 = vmatprep.subr.mxu0 0.0
  %2829 = vmatpush1.msra.mxu0 0.0
  %2830 = vmatprep.subr.mxu0 0.0
  %2831 = vmatpush1.msra.mxu0 0.0
  %2832 = vmatprep.subr.mxu0 0.0
  %2833 = vmatpush1.msra.mxu0 0.0
  %2834 = vmatprep.subr.mxu0 0.0
  %2835 = vmatpush1.msra.mxu0 0.0
  %2836 = vmatprep.subr.mxu0 0.0
  %2837 = vmatpush1.msra.mxu0 0.0
  %2838 = vmatprep.subr.mxu0 0.0
  %2839 = vmatpush1.msra.mxu0 0.0
  %2840 = vmatprep.subr.mxu0 0.0
  %2841 = vmatpush1.msra.mxu0 0.0
  %2842 = vmatprep.subr.mxu0 0.0
  %2843 = vmatpush1.msra.mxu0 0.0
  %2844 = vmatprep.subr.mxu0 0.0
  %2845 = vmatpush1.msra.mxu0 0.0
  %2846 = vmatprep.subr.mxu0 0.0
  %2847 = vmatpush1.msra.mxu0 0.0
  %2848 = vmatprep.subr.mxu0 0.0
  %2849 = vmatpush1.msra.mxu0 0.0
  %2850 = vmatprep.subr.mxu0 0.0
  %2851 = vmatpush1.msra.mxu0 0.0
  %2852 = vmatprep.subr.mxu0 0.0
  %2853 = vmatpush1.msra.mxu0 0.0
  %2854 = vmatprep.subr.mxu0 0.0
  %2855 = vmatpush1.msra.mxu0 0.0
  %2856 = vmatprep.subr.mxu0 0.0
  %2857 = vmatpush1.msra.mxu0 0.0
  %2858 = vmatprep.subr.mxu0 0.0
  %2859 = vmatpush1.msra.mxu0 0.0
  %2860 = vmatprep.subr.mxu0 0.0
  %2861 = vmatpush1.msra.mxu0 0.0
  %2862 = vmatprep.subr.mxu0 0.0
  %2863 = vmatpush1.msra.mxu0 0.0
  %2864 = vmatprep.subr.mxu0 0.0
  %2865 = vmatpush1.msra.mxu0 0.0
  %2866 = vmatprep.subr.mxu0 0.0
  %2867 = vmatpush1.msra.mxu0 0.0
  %2868 = vmatprep.subr.mxu0 0.0
  %2869 = vmatpush1.msra.mxu0 0.0
  %2870 = vmatprep.mubr.f32.mxu0 0.0
  %2871 = vmatmul.mubr.f32.gmra.mrb[0].mxu0 %v754
  %v2872 = vpop.f32.mrb[0].mxu0
  %v2873 = vadd.f32 0.0, %v2872
  %v2874 = vpop.f32.mrb[0].mxu0
  %2875 = vdwg.mxu0
  %v2876 = vadd.f32 %v2723, %v2873
  %v2877 = vmul.f32 %v2876, 0.5
  %v2878 = vtanh.pop %v2877
  %v2879 = vadd.f32 %v2878, 1.0
  %v2880 = vmul.f32 %v2879, 0.5
  %v2882 = vlaneseq
  %v2883 = vshrl.u32 %v2882, 7
  %v2884 = vsub.s32 0, %v2883
  %v2885 = vrot.slane %v2805, %v2884
  %2886 = vrot.lane.b32.xlu0 %v2885, 64
  %v2887 = vpop.permute.xlu0 %2886
  %v2889 = vadd.f32 %v2873, %v2887
  %2891 = vrot.lane.b32.xlu0 %v2889, 64
  %v2892 = vpop.permute.xlu0 %2891
  %v2894 = vmul.f32 %v2880, %v2892
  %2896 = vrot.lane.b32.xlu0 %v2894, 64
  %v2897 = vpop.permute.xlu0 %2896
  %v2899 = vadd.f32 %v2723, %v2897
  %v2900 = vtanh.pop %v2899
  %v2901 = vsub.f32 0.0, %v2900
  %2903 = vrot.lane.b32.xlu0 %v2901, 96
  %v2904 = vpop.permute.xlu0 %2903
  %v2906 = vmul.f32 %v2880, %v2904
  %2908 = vrot.lane.b32.xlu0 %v2906, 32
  %v2909 = vpop.permute.xlu0 %2908
  %v2911 = vadd.f32 %v2900, %v2909
  %2913 = vrot.lane.b32.xlu0 %v2911, 64
  %v2914 = vpop.permute.xlu0 %2913
  %v2915 = vsel %vm752, %v2914, 0
  %2917 = vmatprep.subr.mxu0 0.0
  %2918 = vmatpush1.msra.mxu0 %v2801
  %2919 = vmatprep.subr.mxu0 0.0
  %2920 = vmatpush1.msra.mxu0 %v2802
  %2921 = vmatprep.subr.mxu0 0.0
  %2922 = vmatpush1.msra.mxu0 %v2803
  %2923 = vmatprep.subr.mxu0 0.0
  %2924 = vmatpush1.msra.mxu0 %v2804
  %2925 = vmatprep.subr.mxu0 0.0
  %2926 = vmatpush1.msra.mxu0 0.0
  %2927 = vmatprep.subr.mxu0 0.0
  %2928 = vmatpush1.msra.mxu0 0.0
  %2929 = vmatprep.subr.mxu0 0.0
  %2930 = vmatpush1.msra.mxu0 0.0
  %2931 = vmatprep.subr.mxu0 0.0
  %2932 = vmatpush1.msra.mxu0 0.0
  %2933 = vmatprep.subr.mxu0 0.0
  %2934 = vmatpush1.msra.mxu0 0.0
  %2935 = vmatprep.subr.mxu0 0.0
  %2936 = vmatpush1.msra.mxu0 0.0
  %2937 = vmatprep.subr.mxu0 0.0
  %2938 = vmatpush1.msra.mxu0 0.0
  %2939 = vmatprep.subr.mxu0 0.0
  %2940 = vmatpush1.msra.mxu0 0.0
  %2941 = vmatprep.subr.mxu0 0.0
  %2942 = vmatpush1.msra.mxu0 0.0
  %2943 = vmatprep.subr.mxu0 0.0
  %2944 = vmatpush1.msra.mxu0 0.0
  %2945 = vmatprep.subr.mxu0 0.0
  %2946 = vmatpush1.msra.mxu0 0.0
  %2947 = vmatprep.subr.mxu0 0.0
  %2948 = vmatpush1.msra.mxu0 0.0
  %2949 = vmatprep.subr.mxu0 0.0
  %2950 = vmatpush1.msra.mxu0 0.0
  %2951 = vmatprep.subr.mxu0 0.0
  %2952 = vmatpush1.msra.mxu0 0.0
  %2953 = vmatprep.subr.mxu0 0.0
  %2954 = vmatpush1.msra.mxu0 0.0
  %2955 = vmatprep.subr.mxu0 0.0
  %2956 = vmatpush1.msra.mxu0 0.0
  %2957 = vmatprep.subr.mxu0 0.0
  %2958 = vmatpush1.msra.mxu0 0.0
  %2959 = vmatprep.subr.mxu0 0.0
  %2960 = vmatpush1.msra.mxu0 0.0
  %2961 = vmatprep.subr.mxu0 0.0
  %2962 = vmatpush1.msra.mxu0 0.0
  %2963 = vmatprep.subr.mxu0 0.0
  %2964 = vmatpush1.msra.mxu0 0.0
  %2965 = vmatprep.subr.mxu0 0.0
  %2966 = vmatpush1.msra.mxu0 0.0
  %2967 = vmatprep.subr.mxu0 0.0
  %2968 = vmatpush1.msra.mxu0 0.0
  %2969 = vmatprep.subr.mxu0 0.0
  %2970 = vmatpush1.msra.mxu0 0.0
  %2971 = vmatprep.subr.mxu0 0.0
  %2972 = vmatpush1.msra.mxu0 0.0
  %2973 = vmatprep.subr.mxu0 0.0
  %2974 = vmatpush1.msra.mxu0 0.0
  %2975 = vmatprep.subr.mxu0 0.0
  %2976 = vmatpush1.msra.mxu0 0.0
  %2977 = vmatprep.subr.mxu0 0.0
  %2978 = vmatpush1.msra.mxu0 0.0
  %2979 = vmatprep.subr.mxu0 0.0
  %2980 = vmatpush1.msra.mxu0 0.0
  %2981 = vmatprep.mubr.f32.mxu0 0.0
  %2982 = vmatmul.mubr.f32.gmra.mrb[0].mxu0 %v2915
  %v2983 = vpop.f32.mrb[0].mxu0
  %v2984 = vadd.f32 0.0, %v2983
  %v2985 = vpop.f32.mrb[0].mxu0
  %2986 = vdwg.mxu0
  %v2987 = vadd.f32 %v2728, %v2984
  %v2988 = vmul.f32 %v2987, 0.5
  %v2989 = vtanh.pop %v2988
  %v2990 = vadd.f32 %v2989, 1.0
  %v2991 = vmul.f32 %v2990, 0.5
  %v2992 = vadd.f32 %v2984, %v2887
  %2994 = vrot.lane.b32.xlu0 %v2992, 64
  %v2995 = vpop.permute.xlu0 %2994
  %v2997 = vmul.f32 %v2991, %v2995
  %2999 = vrot.lane.b32.xlu0 %v2997, 64
  %v3000 = vpop.permute.xlu0 %2999
  %v3002 = vadd.f32 %v2728, %v3000
  %v3003 = vtanh.pop %v3002
  %v3004 = vsub.f32 %v2911, %v3003
  %3006 = vrot.lane.b32.xlu0 %v3004, 96
  %v3007 = vpop.permute.xlu0 %3006
  %v3009 = vmul.f32 %v2991, %v3007
  %3011 = vrot.lane.b32.xlu0 %v3009, 32
  %v3012 = vpop.permute.xlu0 %3011
  %v3014 = vadd.f32 %v3003, %v3012
  %3016 = vrot.lane.b32.xlu0 %v3014, 64
  %v3017 = vpop.permute.xlu0 %3016
  %v3018 = vsel %vm752, %v3017, 0
  %3020 = vmatprep.subr.mxu0 0.0
  %3021 = vmatpush1.msra.mxu0 %v2801
  %3022 = vmatprep.subr.mxu0 0.0
  %3023 = vmatpush1.msra.mxu0 %v2802
  %3024 = vmatprep.subr.mxu0 0.0
  %3025 = vmatpush1.msra.mxu0 %v2803
  %3026 = vmatprep.subr.mxu0 0.0
  %3027 = vmatpush1.msra.mxu0 %v2804
  %3028 = vmatprep.subr.mxu0 0.0
  %3029 = vmatpush1.msra.mxu0 0.0
  %3030 = vmatprep.subr.mxu0 0.0
  %3031 = vmatpush1.msra.mxu0 0.0
  %3032 = vmatprep.subr.mxu0 0.0
  %3033 = vmatpush1.msra.mxu0 0.0
  %3034 = vmatprep.subr.mxu0 0.0
  %3035 = vmatpush1.msra.mxu0 0.0
  %3036 = vmatprep.subr.mxu0 0.0
  %3037 = vmatpush1.msra.mxu0 0.0
  %3038 = vmatprep.subr.mxu0 0.0
  %3039 = vmatpush1.msra.mxu0 0.0
  %3040 = vmatprep.subr.mxu0 0.0
  %3041 = vmatpush1.msra.mxu0 0.0
  %3042 = vmatprep.subr.mxu0 0.0
  %3043 = vmatpush1.msra.mxu0 0.0
  %3044 = vmatprep.subr.mxu0 0.0
  %3045 = vmatpush1.msra.mxu0 0.0
  %3046 = vmatprep.subr.mxu0 0.0
  %3047 = vmatpush1.msra.mxu0 0.0
  %3048 = vmatprep.subr.mxu0 0.0
  %3049 = vmatpush1.msra.mxu0 0.0
  %3050 = vmatprep.subr.mxu0 0.0
  %3051 = vmatpush1.msra.mxu0 0.0
  %3052 = vmatprep.subr.mxu0 0.0
  %3053 = vmatpush1.msra.mxu0 0.0
  %3054 = vmatprep.subr.mxu0 0.0
  %3055 = vmatpush1.msra.mxu0 0.0
  %3056 = vmatprep.subr.mxu0 0.0
  %3057 = vmatpush1.msra.mxu0 0.0
  %3058 = vmatprep.subr.mxu0 0.0
  %3059 = vmatpush1.msra.mxu0 0.0
  %3060 = vmatprep.subr.mxu0 0.0
  %3061 = vmatpush1.msra.mxu0 0.0
  %3062 = vmatprep.subr.mxu0 0.0
  %3063 = vmatpush1.msra.mxu0 0.0
  %3064 = vmatprep.subr.mxu0 0.0
  %3065 = vmatpush1.msra.mxu0 0.0
  %3066 = vmatprep.subr.mxu0 0.0
  %3067 = vmatpush1.msra.mxu0 0.0
  %3068 = vmatprep.subr.mxu0 0.0
  %3069 = vmatpush1.msra.mxu0 0.0
  %3070 = vmatprep.subr.mxu0 0.0
  %3071 = vmatpush1.msra.mxu0 0.0
  %3072 = vmatprep.subr.mxu0 0.0
  %3073 = vmatpush1.msra.mxu0 0.0
  %3074 = vmatprep.subr.mxu0 0.0
  %3075 = vmatpush1.msra.mxu0 0.0
  %3076 = vmatprep.subr.mxu0 0.0
  %3077 = vmatpush1.msra.mxu0 0.0
  %3078 = vmatprep.subr.mxu0 0.0
  %3079 = vmatpush1.msra.mxu0 0.0
  %3080 = vmatprep.subr.mxu0 0.0
  %3081 = vmatpush1.msra.mxu0 0.0
  %3082 = vmatprep.subr.mxu0 0.0
  %3083 = vmatpush1.msra.mxu0 0.0
  %3084 = vmatprep.mubr.f32.mxu0 0.0
  %3085 = vmatmul.mubr.f32.gmra.mrb[0].mxu0 %v3018
  %v3086 = vpop.f32.mrb[0].mxu0
  %v3087 = vadd.f32 0.0, %v3086
  %v3088 = vpop.f32.mrb[0].mxu0
  %3089 = vdwg.mxu0
  %v3090 = vadd.f32 %v2733, %v3087
  %v3091 = vmul.f32 %v3090, 0.5
  %v3092 = vtanh.pop %v3091
  %v3093 = vadd.f32 %v3092, 1.0
  %v3094 = vmul.f32 %v3093, 0.5
  %v3095 = vadd.f32 %v3087, %v2887
  %3097 = vrot.lane.b32.xlu0 %v3095, 64
  %v3098 = vpop.permute.xlu0 %3097
  %v3100 = vmul.f32 %v3094, %v3098
  %3102 = vrot.lane.b32.xlu0 %v3100, 64
  %v3103 = vpop.permute.xlu0 %3102
  %v3105 = vadd.f32 %v2733, %v3103
  %v3106 = vtanh.pop %v3105
  %v3107 = vsub.f32 %v3014, %v3106
  %3109 = vrot.lane.b32.xlu0 %v3107, 96
  %v3110 = vpop.permute.xlu0 %3109
  %v3112 = vmul.f32 %v3094, %v3110
  %3114 = vrot.lane.b32.xlu0 %v3112, 32
  %v3115 = vpop.permute.xlu0 %3114
  %v3117 = vadd.f32 %v3106, %v3115
  %3119 = vrot.lane.b32.xlu0 %v3117, 64
  %v3120 = vpop.permute.xlu0 %3119
  %v3121 = vsel %vm752, %v3120, 0
  %3123 = vmatprep.subr.mxu0 0.0
  %3124 = vmatpush1.msra.mxu0 %v2801
  %3125 = vmatprep.subr.mxu0 0.0
  %3126 = vmatpush1.msra.mxu0 %v2802
  %3127 = vmatprep.subr.mxu0 0.0
  %3128 = vmatpush1.msra.mxu0 %v2803
  %3129 = vmatprep.subr.mxu0 0.0
  %3130 = vmatpush1.msra.mxu0 %v2804
  %3131 = vmatprep.subr.mxu0 0.0
  %3132 = vmatpush1.msra.mxu0 0.0
  %3133 = vmatprep.subr.mxu0 0.0
  %3134 = vmatpush1.msra.mxu0 0.0
  %3135 = vmatprep.subr.mxu0 0.0
  %3136 = vmatpush1.msra.mxu0 0.0
  %3137 = vmatprep.subr.mxu0 0.0
  %3138 = vmatpush1.msra.mxu0 0.0
  %3139 = vmatprep.subr.mxu0 0.0
  %3140 = vmatpush1.msra.mxu0 0.0
  %3141 = vmatprep.subr.mxu0 0.0
  %3142 = vmatpush1.msra.mxu0 0.0
  %3143 = vmatprep.subr.mxu0 0.0
  %3144 = vmatpush1.msra.mxu0 0.0
  %3145 = vmatprep.subr.mxu0 0.0
  %3146 = vmatpush1.msra.mxu0 0.0
  %3147 = vmatprep.subr.mxu0 0.0
  %3148 = vmatpush1.msra.mxu0 0.0
  %3149 = vmatprep.subr.mxu0 0.0
  %3150 = vmatpush1.msra.mxu0 0.0
  %3151 = vmatprep.subr.mxu0 0.0
  %3152 = vmatpush1.msra.mxu0 0.0
  %3153 = vmatprep.subr.mxu0 0.0
  %3154 = vmatpush1.msra.mxu0 0.0
  %3155 = vmatprep.subr.mxu0 0.0
  %3156 = vmatpush1.msra.mxu0 0.0
  %3157 = vmatprep.subr.mxu0 0.0
  %3158 = vmatpush1.msra.mxu0 0.0
  %3159 = vmatprep.subr.mxu0 0.0
  %3160 = vmatpush1.msra.mxu0 0.0
  %3161 = vmatprep.subr.mxu0 0.0
  %3162 = vmatpush1.msra.mxu0 0.0
  %3163 = vmatprep.subr.mxu0 0.0
  %3164 = vmatpush1.msra.mxu0 0.0
  %3165 = vmatprep.subr.mxu0 0.0
  %3166 = vmatpush1.msra.mxu0 0.0
  %3167 = vmatprep.subr.mxu0 0.0
  %3168 = vmatpush1.msra.mxu0 0.0
  %3169 = vmatprep.subr.mxu0 0.0
  %3170 = vmatpush1.msra.mxu0 0.0
  %3171 = vmatprep.subr.mxu0 0.0
  %3172 = vmatpush1.msra.mxu0 0.0
  %3173 = vmatprep.subr.mxu0 0.0
  %3174 = vmatpush1.msra.mxu0 0.0
  %3175 = vmatprep.subr.mxu0 0.0
  %3176 = vmatpush1.msra.mxu0 0.0
  %3177 = vmatprep.subr.mxu0 0.0
  %3178 = vmatpush1.msra.mxu0 0.0
  %3179 = vmatprep.subr.mxu0 0.0
  %3180 = vmatpush1.msra.mxu0 0.0
  %3181 = vmatprep.subr.mxu0 0.0
  %3182 = vmatpush1.msra.mxu0 0.0
  %3183 = vmatprep.subr.mxu0 0.0
  %3184 = vmatpush1.msra.mxu0 0.0
  %3185 = vmatprep.subr.mxu0 0.0
  %3186 = vmatpush1.msra.mxu0 0.0
  %3187 = vmatprep.mubr.f32.mxu0 0.0
  %3188 = vmatmul.mubr.f32.gmra.mrb[0].mxu0 %v3121
  %v3189 = vpop.f32.mrb[0].mxu0
  %v3190 = vadd.f32 0.0, %v3189
  %v3191 = vpop.f32.mrb[0].mxu0
  %3192 = vdwg.mxu0
  %v3193 = vadd.f32 %v2738, %v3190
  %v3194 = vmul.f32 %v3193, 0.5
  %v3195 = vtanh.pop %v3194
  %v3196 = vadd.f32 %v3195, 1.0
  %v3197 = vmul.f32 %v3196, 0.5
  %v3198 = vadd.f32 %v3190, %v2887
  %3200 = vrot.lane.b32.xlu0 %v3198, 64
  %v3201 = vpop.permute.xlu0 %3200
  %v3203 = vmul.f32 %v3197, %v3201
  %3205 = vrot.lane.b32.xlu0 %v3203, 64
  %v3206 = vpop.permute.xlu0 %3205
  %v3208 = vadd.f32 %v2738, %v3206
  %v3209 = vtanh.pop %v3208
  %v3210 = vsub.f32 %v3117, %v3209
  %3212 = vrot.lane.b32.xlu0 %v3210, 96
  %v3213 = vpop.permute.xlu0 %3212
  %v3215 = vmul.f32 %v3197, %v3213
  %3217 = vrot.lane.b32.xlu0 %v3215, 32
  %v3218 = vpop.permute.xlu0 %3217
  %v3220 = vadd.f32 %v3209, %v3218
  %3222 = vrot.lane.b32.xlu0 %v3220, 64
  %v3223 = vpop.permute.xlu0 %3222
  %v3224 = vsel %vm752, %v3223, 0
  %3226 = vmatprep.subr.mxu0 0.0
  %3227 = vmatpush1.msra.mxu0 %v2801
  %3228 = vmatprep.subr.mxu0 0.0
  %3229 = vmatpush1.msra.mxu0 %v2802
  %3230 = vmatprep.subr.mxu0 0.0
  %3231 = vmatpush1.msra.mxu0 %v2803
  %3232 = vmatprep.subr.mxu0 0.0
  %3233 = vmatpush1.msra.mxu0 %v2804
  %3234 = vmatprep.subr.mxu0 0.0
  %3235 = vmatpush1.msra.mxu0 0.0
  %3236 = vmatprep.subr.mxu0 0.0
  %3237 = vmatpush1.msra.mxu0 0.0
  %3238 = vmatprep.subr.mxu0 0.0
  %3239 = vmatpush1.msra.mxu0 0.0
  %3240 = vmatprep.subr.mxu0 0.0
  %3241 = vmatpush1.msra.mxu0 0.0
  %3242 = vmatprep.subr.mxu0 0.0
  %3243 = vmatpush1.msra.mxu0 0.0
  %3244 = vmatprep.subr.mxu0 0.0
  %3245 = vmatpush1.msra.mxu0 0.0
  %3246 = vmatprep.subr.mxu0 0.0
  %3247 = vmatpush1.msra.mxu0 0.0
  %3248 = vmatprep.subr.mxu0 0.0
  %3249 = vmatpush1.msra.mxu0 0.0
  %3250 = vmatprep.subr.mxu0 0.0
  %3251 = vmatpush1.msra.mxu0 0.0
  %3252 = vmatprep.subr.mxu0 0.0
  %3253 = vmatpush1.msra.mxu0 0.0
  %3254 = vmatprep.subr.mxu0 0.0
  %3255 = vmatpush1.msra.mxu0 0.0
  %3256 = vmatprep.subr.mxu0 0.0
  %3257 = vmatpush1.msra.mxu0 0.0
  %3258 = vmatprep.subr.mxu0 0.0
  %3259 = vmatpush1.msra.mxu0 0.0
  %3260 = vmatprep.subr.mxu0 0.0
  %3261 = vmatpush1.msra.mxu0 0.0
  %3262 = vmatprep.subr.mxu0 0.0
  %3263 = vmatpush1.msra.mxu0 0.0
  %3264 = vmatprep.subr.mxu0 0.0
  %3265 = vmatpush1.msra.mxu0 0.0
  %3266 = vmatprep.subr.mxu0 0.0
  %3267 = vmatpush1.msra.mxu0 0.0
  %3268 = vmatprep.subr.mxu0 0.0
  %3269 = vmatpush1.msra.mxu0 0.0
  %3270 = vmatprep.subr.mxu0 0.0
  %3271 = vmatpush1.msra.mxu0 0.0
  %3272 = vmatprep.subr.mxu0 0.0
  %3273 = vmatpush1.msra.mxu0 0.0
  %3274 = vmatprep.subr.mxu0 0.0
  %3275 = vmatpush1.msra.mxu0 0.0
  %3276 = vmatprep.subr.mxu0 0.0
  %3277 = vmatpush1.msra.mxu0 0.0
  %3278 = vmatprep.subr.mxu0 0.0
  %3279 = vmatpush1.msra.mxu0 0.0
  %3280 = vmatprep.subr.mxu0 0.0
  %3281 = vmatpush1.msra.mxu0 0.0
  %3282 = vmatprep.subr.mxu0 0.0
  %3283 = vmatpush1.msra.mxu0 0.0
  %3284 = vmatprep.subr.mxu0 0.0
  %3285 = vmatpush1.msra.mxu0 0.0
  %3286 = vmatprep.subr.mxu0 0.0
  %3287 = vmatpush1.msra.mxu0 0.0
  %3288 = vmatprep.subr.mxu0 0.0
  %3289 = vmatpush1.msra.mxu0 0.0
  %3290 = vmatprep.mubr.f32.mxu0 0.0
  %3291 = vmatmul.mubr.f32.gmra.mrb[0].mxu0 %v3224
  %v3292 = vpop.f32.mrb[0].mxu0
  %v3293 = vadd.f32 0.0, %v3292
  %v3294 = vpop.f32.mrb[0].mxu0
  %3295 = vdwg.mxu0
  %v3296 = vadd.f32 %v2743, %v3293
  %v3297 = vmul.f32 %v3296, 0.5
  %v3298 = vtanh.pop %v3297
  %v3299 = vadd.f32 %v3298, 1.0
  %v3300 = vmul.f32 %v3299, 0.5
  %v3301 = vadd.f32 %v3293, %v2887
  %3303 = vrot.lane.b32.xlu0 %v3301, 64
  %v3304 = vpop.permute.xlu0 %3303
  %v3306 = vmul.f32 %v3300, %v3304
  %3308 = vrot.lane.b32.xlu0 %v3306, 64
  %v3309 = vpop.permute.xlu0 %3308
  %v3311 = vadd.f32 %v2743, %v3309
  %v3312 = vtanh.pop %v3311
  %v3313 = vsub.f32 %v3220, %v3312
  %3315 = vrot.lane.b32.xlu0 %v3313, 96
  %v3316 = vpop.permute.xlu0 %3315
  %v3318 = vmul.f32 %v3300, %v3316
  %3320 = vrot.lane.b32.xlu0 %v3318, 32
  %v3321 = vpop.permute.xlu0 %3320
  %v3323 = vadd.f32 %v3312, %v3321
  %3325 = vrot.lane.b32.xlu0 %v3323, 64
  %v3326 = vpop.permute.xlu0 %3325
  %v3327 = vsel %vm752, %v3326, 0
  %3329 = vmatprep.subr.mxu0 0.0
  %3330 = vmatpush1.msra.mxu0 %v2801
  %3331 = vmatprep.subr.mxu0 0.0
  %3332 = vmatpush1.msra.mxu0 %v2802
  %3333 = vmatprep.subr.mxu0 0.0
  %3334 = vmatpush1.msra.mxu0 %v2803
  %3335 = vmatprep.subr.mxu0 0.0
  %3336 = vmatpush1.msra.mxu0 %v2804
  %3337 = vmatprep.subr.mxu0 0.0
  %3338 = vmatpush1.msra.mxu0 0.0
  %3339 = vmatprep.subr.mxu0 0.0
  %3340 = vmatpush1.msra.mxu0 0.0
  %3341 = vmatprep.subr.mxu0 0.0
  %3342 = vmatpush1.msra.mxu0 0.0
  %3343 = vmatprep.subr.mxu0 0.0
  %3344 = vmatpush1.msra.mxu0 0.0
  %3345 = vmatprep.subr.mxu0 0.0
  %3346 = vmatpush1.msra.mxu0 0.0
  %3347 = vmatprep.subr.mxu0 0.0
  %3348 = vmatpush1.msra.mxu0 0.0
  %3349 = vmatprep.subr.mxu0 0.0
  %3350 = vmatpush1.msra.mxu0 0.0
  %3351 = vmatprep.subr.mxu0 0.0
  %3352 = vmatpush1.msra.mxu0 0.0
  %3353 = vmatprep.subr.mxu0 0.0
  %3354 = vmatpush1.msra.mxu0 0.0
  %3355 = vmatprep.subr.mxu0 0.0
  %3356 = vmatpush1.msra.mxu0 0.0
  %3357 = vmatprep.subr.mxu0 0.0
  %3358 = vmatpush1.msra.mxu0 0.0
  %3359 = vmatprep.subr.mxu0 0.0
  %3360 = vmatpush1.msra.mxu0 0.0
  %3361 = vmatprep.subr.mxu0 0.0
  %3362 = vmatpush1.msra.mxu0 0.0
  %3363 = vmatprep.subr.mxu0 0.0
  %3364 = vmatpush1.msra.mxu0 0.0
  %3365 = vmatprep.subr.mxu0 0.0
  %3366 = vmatpush1.msra.mxu0 0.0
  %3367 = vmatprep.subr.mxu0 0.0
  %3368 = vmatpush1.msra.mxu0 0.0
  %3369 = vmatprep.subr.mxu0 0.0
  %3370 = vmatpush1.msra.mxu0 0.0
  %3371 = vmatprep.subr.mxu0 0.0
  %3372 = vmatpush1.msra.mxu0 0.0
  %3373 = vmatprep.subr.mxu0 0.0
  %3374 = vmatpush1.msra.mxu0 0.0
  %3375 = vmatprep.subr.mxu0 0.0
  %3376 = vmatpush1.msra.mxu0 0.0
  %3377 = vmatprep.subr.mxu0 0.0
  %3378 = vmatpush1.msra.mxu0 0.0
  %3379 = vmatprep.subr.mxu0 0.0
  %3380 = vmatpush1.msra.mxu0 0.0
  %3381 = vmatprep.subr.mxu0 0.0
  %3382 = vmatpush1.msra.mxu0 0.0
  %3383 = vmatprep.subr.mxu0 0.0
  %3384 = vmatpush1.msra.mxu0 0.0
  %3385 = vmatprep.subr.mxu0 0.0
  %3386 = vmatpush1.msra.mxu0 0.0
  %3387 = vmatprep.subr.mxu0 0.0
  %3388 = vmatpush1.msra.mxu0 0.0
  %3389 = vmatprep.subr.mxu0 0.0
  %3390 = vmatpush1.msra.mxu0 0.0
  %3391 = vmatprep.subr.mxu0 0.0
  %3392 = vmatpush1.msra.mxu0 0.0
  %3393 = vmatprep.mubr.f32.mxu0 0.0
  %3394 = vmatmul.mubr.f32.gmra.mrb[0].mxu0 %v3327
  %v3395 = vpop.f32.mrb[0].mxu0
  %v3396 = vadd.f32 0.0, %v3395
  %v3397 = vpop.f32.mrb[0].mxu0
  %3398 = vdwg.mxu0
  %v3399 = vadd.f32 %v2748, %v3396
  %v3400 = vmul.f32 %v3399, 0.5
  %v3401 = vtanh.pop %v3400
  %v3402 = vadd.f32 %v3401, 1.0
  %v3403 = vmul.f32 %v3402, 0.5
  %v3404 = vadd.f32 %v3396, %v2887
  %3406 = vrot.lane.b32.xlu0 %v3404, 64
  %v3407 = vpop.permute.xlu0 %3406
  %v3409 = vmul.f32 %v3403, %v3407
  %3411 = vrot.lane.b32.xlu0 %v3409, 64
  %v3412 = vpop.permute.xlu0 %3411
  %v3414 = vadd.f32 %v2748, %v3412
  %v3415 = vtanh.pop %v3414
  %v3416 = vsub.f32 %v3323, %v3415
  %3418 = vrot.lane.b32.xlu0 %v3416, 96
  %v3419 = vpop.permute.xlu0 %3418
  %v3421 = vmul.f32 %v3403, %v3419
  %3423 = vrot.lane.b32.xlu0 %v3421, 32
  %v3424 = vpop.permute.xlu0 %3423
  %v3426 = vadd.f32 %v3415, %v3424
  %3428 = vrot.lane.b32.xlu0 %v3426, 64
  %v3429 = vpop.permute.xlu0 %3428
  %v3430 = vsel %vm752, %v3429, 0
  %3432 = vmatprep.subr.mxu0 0.0
  %3433 = vmatpush1.msra.mxu0 %v2801
  %3434 = vmatprep.subr.mxu0 0.0
  %3435 = vmatpush1.msra.mxu0 %v2802
  %3436 = vmatprep.subr.mxu0 0.0
  %3437 = vmatpush1.msra.mxu0 %v2803
  %3438 = vmatprep.subr.mxu0 0.0
  %3439 = vmatpush1.msra.mxu0 %v2804
  %3440 = vmatprep.subr.mxu0 0.0
  %3441 = vmatpush1.msra.mxu0 0.0
  %3442 = vmatprep.subr.mxu0 0.0
  %3443 = vmatpush1.msra.mxu0 0.0
  %3444 = vmatprep.subr.mxu0 0.0
  %3445 = vmatpush1.msra.mxu0 0.0
  %3446 = vmatprep.subr.mxu0 0.0
  %3447 = vmatpush1.msra.mxu0 0.0
  %3448 = vmatprep.subr.mxu0 0.0
  %3449 = vmatpush1.msra.mxu0 0.0
  %3450 = vmatprep.subr.mxu0 0.0
  %3451 = vmatpush1.msra.mxu0 0.0
  %3452 = vmatprep.subr.mxu0 0.0
  %3453 = vmatpush1.msra.mxu0 0.0
  %3454 = vmatprep.subr.mxu0 0.0
  %3455 = vmatpush1.msra.mxu0 0.0
  %3456 = vmatprep.subr.mxu0 0.0
  %3457 = vmatpush1.msra.mxu0 0.0
  %3458 = vmatprep.subr.mxu0 0.0
  %3459 = vmatpush1.msra.mxu0 0.0
  %3460 = vmatprep.subr.mxu0 0.0
  %3461 = vmatpush1.msra.mxu0 0.0
  %3462 = vmatprep.subr.mxu0 0.0
  %3463 = vmatpush1.msra.mxu0 0.0
  %3464 = vmatprep.subr.mxu0 0.0
  %3465 = vmatpush1.msra.mxu0 0.0
  %3466 = vmatprep.subr.mxu0 0.0
  %3467 = vmatpush1.msra.mxu0 0.0
  %3468 = vmatprep.subr.mxu0 0.0
  %3469 = vmatpush1.msra.mxu0 0.0
  %3470 = vmatprep.subr.mxu0 0.0
  %3471 = vmatpush1.msra.mxu0 0.0
  %3472 = vmatprep.subr.mxu0 0.0
  %3473 = vmatpush1.msra.mxu0 0.0
  %3474 = vmatprep.subr.mxu0 0.0
  %3475 = vmatpush1.msra.mxu0 0.0
  %3476 = vmatprep.subr.mxu0 0.0
  %3477 = vmatpush1.msra.mxu0 0.0
  %3478 = vmatprep.subr.mxu0 0.0
  %3479 = vmatpush1.msra.mxu0 0.0
  %3480 = vmatprep.subr.mxu0 0.0
  %3481 = vmatpush1.msra.mxu0 0.0
  %3482 = vmatprep.subr.mxu0 0.0
  %3483 = vmatpush1.msra.mxu0 0.0
  %3484 = vmatprep.subr.mxu0 0.0
  %3485 = vmatpush1.msra.mxu0 0.0
  %3486 = vmatprep.subr.mxu0 0.0
  %3487 = vmatpush1.msra.mxu0 0.0
  %3488 = vmatprep.subr.mxu0 0.0
  %3489 = vmatpush1.msra.mxu0 0.0
  %3490 = vmatprep.subr.mxu0 0.0
  %3491 = vmatpush1.msra.mxu0 0.0
  %3492 = vmatprep.subr.mxu0 0.0
  %3493 = vmatpush1.msra.mxu0 0.0
  %3494 = vmatprep.subr.mxu0 0.0
  %3495 = vmatpush1.msra.mxu0 0.0
  %3496 = vmatprep.mubr.f32.mxu0 0.0
  %3497 = vmatmul.mubr.f32.gmra.mrb[0].mxu0 %v3430
  %v3498 = vpop.f32.mrb[0].mxu0
  %v3499 = vadd.f32 0.0, %v3498
  %v3500 = vpop.f32.mrb[0].mxu0
  %3501 = vdwg.mxu0
  %v3502 = vadd.f32 %v2753, %v3499
  %v3503 = vmul.f32 %v3502, 0.5
  %v3504 = vtanh.pop %v3503
  %v3505 = vadd.f32 %v3504, 1.0
  %v3506 = vmul.f32 %v3505, 0.5
  %v3507 = vadd.f32 %v3499, %v2887
  %3509 = vrot.lane.b32.xlu0 %v3507, 64
  %v3510 = vpop.permute.xlu0 %3509
  %v3512 = vmul.f32 %v3506, %v3510
  %3514 = vrot.lane.b32.xlu0 %v3512, 64
  %v3515 = vpop.permute.xlu0 %3514
  %v3517 = vadd.f32 %v2753, %v3515
  %v3518 = vtanh.pop %v3517
  %v3519 = vsub.f32 %v3426, %v3518
  %3521 = vrot.lane.b32.xlu0 %v3519, 96
  %v3522 = vpop.permute.xlu0 %3521
  %v3524 = vmul.f32 %v3506, %v3522
  %3526 = vrot.lane.b32.xlu0 %v3524, 32
  %v3527 = vpop.permute.xlu0 %3526
  %v3529 = vadd.f32 %v3518, %v3527
  %3531 = vrot.lane.b32.xlu0 %v3529, 64
  %v3532 = vpop.permute.xlu0 %3531
  %v3533 = vsel %vm752, %v3532, 0
  %3535 = vmatprep.subr.mxu0 0.0
  %3536 = vmatpush1.msra.mxu0 %v2801
  %3537 = vmatprep.subr.mxu0 0.0
  %3538 = vmatpush1.msra.mxu0 %v2802
  %3539 = vmatprep.subr.mxu0 0.0
  %3540 = vmatpush1.msra.mxu0 %v2803
  %3541 = vmatprep.subr.mxu0 0.0
  %3542 = vmatpush1.msra.mxu0 %v2804
  %3543 = vmatprep.subr.mxu0 0.0
  %3544 = vmatpush1.msra.mxu0 0.0
  %3545 = vmatprep.subr.mxu0 0.0
  %3546 = vmatpush1.msra.mxu0 0.0
  %3547 = vmatprep.subr.mxu0 0.0
  %3548 = vmatpush1.msra.mxu0 0.0
  %3549 = vmatprep.subr.mxu0 0.0
  %3550 = vmatpush1.msra.mxu0 0.0
  %3551 = vmatprep.subr.mxu0 0.0
  %3552 = vmatpush1.msra.mxu0 0.0
  %3553 = vmatprep.subr.mxu0 0.0
  %3554 = vmatpush1.msra.mxu0 0.0
  %3555 = vmatprep.subr.mxu0 0.0
  %3556 = vmatpush1.msra.mxu0 0.0
  %3557 = vmatprep.subr.mxu0 0.0
  %3558 = vmatpush1.msra.mxu0 0.0
  %3559 = vmatprep.subr.mxu0 0.0
  %3560 = vmatpush1.msra.mxu0 0.0
  %3561 = vmatprep.subr.mxu0 0.0
  %3562 = vmatpush1.msra.mxu0 0.0
  %3563 = vmatprep.subr.mxu0 0.0
  %3564 = vmatpush1.msra.mxu0 0.0
  %3565 = vmatprep.subr.mxu0 0.0
  %3566 = vmatpush1.msra.mxu0 0.0
  %3567 = vmatprep.subr.mxu0 0.0
  %3568 = vmatpush1.msra.mxu0 0.0
  %3569 = vmatprep.subr.mxu0 0.0
  %3570 = vmatpush1.msra.mxu0 0.0
  %3571 = vmatprep.subr.mxu0 0.0
  %3572 = vmatpush1.msra.mxu0 0.0
  %3573 = vmatprep.subr.mxu0 0.0
  %3574 = vmatpush1.msra.mxu0 0.0
  %3575 = vmatprep.subr.mxu0 0.0
  %3576 = vmatpush1.msra.mxu0 0.0
  %3577 = vmatprep.subr.mxu0 0.0
  %3578 = vmatpush1.msra.mxu0 0.0
  %3579 = vmatprep.subr.mxu0 0.0
  %3580 = vmatpush1.msra.mxu0 0.0
  %3581 = vmatprep.subr.mxu0 0.0
  %3582 = vmatpush1.msra.mxu0 0.0
  %3583 = vmatprep.subr.mxu0 0.0
  %3584 = vmatpush1.msra.mxu0 0.0
  %3585 = vmatprep.subr.mxu0 0.0
  %3586 = vmatpush1.msra.mxu0 0.0
  %3587 = vmatprep.subr.mxu0 0.0
  %3588 = vmatpush1.msra.mxu0 0.0
  %3589 = vmatprep.subr.mxu0 0.0
  %3590 = vmatpush1.msra.mxu0 0.0
  %3591 = vmatprep.subr.mxu0 0.0
  %3592 = vmatpush1.msra.mxu0 0.0
  %3593 = vmatprep.subr.mxu0 0.0
  %3594 = vmatpush1.msra.mxu0 0.0
  %3595 = vmatprep.subr.mxu0 0.0
  %3596 = vmatpush1.msra.mxu0 0.0
  %3597 = vmatprep.subr.mxu0 0.0
  %3598 = vmatpush1.msra.mxu0 0.0
  %3599 = vmatprep.mubr.f32.mxu0 0.0
  %3600 = vmatmul.mubr.f32.gmra.mrb[0].mxu0 %v3533
  %v3601 = vpop.f32.mrb[0].mxu0
  %v3602 = vadd.f32 0.0, %v3601
  %v3603 = vpop.f32.mrb[0].mxu0
  %3604 = vdwg.mxu0
  %v3605 = vadd.f32 %v2758, %v3602
  %v3606 = vmul.f32 %v3605, 0.5
  %v3607 = vtanh.pop %v3606
  %v3608 = vadd.f32 %v3607, 1.0
  %v3609 = vmul.f32 %v3608, 0.5
  %v3610 = vadd.f32 %v3602, %v2887
  %3612 = vrot.lane.b32.xlu0 %v3610, 64
  %v3613 = vpop.permute.xlu0 %3612
  %v3615 = vmul.f32 %v3609, %v3613
  %3617 = vrot.lane.b32.xlu0 %v3615, 64
  %v3618 = vpop.permute.xlu0 %3617
  %v3620 = vadd.f32 %v2758, %v3618
  %v3621 = vtanh.pop %v3620
  %v3622 = vsub.f32 %v3529, %v3621
  %3624 = vrot.lane.b32.xlu0 %v3622, 96
  %v3625 = vpop.permute.xlu0 %3624
  %v3627 = vmul.f32 %v3609, %v3625
  %3629 = vrot.lane.b32.xlu0 %v3627, 32
  %v3630 = vpop.permute.xlu0 %3629
  %v3632 = vadd.f32 %v3621, %v3630
  %3634 = vrot.lane.b32.xlu0 %v3632, 64
  %v3635 = vpop.permute.xlu0 %3634
  %v3636 = vsel %vm752, %v3635, 0
  %3638 = vmatprep.subr.mxu0 0.0
  %3639 = vmatpush1.msra.mxu0 %v2801
  %3640 = vmatprep.subr.mxu0 0.0
  %3641 = vmatpush1.msra.mxu0 %v2802
  %3642 = vmatprep.subr.mxu0 0.0
  %3643 = vmatpush1.msra.mxu0 %v2803
  %3644 = vmatprep.subr.mxu0 0.0
  %3645 = vmatpush1.msra.mxu0 %v2804
  %3646 = vmatprep.subr.mxu0 0.0
  %3647 = vmatpush1.msra.mxu0 0.0
  %3648 = vmatprep.subr.mxu0 0.0
  %3649 = vmatpush1.msra.mxu0 0.0
  %3650 = vmatprep.subr.mxu0 0.0
  %3651 = vmatpush1.msra.mxu0 0.0
  %3652 = vmatprep.subr.mxu0 0.0
  %3653 = vmatpush1.msra.mxu0 0.0
  %3654 = vmatprep.subr.mxu0 0.0
  %3655 = vmatpush1.msra.mxu0 0.0
  %3656 = vmatprep.subr.mxu0 0.0
  %3657 = vmatpush1.msra.mxu0 0.0
  %3658 = vmatprep.subr.mxu0 0.0
  %3659 = vmatpush1.msra.mxu0 0.0
  %3660 = vmatprep.subr.mxu0 0.0
  %3661 = vmatpush1.msra.mxu0 0.0
  %3662 = vmatprep.subr.mxu0 0.0
  %3663 = vmatpush1.msra.mxu0 0.0
  %3664 = vmatprep.subr.mxu0 0.0
  %3665 = vmatpush1.msra.mxu0 0.0
  %3666 = vmatprep.subr.mxu0 0.0
  %3667 = vmatpush1.msra.mxu0 0.0
  %3668 = vmatprep.subr.mxu0 0.0
  %3669 = vmatpush1.msra.mxu0 0.0
  %3670 = vmatprep.subr.mxu0 0.0
  %3671 = vmatpush1.msra.mxu0 0.0
  %3672 = vmatprep.subr.mxu0 0.0
  %3673 = vmatpush1.msra.mxu0 0.0
  %3674 = vmatprep.subr.mxu0 0.0
  %3675 = vmatpush1.msra.mxu0 0.0
  %3676 = vmatprep.subr.mxu0 0.0
  %3677 = vmatpush1.msra.mxu0 0.0
  %3678 = vmatprep.subr.mxu0 0.0
  %3679 = vmatpush1.msra.mxu0 0.0
  %3680 = vmatprep.subr.mxu0 0.0
  %3681 = vmatpush1.msra.mxu0 0.0
  %3682 = vmatprep.subr.mxu0 0.0
  %3683 = vmatpush1.msra.mxu0 0.0
  %3684 = vmatprep.subr.mxu0 0.0
  %3685 = vmatpush1.msra.mxu0 0.0
  %3686 = vmatprep.subr.mxu0 0.0
  %3687 = vmatpush1.msra.mxu0 0.0
  %3688 = vmatprep.subr.mxu0 0.0
  %3689 = vmatpush1.msra.mxu0 0.0
  %3690 = vmatprep.subr.mxu0 0.0
  %3691 = vmatpush1.msra.mxu0 0.0
  %3692 = vmatprep.subr.mxu0 0.0
  %3693 = vmatpush1.msra.mxu0 0.0
  %3694 = vmatprep.subr.mxu0 0.0
  %3695 = vmatpush1.msra.mxu0 0.0
  %3696 = vmatprep.subr.mxu0 0.0
  %3697 = vmatpush1.msra.mxu0 0.0
  %3698 = vmatprep.subr.mxu0 0.0
  %3699 = vmatpush1.msra.mxu0 0.0
  %3700 = vmatprep.subr.mxu0 0.0
  %3701 = vmatpush1.msra.mxu0 0.0
  %3702 = vmatprep.mubr.f32.mxu0 0.0
  %3703 = vmatmul.mubr.f32.gmra.mrb[0].mxu0 %v3636
  %v3704 = vpop.f32.mrb[0].mxu0
  %v3705 = vadd.f32 0.0, %v3704
  %v3706 = vpop.f32.mrb[0].mxu0
  %3707 = vdwg.mxu0
  %v3708 = vadd.f32 %v2763, %v3705
  %v3709 = vmul.f32 %v3708, 0.5
  %v3710 = vtanh.pop %v3709
  %v3711 = vadd.f32 %v3710, 1.0
  %v3712 = vmul.f32 %v3711, 0.5
  %v3713 = vadd.f32 %v3705, %v2887
  %3715 = vrot.lane.b32.xlu0 %v3713, 64
  %v3716 = vpop.permute.xlu0 %3715
  %v3718 = vmul.f32 %v3712, %v3716
  %3720 = vrot.lane.b32.xlu0 %v3718, 64
  %v3721 = vpop.permute.xlu0 %3720
  %v3723 = vadd.f32 %v2763, %v3721
  %v3724 = vtanh.pop %v3723
  %v3725 = vsub.f32 %v3632, %v3724
  %3727 = vrot.lane.b32.xlu0 %v3725, 96
  %v3728 = vpop.permute.xlu0 %3727
  %v3730 = vmul.f32 %v3712, %v3728
  %3732 = vrot.lane.b32.xlu0 %v3730, 32
  %v3733 = vpop.permute.xlu0 %3732
  %v3735 = vadd.f32 %v3724, %v3733
  %3737 = vrot.lane.b32.xlu0 %v3735, 64
  %v3738 = vpop.permute.xlu0 %3737
  %v3739 = vsel %vm752, %v3738, 0
  %3741 = vmatprep.subr.mxu0 0.0
  %3742 = vmatpush1.msra.mxu0 %v2801
  %3743 = vmatprep.subr.mxu0 0.0
  %3744 = vmatpush1.msra.mxu0 %v2802
  %3745 = vmatprep.subr.mxu0 0.0
  %3746 = vmatpush1.msra.mxu0 %v2803
  %3747 = vmatprep.subr.mxu0 0.0
  %3748 = vmatpush1.msra.mxu0 %v2804
  %3749 = vmatprep.subr.mxu0 0.0
  %3750 = vmatpush1.msra.mxu0 0.0
  %3751 = vmatprep.subr.mxu0 0.0
  %3752 = vmatpush1.msra.mxu0 0.0
  %3753 = vmatprep.subr.mxu0 0.0
  %3754 = vmatpush1.msra.mxu0 0.0
  %3755 = vmatprep.subr.mxu0 0.0
  %3756 = vmatpush1.msra.mxu0 0.0
  %3757 = vmatprep.subr.mxu0 0.0
  %3758 = vmatpush1.msra.mxu0 0.0
  %3759 = vmatprep.subr.mxu0 0.0
  %3760 = vmatpush1.msra.mxu0 0.0
  %3761 = vmatprep.subr.mxu0 0.0
  %3762 = vmatpush1.msra.mxu0 0.0
  %3763 = vmatprep.subr.mxu0 0.0
  %3764 = vmatpush1.msra.mxu0 0.0
  %3765 = vmatprep.subr.mxu0 0.0
  %3766 = vmatpush1.msra.mxu0 0.0
  %3767 = vmatprep.subr.mxu0 0.0
  %3768 = vmatpush1.msra.mxu0 0.0
  %3769 = vmatprep.subr.mxu0 0.0
  %3770 = vmatpush1.msra.mxu0 0.0
  %3771 = vmatprep.subr.mxu0 0.0
  %3772 = vmatpush1.msra.mxu0 0.0
  %3773 = vmatprep.subr.mxu0 0.0
  %3774 = vmatpush1.msra.mxu0 0.0
  %3775 = vmatprep.subr.mxu0 0.0
  %3776 = vmatpush1.msra.mxu0 0.0
  %3777 = vmatprep.subr.mxu0 0.0
  %3778 = vmatpush1.msra.mxu0 0.0
  %3779 = vmatprep.subr.mxu0 0.0
  %3780 = vmatpush1.msra.mxu0 0.0
  %3781 = vmatprep.subr.mxu0 0.0
  %3782 = vmatpush1.msra.mxu0 0.0
  %3783 = vmatprep.subr.mxu0 0.0
  %3784 = vmatpush1.msra.mxu0 0.0
  %3785 = vmatprep.subr.mxu0 0.0
  %3786 = vmatpush1.msra.mxu0 0.0
  %3787 = vmatprep.subr.mxu0 0.0
  %3788 = vmatpush1.msra.mxu0 0.0
  %3789 = vmatprep.subr.mxu0 0.0
  %3790 = vmatpush1.msra.mxu0 0.0
  %3791 = vmatprep.subr.mxu0 0.0
  %3792 = vmatpush1.msra.mxu0 0.0
  %3793 = vmatprep.subr.mxu0 0.0
  %3794 = vmatpush1.msra.mxu0 0.0
  %3795 = vmatprep.subr.mxu0 0.0
  %3796 = vmatpush1.msra.mxu0 0.0
  %3797 = vmatprep.subr.mxu0 0.0
  %3798 = vmatpush1.msra.mxu0 0.0
  %3799 = vmatprep.subr.mxu0 0.0
  %3800 = vmatpush1.msra.mxu0 0.0
  %3801 = vmatprep.subr.mxu0 0.0
  %3802 = vmatpush1.msra.mxu0 0.0
  %3803 = vmatprep.subr.mxu0 0.0
  %3804 = vmatpush1.msra.mxu0 0.0
  %3805 = vmatprep.mubr.f32.mxu0 0.0
  %3806 = vmatmul.mubr.f32.gmra.mrb[0].mxu0 %v3739
  %v3807 = vpop.f32.mrb[0].mxu0
  %v3808 = vadd.f32 0.0, %v3807
  %v3809 = vpop.f32.mrb[0].mxu0
  %3810 = vdwg.mxu0
  %v3811 = vadd.f32 %v2768, %v3808
  %v3812 = vmul.f32 %v3811, 0.5
  %v3813 = vtanh.pop %v3812
  %v3814 = vadd.f32 %v3813, 1.0
  %v3815 = vmul.f32 %v3814, 0.5
  %v3816 = vadd.f32 %v3808, %v2887
  %3818 = vrot.lane.b32.xlu0 %v3816, 64
  %v3819 = vpop.permute.xlu0 %3818
  %v3821 = vmul.f32 %v3815, %v3819
  %3823 = vrot.lane.b32.xlu0 %v3821, 64
  %v3824 = vpop.permute.xlu0 %3823
  %v3826 = vadd.f32 %v2768, %v3824
  %v3827 = vtanh.pop %v3826
  %v3828 = vsub.f32 %v3735, %v3827
  %3830 = vrot.lane.b32.xlu0 %v3828, 96
  %v3831 = vpop.permute.xlu0 %3830
  %v3833 = vmul.f32 %v3815, %v3831
  %3835 = vrot.lane.b32.xlu0 %v3833, 32
  %v3836 = vpop.permute.xlu0 %3835
  %v3838 = vadd.f32 %v3827, %v3836
  %3840 = vrot.lane.b32.xlu0 %v3838, 64
  %v3841 = vpop.permute.xlu0 %3840
  %v3842 = vsel %vm752, %v3841, 0
  %3844 = vmatprep.subr.mxu0 0.0
  %3845 = vmatpush1.msra.mxu0 %v2801
  %3846 = vmatprep.subr.mxu0 0.0
  %3847 = vmatpush1.msra.mxu0 %v2802
  %3848 = vmatprep.subr.mxu0 0.0
  %3849 = vmatpush1.msra.mxu0 %v2803
  %3850 = vmatprep.subr.mxu0 0.0
  %3851 = vmatpush1.msra.mxu0 %v2804
  %3852 = vmatprep.subr.mxu0 0.0
  %3853 = vmatpush1.msra.mxu0 0.0
  %3854 = vmatprep.subr.mxu0 0.0
  %3855 = vmatpush1.msra.mxu0 0.0
  %3856 = vmatprep.subr.mxu0 0.0
  %3857 = vmatpush1.msra.mxu0 0.0
  %3858 = vmatprep.subr.mxu0 0.0
  %3859 = vmatpush1.msra.mxu0 0.0
  %3860 = vmatprep.subr.mxu0 0.0
  %3861 = vmatpush1.msra.mxu0 0.0
  %3862 = vmatprep.subr.mxu0 0.0
  %3863 = vmatpush1.msra.mxu0 0.0
  %3864 = vmatprep.subr.mxu0 0.0
  %3865 = vmatpush1.msra.mxu0 0.0
  %3866 = vmatprep.subr.mxu0 0.0
  %3867 = vmatpush1.msra.mxu0 0.0
  %3868 = vmatprep.subr.mxu0 0.0
  %3869 = vmatpush1.msra.mxu0 0.0
  %3870 = vmatprep.subr.mxu0 0.0
  %3871 = vmatpush1.msra.mxu0 0.0
  %3872 = vmatprep.subr.mxu0 0.0
  %3873 = vmatpush1.msra.mxu0 0.0
  %3874 = vmatprep.subr.mxu0 0.0
  %3875 = vmatpush1.msra.mxu0 0.0
  %3876 = vmatprep.subr.mxu0 0.0
  %3877 = vmatpush1.msra.mxu0 0.0
  %3878 = vmatprep.subr.mxu0 0.0
  %3879 = vmatpush1.msra.mxu0 0.0
  %3880 = vmatprep.subr.mxu0 0.0
  %3881 = vmatpush1.msra.mxu0 0.0
  %3882 = vmatprep.subr.mxu0 0.0
  %3883 = vmatpush1.msra.mxu0 0.0
  %3884 = vmatprep.subr.mxu0 0.0
  %3885 = vmatpush1.msra.mxu0 0.0
  %3886 = vmatprep.subr.mxu0 0.0
  %3887 = vmatpush1.msra.mxu0 0.0
  %3888 = vmatprep.subr.mxu0 0.0
  %3889 = vmatpush1.msra.mxu0 0.0
  %3890 = vmatprep.subr.mxu0 0.0
  %3891 = vmatpush1.msra.mxu0 0.0
  %3892 = vmatprep.subr.mxu0 0.0
  %3893 = vmatpush1.msra.mxu0 0.0
  %3894 = vmatprep.subr.mxu0 0.0
  %3895 = vmatpush1.msra.mxu0 0.0
  %3896 = vmatprep.subr.mxu0 0.0
  %3897 = vmatpush1.msra.mxu0 0.0
  %3898 = vmatprep.subr.mxu0 0.0
  %3899 = vmatpush1.msra.mxu0 0.0
  %3900 = vmatprep.subr.mxu0 0.0
  %3901 = vmatpush1.msra.mxu0 0.0
  %3902 = vmatprep.subr.mxu0 0.0
  %3903 = vmatpush1.msra.mxu0 0.0
  %3904 = vmatprep.subr.mxu0 0.0
  %3905 = vmatpush1.msra.mxu0 0.0
  %3906 = vmatprep.subr.mxu0 0.0
  %3907 = vmatpush1.msra.mxu0 0.0
  %3908 = vmatprep.mubr.f32.mxu0 0.0
  %3909 = vmatmul.mubr.f32.gmra.mrb[0].mxu0 %v3842
  %v3910 = vpop.f32.mrb[0].mxu0
  %v3911 = vadd.f32 0.0, %v3910
  %v3912 = vpop.f32.mrb[0].mxu0
  %3913 = vdwg.mxu0
  %v3914 = vadd.f32 %v2773, %v3911
  %v3915 = vmul.f32 %v3914, 0.5
  %v3916 = vtanh.pop %v3915
  %v3917 = vadd.f32 %v3916, 1.0
  %v3918 = vmul.f32 %v3917, 0.5
  %v3919 = vadd.f32 %v3911, %v2887
  %3921 = vrot.lane.b32.xlu0 %v3919, 64
  %v3922 = vpop.permute.xlu0 %3921
  %v3924 = vmul.f32 %v3918, %v3922
  %3926 = vrot.lane.b32.xlu0 %v3924, 64
  %v3927 = vpop.permute.xlu0 %3926
  %v3929 = vadd.f32 %v2773, %v3927
  %v3930 = vtanh.pop %v3929
  %v3931 = vsub.f32 %v3838, %v3930
  %3933 = vrot.lane.b32.xlu0 %v3931, 96
  %v3934 = vpop.permute.xlu0 %3933
  %v3936 = vmul.f32 %v3918, %v3934
  %3938 = vrot.lane.b32.xlu0 %v3936, 32
  %v3939 = vpop.permute.xlu0 %3938
  %v3941 = vadd.f32 %v3930, %v3939
  %3943 = vrot.lane.b32.xlu0 %v3941, 64
  %v3944 = vpop.permute.xlu0 %3943
  %v3945 = vsel %vm752, %v3944, 0
  %3947 = vmatprep.subr.mxu0 0.0
  %3948 = vmatpush1.msra.mxu0 %v2801
  %3949 = vmatprep.subr.mxu0 0.0
  %3950 = vmatpush1.msra.mxu0 %v2802
  %3951 = vmatprep.subr.mxu0 0.0
  %3952 = vmatpush1.msra.mxu0 %v2803
  %3953 = vmatprep.subr.mxu0 0.0
  %3954 = vmatpush1.msra.mxu0 %v2804
  %3955 = vmatprep.subr.mxu0 0.0
  %3956 = vmatpush1.msra.mxu0 0.0
  %3957 = vmatprep.subr.mxu0 0.0
  %3958 = vmatpush1.msra.mxu0 0.0
  %3959 = vmatprep.subr.mxu0 0.0
  %3960 = vmatpush1.msra.mxu0 0.0
  %3961 = vmatprep.subr.mxu0 0.0
  %3962 = vmatpush1.msra.mxu0 0.0
  %3963 = vmatprep.subr.mxu0 0.0
  %3964 = vmatpush1.msra.mxu0 0.0
  %3965 = vmatprep.subr.mxu0 0.0
  %3966 = vmatpush1.msra.mxu0 0.0
  %3967 = vmatprep.subr.mxu0 0.0
  %3968 = vmatpush1.msra.mxu0 0.0
  %3969 = vmatprep.subr.mxu0 0.0
  %3970 = vmatpush1.msra.mxu0 0.0
  %3971 = vmatprep.subr.mxu0 0.0
  %3972 = vmatpush1.msra.mxu0 0.0
  %3973 = vmatprep.subr.mxu0 0.0
  %3974 = vmatpush1.msra.mxu0 0.0
  %3975 = vmatprep.subr.mxu0 0.0
  %3976 = vmatpush1.msra.mxu0 0.0
  %3977 = vmatprep.subr.mxu0 0.0
  %3978 = vmatpush1.msra.mxu0 0.0
  %3979 = vmatprep.subr.mxu0 0.0
  %3980 = vmatpush1.msra.mxu0 0.0
  %3981 = vmatprep.subr.mxu0 0.0
  %3982 = vmatpush1.msra.mxu0 0.0
  %3983 = vmatprep.subr.mxu0 0.0
  %3984 = vmatpush1.msra.mxu0 0.0
  %3985 = vmatprep.subr.mxu0 0.0
  %3986 = vmatpush1.msra.mxu0 0.0
  %3987 = vmatprep.subr.mxu0 0.0
  %3988 = vmatpush1.msra.mxu0 0.0
  %3989 = vmatprep.subr.mxu0 0.0
  %3990 = vmatpush1.msra.mxu0 0.0
  %3991 = vmatprep.subr.mxu0 0.0
  %3992 = vmatpush1.msra.mxu0 0.0
  %3993 = vmatprep.subr.mxu0 0.0
  %3994 = vmatpush1.msra.mxu0 0.0
  %3995 = vmatprep.subr.mxu0 0.0
  %3996 = vmatpush1.msra.mxu0 0.0
  %3997 = vmatprep.subr.mxu0 0.0
  %3998 = vmatpush1.msra.mxu0 0.0
  %3999 = vmatprep.subr.mxu0 0.0
  %4000 = vmatpush1.msra.mxu0 0.0
  %4001 = vmatprep.subr.mxu0 0.0
  %4002 = vmatpush1.msra.mxu0 0.0
  %4003 = vmatprep.subr.mxu0 0.0
  %4004 = vmatpush1.msra.mxu0 0.0
  %4005 = vmatprep.subr.mxu0 0.0
  %4006 = vmatpush1.msra.mxu0 0.0
  %4007 = vmatprep.subr.mxu0 0.0
  %4008 = vmatpush1.msra.mxu0 0.0
  %4009 = vmatprep.subr.mxu0 0.0
  %4010 = vmatpush1.msra.mxu0 0.0
  %4011 = vmatprep.mubr.f32.mxu0 0.0
  %4012 = vmatmul.mubr.f32.gmra.mrb[0].mxu0 %v3945
  %v4013 = vpop.f32.mrb[0].mxu0
  %v4014 = vadd.f32 0.0, %v4013
  %v4015 = vpop.f32.mrb[0].mxu0
  %4016 = vdwg.mxu0
  %v4017 = vadd.f32 %v2778, %v4014
  %v4018 = vmul.f32 %v4017, 0.5
  %v4019 = vtanh.pop %v4018
  %v4020 = vadd.f32 %v4019, 1.0
  %v4021 = vmul.f32 %v4020, 0.5
  %v4022 = vadd.f32 %v4014, %v2887
  %4024 = vrot.lane.b32.xlu0 %v4022, 64
  %v4025 = vpop.permute.xlu0 %4024
  %v4027 = vmul.f32 %v4021, %v4025
  %4029 = vrot.lane.b32.xlu0 %v4027, 64
  %v4030 = vpop.permute.xlu0 %4029
  %v4032 = vadd.f32 %v2778, %v4030
  %v4033 = vtanh.pop %v4032
  %v4034 = vsub.f32 %v3941, %v4033
  %4036 = vrot.lane.b32.xlu0 %v4034, 96
  %v4037 = vpop.permute.xlu0 %4036
  %v4039 = vmul.f32 %v4021, %v4037
  %4041 = vrot.lane.b32.xlu0 %v4039, 32
  %v4042 = vpop.permute.xlu0 %4041
  %v4044 = vadd.f32 %v4033, %v4042
  %4046 = vrot.lane.b32.xlu0 %v4044, 64
  %v4047 = vpop.permute.xlu0 %4046
  %v4048 = vsel %vm752, %v4047, 0
  %4050 = vmatprep.subr.mxu0 0.0
  %4051 = vmatpush1.msra.mxu0 %v2801
  %4052 = vmatprep.subr.mxu0 0.0
  %4053 = vmatpush1.msra.mxu0 %v2802
  %4054 = vmatprep.subr.mxu0 0.0
  %4055 = vmatpush1.msra.mxu0 %v2803
  %4056 = vmatprep.subr.mxu0 0.0
  %4057 = vmatpush1.msra.mxu0 %v2804
  %4058 = vmatprep.subr.mxu0 0.0
  %4059 = vmatpush1.msra.mxu0 0.0
  %4060 = vmatprep.subr.mxu0 0.0
  %4061 = vmatpush1.msra.mxu0 0.0
  %4062 = vmatprep.subr.mxu0 0.0
  %4063 = vmatpush1.msra.mxu0 0.0
  %4064 = vmatprep.subr.mxu0 0.0
  %4065 = vmatpush1.msra.mxu0 0.0
  %4066 = vmatprep.subr.mxu0 0.0
  %4067 = vmatpush1.msra.mxu0 0.0
  %4068 = vmatprep.subr.mxu0 0.0
  %4069 = vmatpush1.msra.mxu0 0.0
  %4070 = vmatprep.subr.mxu0 0.0
  %4071 = vmatpush1.msra.mxu0 0.0
  %4072 = vmatprep.subr.mxu0 0.0
  %4073 = vmatpush1.msra.mxu0 0.0
  %4074 = vmatprep.subr.mxu0 0.0
  %4075 = vmatpush1.msra.mxu0 0.0
  %4076 = vmatprep.subr.mxu0 0.0
  %4077 = vmatpush1.msra.mxu0 0.0
  %4078 = vmatprep.subr.mxu0 0.0
  %4079 = vmatpush1.msra.mxu0 0.0
  %4080 = vmatprep.subr.mxu0 0.0
  %4081 = vmatpush1.msra.mxu0 0.0
  %4082 = vmatprep.subr.mxu0 0.0
  %4083 = vmatpush1.msra.mxu0 0.0
  %4084 = vmatprep.subr.mxu0 0.0
  %4085 = vmatpush1.msra.mxu0 0.0
  %4086 = vmatprep.subr.mxu0 0.0
  %4087 = vmatpush1.msra.mxu0 0.0
  %4088 = vmatprep.subr.mxu0 0.0
  %4089 = vmatpush1.msra.mxu0 0.0
  %4090 = vmatprep.subr.mxu0 0.0
  %4091 = vmatpush1.msra.mxu0 0.0
  %4092 = vmatprep.subr.mxu0 0.0
  %4093 = vmatpush1.msra.mxu0 0.0
  %4094 = vmatprep.subr.mxu0 0.0
  %4095 = vmatpush1.msra.mxu0 0.0
  %4096 = vmatprep.subr.mxu0 0.0
  %4097 = vmatpush1.msra.mxu0 0.0
  %4098 = vmatprep.subr.mxu0 0.0
  %4099 = vmatpush1.msra.mxu0 0.0
  %4100 = vmatprep.subr.mxu0 0.0
  %4101 = vmatpush1.msra.mxu0 0.0
  %4102 = vmatprep.subr.mxu0 0.0
  %4103 = vmatpush1.msra.mxu0 0.0
  %4104 = vmatprep.subr.mxu0 0.0
  %4105 = vmatpush1.msra.mxu0 0.0
  %4106 = vmatprep.subr.mxu0 0.0
  %4107 = vmatpush1.msra.mxu0 0.0
  %4108 = vmatprep.subr.mxu0 0.0
  %4109 = vmatpush1.msra.mxu0 0.0
  %4110 = vmatprep.subr.mxu0 0.0
  %4111 = vmatpush1.msra.mxu0 0.0
  %4112 = vmatprep.subr.mxu0 0.0
  %4113 = vmatpush1.msra.mxu0 0.0
  %4114 = vmatprep.mubr.f32.mxu0 0.0
  %4115 = vmatmul.mubr.f32.gmra.mrb[0].mxu0 %v4048
  %v4116 = vpop.f32.mrb[0].mxu0
  %v4117 = vadd.f32 0.0, %v4116
  %v4118 = vpop.f32.mrb[0].mxu0
  %4119 = vdwg.mxu0
  %v4120 = vadd.f32 %v2783, %v4117
  %v4121 = vmul.f32 %v4120, 0.5
  %v4122 = vtanh.pop %v4121
  %v4123 = vadd.f32 %v4122, 1.0
  %v4124 = vmul.f32 %v4123, 0.5
  %v4125 = vadd.f32 %v4117, %v2887
  %4127 = vrot.lane.b32.xlu0 %v4125, 64
  %v4128 = vpop.permute.xlu0 %4127
  %v4130 = vmul.f32 %v4124, %v4128
  %4132 = vrot.lane.b32.xlu0 %v4130, 64
  %v4133 = vpop.permute.xlu0 %4132
  %v4135 = vadd.f32 %v2783, %v4133
  %v4136 = vtanh.pop %v4135
  %v4137 = vsub.f32 %v4044, %v4136
  %4139 = vrot.lane.b32.xlu0 %v4137, 96
  %v4140 = vpop.permute.xlu0 %4139
  %v4142 = vmul.f32 %v4124, %v4140
  %4144 = vrot.lane.b32.xlu0 %v4142, 32
  %v4145 = vpop.permute.xlu0 %4144
  %v4147 = vadd.f32 %v4136, %v4145
  %4149 = vrot.lane.b32.xlu0 %v4147, 64
  %v4150 = vpop.permute.xlu0 %4149
  %v4151 = vsel %vm752, %v4150, 0
  %4153 = vmatprep.subr.mxu0 0.0
  %4154 = vmatpush1.msra.mxu0 %v2801
  %4155 = vmatprep.subr.mxu0 0.0
  %4156 = vmatpush1.msra.mxu0 %v2802
  %4157 = vmatprep.subr.mxu0 0.0
  %4158 = vmatpush1.msra.mxu0 %v2803
  %4159 = vmatprep.subr.mxu0 0.0
  %4160 = vmatpush1.msra.mxu0 %v2804
  %4161 = vmatprep.subr.mxu0 0.0
  %4162 = vmatpush1.msra.mxu0 0.0
  %4163 = vmatprep.subr.mxu0 0.0
  %4164 = vmatpush1.msra.mxu0 0.0
  %4165 = vmatprep.subr.mxu0 0.0
  %4166 = vmatpush1.msra.mxu0 0.0
  %4167 = vmatprep.subr.mxu0 0.0
  %4168 = vmatpush1.msra.mxu0 0.0
  %4169 = vmatprep.subr.mxu0 0.0
  %4170 = vmatpush1.msra.mxu0 0.0
  %4171 = vmatprep.subr.mxu0 0.0
  %4172 = vmatpush1.msra.mxu0 0.0
  %4173 = vmatprep.subr.mxu0 0.0
  %4174 = vmatpush1.msra.mxu0 0.0
  %4175 = vmatprep.subr.mxu0 0.0
  %4176 = vmatpush1.msra.mxu0 0.0
  %4177 = vmatprep.subr.mxu0 0.0
  %4178 = vmatpush1.msra.mxu0 0.0
  %4179 = vmatprep.subr.mxu0 0.0
  %4180 = vmatpush1.msra.mxu0 0.0
  %4181 = vmatprep.subr.mxu0 0.0
  %4182 = vmatpush1.msra.mxu0 0.0
  %4183 = vmatprep.subr.mxu0 0.0
  %4184 = vmatpush1.msra.mxu0 0.0
  %4185 = vmatprep.subr.mxu0 0.0
  %4186 = vmatpush1.msra.mxu0 0.0
  %4187 = vmatprep.subr.mxu0 0.0
  %4188 = vmatpush1.msra.mxu0 0.0
  %4189 = vmatprep.subr.mxu0 0.0
  %4190 = vmatpush1.msra.mxu0 0.0
  %4191 = vmatprep.subr.mxu0 0.0
  %4192 = vmatpush1.msra.mxu0 0.0
  %4193 = vmatprep.subr.mxu0 0.0
  %4194 = vmatpush1.msra.mxu0 0.0
  %4195 = vmatprep.subr.mxu0 0.0
  %4196 = vmatpush1.msra.mxu0 0.0
  %4197 = vmatprep.subr.mxu0 0.0
  %4198 = vmatpush1.msra.mxu0 0.0
  %4199 = vmatprep.subr.mxu0 0.0
  %4200 = vmatpush1.msra.mxu0 0.0
  %4201 = vmatprep.subr.mxu0 0.0
  %4202 = vmatpush1.msra.mxu0 0.0
  %4203 = vmatprep.subr.mxu0 0.0
  %4204 = vmatpush1.msra.mxu0 0.0
  %4205 = vmatprep.subr.mxu0 0.0
  %4206 = vmatpush1.msra.mxu0 0.0
  %4207 = vmatprep.subr.mxu0 0.0
  %4208 = vmatpush1.msra.mxu0 0.0
  %4209 = vmatprep.subr.mxu0 0.0
  %4210 = vmatpush1.msra.mxu0 0.0
  %4211 = vmatprep.subr.mxu0 0.0
  %4212 = vmatpush1.msra.mxu0 0.0
  %4213 = vmatprep.subr.mxu0 0.0
  %4214 = vmatpush1.msra.mxu0 0.0
  %4215 = vmatprep.subr.mxu0 0.0
  %4216 = vmatpush1.msra.mxu0 0.0
  %4217 = vmatprep.mubr.f32.mxu0 0.0
  %4218 = vmatmul.mubr.f32.gmra.mrb[0].mxu0 %v4151
  %v4219 = vpop.f32.mrb[0].mxu0
  %v4220 = vadd.f32 0.0, %v4219
  %v4221 = vpop.f32.mrb[0].mxu0
  %4222 = vdwg.mxu0
  %v4223 = vadd.f32 %v2788, %v4220
  %v4224 = vmul.f32 %v4223, 0.5
  %v4225 = vtanh.pop %v4224
  %v4226 = vadd.f32 %v4225, 1.0
  %v4227 = vmul.f32 %v4226, 0.5
  %v4228 = vadd.f32 %v4220, %v2887
  %4230 = vrot.lane.b32.xlu0 %v4228, 64
  %v4231 = vpop.permute.xlu0 %4230
  %v4233 = vmul.f32 %v4227, %v4231
  %4235 = vrot.lane.b32.xlu0 %v4233, 64
  %v4236 = vpop.permute.xlu0 %4235
  %v4238 = vadd.f32 %v2788, %v4236
  %v4239 = vtanh.pop %v4238
  %v4240 = vsub.f32 %v4147, %v4239
  %4242 = vrot.lane.b32.xlu0 %v4240, 96
  %v4243 = vpop.permute.xlu0 %4242
  %v4245 = vmul.f32 %v4227, %v4243
  %4247 = vrot.lane.b32.xlu0 %v4245, 32
  %v4248 = vpop.permute.xlu0 %4247
  %v4250 = vadd.f32 %v4239, %v4248
  %4252 = vrot.lane.b32.xlu0 %v4250, 64
  %v4253 = vpop.permute.xlu0 %4252
  %v4254 = vsel %vm752, %v4253, 0
  %4256 = vmatprep.subr.mxu0 0.0
  %4257 = vmatpush1.msra.mxu0 %v2801
  %4258 = vmatprep.subr.mxu0 0.0
  %4259 = vmatpush1.msra.mxu0 %v2802
  %4260 = vmatprep.subr.mxu0 0.0
  %4261 = vmatpush1.msra.mxu0 %v2803
  %4262 = vmatprep.subr.mxu0 0.0
  %4263 = vmatpush1.msra.mxu0 %v2804
  %4264 = vmatprep.subr.mxu0 0.0
  %4265 = vmatpush1.msra.mxu0 0.0
  %4266 = vmatprep.subr.mxu0 0.0
  %4267 = vmatpush1.msra.mxu0 0.0
  %4268 = vmatprep.subr.mxu0 0.0
  %4269 = vmatpush1.msra.mxu0 0.0
  %4270 = vmatprep.subr.mxu0 0.0
  %4271 = vmatpush1.msra.mxu0 0.0
  %4272 = vmatprep.subr.mxu0 0.0
  %4273 = vmatpush1.msra.mxu0 0.0
  %4274 = vmatprep.subr.mxu0 0.0
  %4275 = vmatpush1.msra.mxu0 0.0
  %4276 = vmatprep.subr.mxu0 0.0
  %4277 = vmatpush1.msra.mxu0 0.0
  %4278 = vmatprep.subr.mxu0 0.0
  %4279 = vmatpush1.msra.mxu0 0.0
  %4280 = vmatprep.subr.mxu0 0.0
  %4281 = vmatpush1.msra.mxu0 0.0
  %4282 = vmatprep.subr.mxu0 0.0
  %4283 = vmatpush1.msra.mxu0 0.0
  %4284 = vmatprep.subr.mxu0 0.0
  %4285 = vmatpush1.msra.mxu0 0.0
  %4286 = vmatprep.subr.mxu0 0.0
  %4287 = vmatpush1.msra.mxu0 0.0
  %4288 = vmatprep.subr.mxu0 0.0
  %4289 = vmatpush1.msra.mxu0 0.0
  %4290 = vmatprep.subr.mxu0 0.0
  %4291 = vmatpush1.msra.mxu0 0.0
  %4292 = vmatprep.subr.mxu0 0.0
  %4293 = vmatpush1.msra.mxu0 0.0
  %4294 = vmatprep.subr.mxu0 0.0
  %4295 = vmatpush1.msra.mxu0 0.0
  %4296 = vmatprep.subr.mxu0 0.0
  %4297 = vmatpush1.msra.mxu0 0.0
  %4298 = vmatprep.subr.mxu0 0.0
  %4299 = vmatpush1.msra.mxu0 0.0
  %4300 = vmatprep.subr.mxu0 0.0
  %4301 = vmatpush1.msra.mxu0 0.0
  %4302 = vmatprep.subr.mxu0 0.0
  %4303 = vmatpush1.msra.mxu0 0.0
  %4304 = vmatprep.subr.mxu0 0.0
  %4305 = vmatpush1.msra.mxu0 0.0
  %4306 = vmatprep.subr.mxu0 0.0
  %4307 = vmatpush1.msra.mxu0 0.0
  %4308 = vmatprep.subr.mxu0 0.0
  %4309 = vmatpush1.msra.mxu0 0.0
  %4310 = vmatprep.subr.mxu0 0.0
  %4311 = vmatpush1.msra.mxu0 0.0
  %4312 = vmatprep.subr.mxu0 0.0
  %4313 = vmatpush1.msra.mxu0 0.0
  %4314 = vmatprep.subr.mxu0 0.0
  %4315 = vmatpush1.msra.mxu0 0.0
  %4316 = vmatprep.subr.mxu0 0.0
  %4317 = vmatpush1.msra.mxu0 0.0
  %4318 = vmatprep.subr.mxu0 0.0
  %4319 = vmatpush1.msra.mxu0 0.0
  %4320 = vmatprep.mubr.f32.mxu0 0.0
  %4321 = vmatmul.mubr.f32.gmra.mrb[0].mxu0 %v4254
  %v4322 = vpop.f32.mrb[0].mxu0
  %v4323 = vadd.f32 0.0, %v4322
  %v4324 = vpop.f32.mrb[0].mxu0
  %4325 = vdwg.mxu0
  %v4326 = vadd.f32 %v2793, %v4323
  %v4327 = vmul.f32 %v4326, 0.5
  %v4328 = vtanh.pop %v4327
  %v4329 = vadd.f32 %v4328, 1.0
  %v4330 = vmul.f32 %v4329, 0.5
  %v4331 = vadd.f32 %v4323, %v2887
  %4333 = vrot.lane.b32.xlu0 %v4331, 64
  %v4334 = vpop.permute.xlu0 %4333
  %v4336 = vmul.f32 %v4330, %v4334
  %4338 = vrot.lane.b32.xlu0 %v4336, 64
  %v4339 = vpop.permute.xlu0 %4338
  %v4341 = vadd.f32 %v2793, %v4339
  %v4342 = vtanh.pop %v4341
  %v4343 = vsub.f32 %v4250, %v4342
  %4345 = vrot.lane.b32.xlu0 %v4343, 96
  %v4346 = vpop.permute.xlu0 %4345
  %v4348 = vmul.f32 %v4330, %v4346
  %4350 = vrot.lane.b32.xlu0 %v4348, 32
  %v4351 = vpop.permute.xlu0 %4350
  %v4353 = vadd.f32 %v4342, %v4351
  %4355 = vrot.lane.b32.xlu0 %v4353, 64
  %v4356 = vpop.permute.xlu0 %4355
  %v4357 = vsel %vm752, %v4356, 0
  %4359 = vmatprep.subr.mxu0 0.0
  %4360 = vmatpush1.msra.mxu0 %v2801
  %4361 = vmatprep.subr.mxu0 0.0
  %4362 = vmatpush1.msra.mxu0 %v2802
  %4363 = vmatprep.subr.mxu0 0.0
  %4364 = vmatpush1.msra.mxu0 %v2803
  %4365 = vmatprep.subr.mxu0 0.0
  %4366 = vmatpush1.msra.mxu0 %v2804
  %4367 = vmatprep.subr.mxu0 0.0
  %4368 = vmatpush1.msra.mxu0 0.0
  %4369 = vmatprep.subr.mxu0 0.0
  %4370 = vmatpush1.msra.mxu0 0.0
  %4371 = vmatprep.subr.mxu0 0.0
  %4372 = vmatpush1.msra.mxu0 0.0
  %4373 = vmatprep.subr.mxu0 0.0
  %4374 = vmatpush1.msra.mxu0 0.0
  %4375 = vmatprep.subr.mxu0 0.0
  %4376 = vmatpush1.msra.mxu0 0.0
  %4377 = vmatprep.subr.mxu0 0.0
  %4378 = vmatpush1.msra.mxu0 0.0
  %4379 = vmatprep.subr.mxu0 0.0
  %4380 = vmatpush1.msra.mxu0 0.0
  %4381 = vmatprep.subr.mxu0 0.0
  %4382 = vmatpush1.msra.mxu0 0.0
  %4383 = vmatprep.subr.mxu0 0.0
  %4384 = vmatpush1.msra.mxu0 0.0
  %4385 = vmatprep.subr.mxu0 0.0
  %4386 = vmatpush1.msra.mxu0 0.0
  %4387 = vmatprep.subr.mxu0 0.0
  %4388 = vmatpush1.msra.mxu0 0.0
  %4389 = vmatprep.subr.mxu0 0.0
  %4390 = vmatpush1.msra.mxu0 0.0
  %4391 = vmatprep.subr.mxu0 0.0
  %4392 = vmatpush1.msra.mxu0 0.0
  %4393 = vmatprep.subr.mxu0 0.0
  %4394 = vmatpush1.msra.mxu0 0.0
  %4395 = vmatprep.subr.mxu0 0.0
  %4396 = vmatpush1.msra.mxu0 0.0
  %4397 = vmatprep.subr.mxu0 0.0
  %4398 = vmatpush1.msra.mxu0 0.0
  %4399 = vmatprep.subr.mxu0 0.0
  %4400 = vmatpush1.msra.mxu0 0.0
  %4401 = vmatprep.subr.mxu0 0.0
  %4402 = vmatpush1.msra.mxu0 0.0
  %4403 = vmatprep.subr.mxu0 0.0
  %4404 = vmatpush1.msra.mxu0 0.0
  %4405 = vmatprep.subr.mxu0 0.0
  %4406 = vmatpush1.msra.mxu0 0.0
  %4407 = vmatprep.subr.mxu0 0.0
  %4408 = vmatpush1.msra.mxu0 0.0
  %4409 = vmatprep.subr.mxu0 0.0
  %4410 = vmatpush1.msra.mxu0 0.0
  %4411 = vmatprep.subr.mxu0 0.0
  %4412 = vmatpush1.msra.mxu0 0.0
  %4413 = vmatprep.subr.mxu0 0.0
  %4414 = vmatpush1.msra.mxu0 0.0
  %4415 = vmatprep.subr.mxu0 0.0
  %4416 = vmatpush1.msra.mxu0 0.0
  %4417 = vmatprep.subr.mxu0 0.0
  %4418 = vmatpush1.msra.mxu0 0.0
  %4419 = vmatprep.subr.mxu0 0.0
  %4420 = vmatpush1.msra.mxu0 0.0
  %4421 = vmatprep.subr.mxu0 0.0
  %4422 = vmatpush1.msra.mxu0 0.0
  %4423 = vmatprep.mubr.f32.mxu0 0.0
  %4424 = vmatmul.mubr.f32.gmra.mrb[0].mxu0 %v4357
  %v4425 = vpop.f32.mrb[0].mxu0
  %v4426 = vadd.f32 0.0, %v4425
  %v4427 = vpop.f32.mrb[0].mxu0
  %4428 = vdwg.mxu0
  %v4429 = vadd.f32 %v2798, %v4426
  %v4430 = vmul.f32 %v4429, 0.5
  %v4431 = vtanh.pop %v4430
  %v4432 = vadd.f32 %v4431, 1.0
  %v4433 = vmul.f32 %v4432, 0.5
  %v4434 = vadd.f32 %v4426, %v2887
  %4436 = vrot.lane.b32.xlu0 %v4434, 64
  %v4437 = vpop.permute.xlu0 %4436
  %v4439 = vmul.f32 %v4433, %v4437
  %4441 = vrot.lane.b32.xlu0 %v4439, 64
  %v4442 = vpop.permute.xlu0 %4441
  %v4444 = vadd.f32 %v2798, %v4442
  %v4445 = vtanh.pop %v4444
  %v4446 = vsub.f32 %v4353, %v4445
  %4448 = vrot.lane.b32.xlu0 %v4446, 96
  %v4449 = vpop.permute.xlu0 %4448
  %v4451 = vmul.f32 %v4433, %v4449
  %4453 = vrot.lane.b32.xlu0 %v4451, 32
  %v4454 = vpop.permute.xlu0 %4453
  %v4456 = vadd.f32 %v4445, %v4454
  %v4457 = vld [vmem:[%s2] sm:$0xff]
  %v4458 = vld [vmem:[%s3] sm:$0x1f]
  %v4459 = vld [vmem:[%s4] sm:$0x1]
  %v4461 = vlaneseq
  %v4462 = vshrl.u32 %v4461, 7
  %v4463 = vsub.s32 0, %v4462
  %v4464 = vrot.slane %v4459, %v4463
  %vm4466 = vcmask 39936
  %v4468 = vsel %vm4466, %v4457, 0
  %vm4470 = vcmask 1044480
  %v4472 = vsel %vm4470, %v4458, 0
  %4474 = vmatprep.subr.mxu0 0.0
  %4475 = vmatpush1.msra.mxu0 %v4472
  %4476 = vmatprep.subr.mxu0 0.0
  %4477 = vmatpush1.msra.mxu0 0.0
  %4478 = vmatprep.subr.mxu0 0.0
  %4479 = vmatpush1.msra.mxu0 0.0
  %4480 = vmatprep.subr.mxu0 0.0
  %4481 = vmatpush1.msra.mxu0 0.0
  %4482 = vmatprep.subr.mxu0 0.0
  %4483 = vmatpush1.msra.mxu0 0.0
  %4484 = vmatprep.subr.mxu0 0.0
  %4485 = vmatpush1.msra.mxu0 0.0
  %4486 = vmatprep.subr.mxu0 0.0
  %4487 = vmatpush1.msra.mxu0 0.0
  %4488 = vmatprep.subr.mxu0 0.0
  %4489 = vmatpush1.msra.mxu0 0.0
  %4490 = vmatprep.subr.mxu0 0.0
  %4491 = vmatpush1.msra.mxu0 0.0
  %4492 = vmatprep.subr.mxu0 0.0
  %4493 = vmatpush1.msra.mxu0 0.0
  %4494 = vmatprep.subr.mxu0 0.0
  %4495 = vmatpush1.msra.mxu0 0.0
  %4496 = vmatprep.subr.mxu0 0.0
  %4497 = vmatpush1.msra.mxu0 0.0
  %4498 = vmatprep.subr.mxu0 0.0
  %4499 = vmatpush1.msra.mxu0 0.0
  %4500 = vmatprep.subr.mxu0 0.0
  %4501 = vmatpush1.msra.mxu0 0.0
  %4502 = vmatprep.subr.mxu0 0.0
  %4503 = vmatpush1.msra.mxu0 0.0
  %4504 = vmatprep.subr.mxu0 0.0
  %4505 = vmatpush1.msra.mxu0 0.0
  %4506 = vmatprep.subr.mxu0 0.0
  %4507 = vmatpush1.msra.mxu0 0.0
  %4508 = vmatprep.subr.mxu0 0.0
  %4509 = vmatpush1.msra.mxu0 0.0
  %4510 = vmatprep.subr.mxu0 0.0
  %4511 = vmatpush1.msra.mxu0 0.0
  %4512 = vmatprep.subr.mxu0 0.0
  %4513 = vmatpush1.msra.mxu0 0.0
  %4514 = vmatprep.subr.mxu0 0.0
  %4515 = vmatpush1.msra.mxu0 0.0
  %4516 = vmatprep.subr.mxu0 0.0
  %4517 = vmatpush1.msra.mxu0 0.0
  %4518 = vmatprep.subr.mxu0 0.0
  %4519 = vmatpush1.msra.mxu0 0.0
  %4520 = vmatprep.subr.mxu0 0.0
  %4521 = vmatpush1.msra.mxu0 0.0
  %4522 = vmatprep.subr.mxu0 0.0
  %4523 = vmatpush1.msra.mxu0 0.0
  %4524 = vmatprep.subr.mxu0 0.0
  %4525 = vmatpush1.msra.mxu0 0.0
  %4526 = vmatprep.subr.mxu0 0.0
  %4527 = vmatpush1.msra.mxu0 0.0
  %4528 = vmatprep.subr.mxu0 0.0
  %4529 = vmatpush1.msra.mxu0 0.0
  %4530 = vmatprep.subr.mxu0 0.0
  %4531 = vmatpush1.msra.mxu0 0.0
  %4532 = vmatprep.subr.mxu0 0.0
  %4533 = vmatpush1.msra.mxu0 0.0
  %4534 = vmatprep.subr.mxu0 0.0
  %4535 = vmatpush1.msra.mxu0 0.0
  %4536 = vmatprep.subr.mxu0 0.0
  %4537 = vmatpush1.msra.mxu0 0.0
  %4538 = vmatprep.mubr.f32.mxu0 0.0
  %4539 = vmatmul.mubr.f32.gmra.mrb[0].mxu0 %v4468
  %v4540 = vpop.f32.mrb[0].mxu0
  %v4541 = vadd.f32 %v4464, %v4540
  %v4542 = vpop.f32.mrb[0].mxu0
  %4543 = vdwg.mxu0
  %v4544 = vld [vmem:[%s5] sm:$0xff]
  %v4545 = vld [vmem:[%s5 + $0x8] sm:$0xff]
  %v4546 = vld [vmem:[%s5 + $0x10] sm:$0xff]
  %v4547 = vld [vmem:[%s5 + $0x18] sm:$0xff]
  %v4548 = vld [vmem:[%s6] sm:$0xff]
  %v4549 = vld [vmem:[%s6 + $0x8] sm:$0xff]
  %v4550 = vld [vmem:[%s6 + $0x10] sm:$0xff]
  %v4551 = vld [vmem:[%s6 + $0x18] sm:$0xff]
  %4553 = vrot.lane.b32.xlu0 %v4456, 64
  %v4554 = vpop.permute.xlu0 %4553
  %v4555 = vsel %vm752, %v4554, 0
  %4557 = vmatprep.subr.mxu0 0.0
  %4558 = vmatpush1.msra.mxu0 %v4548
  %4559 = vmatprep.subr.mxu0 0.0
  %4560 = vmatpush1.msra.mxu0 %v4549
  %4561 = vmatprep.subr.mxu0 0.0
  %4562 = vmatpush1.msra.mxu0 %v4550
  %4563 = vmatprep.subr.mxu0 0.0
  %4564 = vmatpush1.msra.mxu0 %v4551
  %4565 = vmatprep.subr.mxu0 0.0
  %4566 = vmatpush1.msra.mxu0 0.0
  %4567 = vmatprep.subr.mxu0 0.0
  %4568 = vmatpush1.msra.mxu0 0.0
  %4569 = vmatprep.subr.mxu0 0.0
  %4570 = vmatpush1.msra.mxu0 0.0
  %4571 = vmatprep.subr.mxu0 0.0
  %4572 = vmatpush1.msra.mxu0 0.0
  %4573 = vmatprep.subr.mxu0 0.0
  %4574 = vmatpush1.msra.mxu0 0.0
  %4575 = vmatprep.subr.mxu0 0.0
  %4576 = vmatpush1.msra.mxu0 0.0
  %4577 = vmatprep.subr.mxu0 0.0
  %4578 = vmatpush1.msra.mxu0 0.0
  %4579 = vmatprep.subr.mxu0 0.0
  %4580 = vmatpush1.msra.mxu0 0.0
  %4581 = vmatprep.subr.mxu0 0.0
  %4582 = vmatpush1.msra.mxu0 0.0
  %4583 = vmatprep.subr.mxu0 0.0
  %4584 = vmatpush1.msra.mxu0 0.0
  %4585 = vmatprep.subr.mxu0 0.0
  %4586 = vmatpush1.msra.mxu0 0.0
  %4587 = vmatprep.subr.mxu0 0.0
  %4588 = vmatpush1.msra.mxu0 0.0
  %4589 = vmatprep.subr.mxu0 0.0
  %4590 = vmatpush1.msra.mxu0 0.0
  %4591 = vmatprep.subr.mxu0 0.0
  %4592 = vmatpush1.msra.mxu0 0.0
  %4593 = vmatprep.subr.mxu0 0.0
  %4594 = vmatpush1.msra.mxu0 0.0
  %4595 = vmatprep.subr.mxu0 0.0
  %4596 = vmatpush1.msra.mxu0 0.0
  %4597 = vmatprep.subr.mxu0 0.0
  %4598 = vmatpush1.msra.mxu0 0.0
  %4599 = vmatprep.subr.mxu0 0.0
  %4600 = vmatpush1.msra.mxu0 0.0
  %4601 = vmatprep.subr.mxu0 0.0
  %4602 = vmatpush1.msra.mxu0 0.0
  %4603 = vmatprep.subr.mxu0 0.0
  %4604 = vmatpush1.msra.mxu0 0.0
  %4605 = vmatprep.subr.mxu0 0.0
  %4606 = vmatpush1.msra.mxu0 0.0
  %4607 = vmatprep.subr.mxu0 0.0
  %4608 = vmatpush1.msra.mxu0 0.0
  %4609 = vmatprep.subr.mxu0 0.0
  %4610 = vmatpush1.msra.mxu0 0.0
  %4611 = vmatprep.subr.mxu0 0.0
  %4612 = vmatpush1.msra.mxu0 0.0
  %4613 = vmatprep.subr.mxu0 0.0
  %4614 = vmatpush1.msra.mxu0 0.0
  %4615 = vmatprep.subr.mxu0 0.0
  %4616 = vmatpush1.msra.mxu0 0.0
  %4617 = vmatprep.subr.mxu0 0.0
  %4618 = vmatpush1.msra.mxu0 0.0
  %4619 = vmatprep.subr.mxu0 0.0
  %4620 = vmatpush1.msra.mxu0 0.0
  %4621 = vmatprep.mubr.f32.mxu0 0.0
  %4622 = vmatmul.mubr.f32.gmra.mrb[0].mxu0 %v4555
  %v4623 = vpop.f32.mrb[0].mxu0
  %v4624 = vadd.f32 0.0, %v4623
  %v4625 = vpop.f32.mrb[0].mxu0
  %4626 = vdwg.mxu0
  %v4628 = vsel %vm752, %v4541, 0
  %4630 = vmatprep.subr.mxu0 0.0
  %4631 = vmatpush1.msra.mxu0 %v4544
  %4632 = vmatprep.subr.mxu0 0.0
  %4633 = vmatpush1.msra.mxu0 %v4545
  %4634 = vmatprep.subr.mxu0 0.0
  %4635 = vmatpush1.msra.mxu0 %v4546
  %4636 = vmatprep.subr.mxu0 0.0
  %4637 = vmatpush1.msra.mxu0 %v4547
  %4638 = vmatprep.subr.mxu0 0.0
  %4639 = vmatpush1.msra.mxu0 0.0
  %4640 = vmatprep.subr.mxu0 0.0
  %4641 = vmatpush1.msra.mxu0 0.0
  %4642 = vmatprep.subr.mxu0 0.0
  %4643 = vmatpush1.msra.mxu0 0.0
  %4644 = vmatprep.subr.mxu0 0.0
  %4645 = vmatpush1.msra.mxu0 0.0
  %4646 = vmatprep.subr.mxu0 0.0
  %4647 = vmatpush1.msra.mxu0 0.0
  %4648 = vmatprep.subr.mxu0 0.0
  %4649 = vmatpush1.msra.mxu0 0.0
  %4650 = vmatprep.subr.mxu0 0.0
  %4651 = vmatpush1.msra.mxu0 0.0
  %4652 = vmatprep.subr.mxu0 0.0
  %4653 = vmatpush1.msra.mxu0 0.0
  %4654 = vmatprep.subr.mxu0 0.0
  %4655 = vmatpush1.msra.mxu0 0.0
  %4656 = vmatprep.subr.mxu0 0.0
  %4657 = vmatpush1.msra.mxu0 0.0
  %4658 = vmatprep.subr.mxu0 0.0
  %4659 = vmatpush1.msra.mxu0 0.0
  %4660 = vmatprep.subr.mxu0 0.0
  %4661 = vmatpush1.msra.mxu0 0.0
  %4662 = vmatprep.subr.mxu0 0.0
  %4663 = vmatpush1.msra.mxu0 0.0
  %4664 = vmatprep.subr.mxu0 0.0
  %4665 = vmatpush1.msra.mxu0 0.0
  %4666 = vmatprep.subr.mxu0 0.0
  %4667 = vmatpush1.msra.mxu0 0.0
  %4668 = vmatprep.subr.mxu0 0.0
  %4669 = vmatpush1.msra.mxu0 0.0
  %4670 = vmatprep.subr.mxu0 0.0
  %4671 = vmatpush1.msra.mxu0 0.0
  %4672 = vmatprep.subr.mxu0 0.0
  %4673 = vmatpush1.msra.mxu0 0.0
  %4674 = vmatprep.subr.mxu0 0.0
  %4675 = vmatpush1.msra.mxu0 0.0
  %4676 = vmatprep.subr.mxu0 0.0
  %4677 = vmatpush1.msra.mxu0 0.0
  %4678 = vmatprep.subr.mxu0 0.0
  %4679 = vmatpush1.msra.mxu0 0.0
  %4680 = vmatprep.subr.mxu0 0.0
  %4681 = vmatpush1.msra.mxu0 0.0
  %4682 = vmatprep.subr.mxu0 0.0
  %4683 = vmatpush1.msra.mxu0 0.0
  %4684 = vmatprep.subr.mxu0 0.0
  %4685 = vmatpush1.msra.mxu0 0.0
  %4686 = vmatprep.subr.mxu0 0.0
  %4687 = vmatpush1.msra.mxu0 0.0
  %4688 = vmatprep.subr.mxu0 0.0
  %4689 = vmatpush1.msra.mxu0 0.0
  %4690 = vmatprep.subr.mxu0 0.0
  %4691 = vmatpush1.msra.mxu0 0.0
  %4692 = vmatprep.subr.mxu0 0.0
  %4693 = vmatpush1.msra.mxu0 0.0
  %4694 = vmatprep.mubr.f32.mxu0 0.0
  %4695 = vmatmul.mubr.f32.gmra.mrb[0].mxu0 %v4628
  %v4696 = vpop.f32.mrb[0].mxu0
  %v4697 = vadd.f32 %v4624, %v4696
  %v4698 = vpop.f32.mrb[0].mxu0
  %4699 = vdwg.mxu0
  %v4700 = vld [vmem:[%s7] sm:$0x1]
  %v4702 = vlaneseq
  %v4703 = vshrl.u32 %v4702, 7
  %v4704 = vsub.s32 0, %v4703
  %v4705 = vrot.slane %v4700, %v4704
  %v4707 = vadd.f32 %v4697, %v4705
  %4708 = vst [vmem:[%s15] sm:$0xff] %v4707
  // Predicated region
  $region62: #{_lambda_.1} parent=0 // pred_check
    _
  $region63: #{_lambda_.1} parent=0 // pred_check_branch
    %4710 = sbr.rel (0) target = $region65
  $region64: #{_lambda_.1} parent=0 // pred_region
    _
  $region65: #{_lambda_.1} parent=0 // pred_fallthru
    _
  // Predicated region
  $region66: #{_lambda_.1} parent=0 // pred_check
    _
  $region67: #{_lambda_.1} parent=0 // pred_check_branch
    %4712 = sbr.rel (0) target = $region69
  $region68: #{_lambda_.1} parent=0 // pred_region
    _
  $region69: #{_lambda_.1} parent=0 // pred_fallthru
    _

</llo_original>
